<compile_context>
chip_gen: v7x
topology: tpu7x:2x2x1
jax: 0.10.0
libtpu: 0.0.40
codegen_flags: <defaults>
</compile_context>

<pallas_src>
import math

import jax
import jax.numpy as jnp
from jax.experimental import pallas as pl
from jax.experimental.pallas import tpu as pltpu


# ----------------------------- kernel helpers ------------------------------ #

def _gelu(x):
    # tanh approximation of GELU (PyTorch nn.GELU default is exact erf; ~1e-3 diff).
    c = 0.7978845608028654  # sqrt(2/pi)
    return 0.5 * x * (1.0 + jnp.tanh(c * (x + 0.044715 * x * x * x)))


def _layernorm(x, g, b, eps):
    mu = jnp.mean(x, axis=-1, keepdims=True)
    var = jnp.mean((x - mu) ** 2, axis=-1, keepdims=True)
    return (x - mu) * jax.lax.rsqrt(var + eps) * g + b


def _mm(a, b):
    # bf16 MXU operands, f32 accumulation.
    return jax.lax.dot_general(
        a.astype(jnp.bfloat16), b.astype(jnp.bfloat16),
        dimension_numbers=(((1,), (0,)), ((), ())),
        preferred_element_type=jnp.float32)


# ------------------------- fused encoder-layer kernel ----------------------- #

def _make_layer_kernel(*, num_heads, eps, input_ln, fuse_head):
    """Builds a fused kernel: [emb LN] -> QKV -> batched MHA -> out proj ->
    +res -> LN1 -> FFN(GELU) -> +res -> LN2 -> [pooler + classifier]."""

    def kernel(*refs):
        if fuse_head:
            (x_ref, mask_ref, ln0_g, ln0_b,
             wqkv_ref, bqkv_ref, wo_ref, bo_ref,
             ln1_g, ln1_b, w1_ref, b1_ref, w2_ref, b2_ref,
             ln2_g, ln2_b, pw_ref, pb_ref, cw_ref, cb_ref,
             out_ref, probs_ref, logits_ref) = refs
        else:
            (x_ref, mask_ref, ln0_g, ln0_b,
             wqkv_ref, bqkv_ref, wo_ref, bo_ref,
             ln1_g, ln1_b, w1_ref, b1_ref, w2_ref, b2_ref,
             ln2_g, ln2_b,
             out_ref, probs_ref) = refs

        x = x_ref[0].astype(jnp.float32)                     # (S, H)
        S, H = x.shape
        dH = H // num_heads

        if input_ln:
            # Embedding LayerNorm fused into layer 0 (saves a pallas_call launch).
            x = _layernorm(x, ln0_g[...], ln0_b[...], eps)

        x_bf = x.astype(jnp.bfloat16)

        # Fused QKV projection (S, 3H). 1/sqrt(dH) is pre-folded into the Q
        # columns of wqkv/bqkv at init -> no in-kernel score scaling.
        qkv = jnp.dot(x_bf, wqkv_ref[...],
                      preferred_element_type=jnp.float32) + bqkv_ref[...]
        qkv_bf = qkv.astype(jnp.bfloat16)                    # single cast

        # Head-major (nH, S, dH) operands via leading-axis stack of lane slices.
        q_h = jnp.stack(
            [qkv_bf[:, h * dH:(h + 1) * dH] for h in range(num_heads)], axis=0)
        k_h = jnp.stack(
            [qkv_bf[:, H + h * dH:H + (h + 1) * dH] for h in range(num_heads)], axis=0)
        v_h = jnp.stack(
            [qkv_bf[:, 2 * H + h * dH:2 * H + (h + 1) * dH] for h in range(num_heads)],
            axis=0)

        # One batched score matmul over all heads; mask broadcast exactly once.
        s = jnp.einsum('hqd,hkd->hqk', q_h, k_h,
                       preferred_element_type=jnp.float32)    # (nH, S, S)
        s = s + mask_ref[0]                                   # (1, S) additive key mask

        # Single softmax over all heads (approx reciprocal -> EUP slot).
        m = jnp.max(s, axis=-1, keepdims=True)
        p = jnp.exp(s - m)
        p = p * pl.reciprocal(jnp.sum(p, axis=-1, keepdims=True), approx=True)
        probs_ref[0] = p.astype(probs_ref.dtype)              # single (nH,S,S) store

        # Batched PV matmul; merge heads back to (S, H) lane-concat.
        ctx_h = jnp.einsum('hqk,hkd->hqd', p.astype(jnp.bfloat16), v_h,
                           preferred_element_type=jnp.float32)
        ctx = jnp.concatenate([ctx_h[h] for h in range(num_heads)], axis=-1)

        # Output projection + residual + LayerNorm 1 (fused, no HBM round trip).
        attn_out = _mm(ctx, wo_ref[...]) + bo_ref[...]
        x1 = _layernorm(attn_out + x, ln1_g[...], ln1_b[...], eps)

        # FFN (GELU) + residual + LayerNorm 2 (fused).
        ff = _gelu(_mm(x1, w1_ref[...]) + b1_ref[...])
        ff2 = _mm(ff, w2_ref[...]) + b2_ref[...]
        out = _layernorm(ff2 + x1, ln2_g[...], ln2_b[...], eps)

        out_ref[0] = out.astype(out_ref.dtype)                # bf16 store

        if fuse_head:
            # Pooler(tanh of CLS row) + classifier fused into the last layer.
            # nn.Dropout(0.3) is identity at inference.
            # TODO(synk): training-mode dropout (stochastic masking) not implemented.
            cls = out[0:1, :]
            pooled = jnp.tanh(_mm(cls, pw_ref[...]) + pb_ref[...])
            logits = _mm(pooled, cw_ref[...]) + cb_ref[...]
            logits_ref[0] = logits.astype(logits_ref.dtype)

    return kernel


# ------------------------------ Pallas wrapper ------------------------------ #

def pallas_encoder_layer(hidden, mask_add, emb_ln, p, head_p=None, *,
                         num_heads, input_ln=False, eps=1e-12):
    B, S, H = hidden.shape
    I = p["w1"].shape[1]
    nH = num_heads
    fuse_head = head_p is not None

    kernel = _make_layer_kernel(num_heads=nH, eps=eps,
                                input_ln=input_ln, fuse_head=fuse_head)

    def rep(shape):
        nd = len(shape)
        return pl.BlockSpec(shape, lambda b, nd=nd: (0,) * nd)

    in_specs = [
        pl.BlockSpec((1, S, H), lambda b: (b, 0, 0)),          # hidden
        pl.BlockSpec((1, 1, S), lambda b: (b, 0, 0)),          # additive mask
        rep((1, H)), rep((1, H)),                              # embedding LN g, b
        rep((H, 3 * H)), rep((1, 3 * H)),                      # wqkv, bqkv
        rep((H, H)), rep((1, H)),                              # wo, bo
        rep((1, H)), rep((1, H)),                              # ln1 g, b
        rep((H, I)), rep((1, I)),                              # w1, b1
        rep((I, H)), rep((1, H)),                              # w2, b2
        rep((1, H)), rep((1, H)),                              # ln2 g, b
    ]
    args = [hidden, mask_add, emb_ln[0], emb_ln[1],
            p["wqkv"], p["bqkv"], p["wo"], p["bo"],
            p["ln1_g"], p["ln1_b"],
            p["w1"], p["b1"], p["w2"], p["b2"],
            p["ln2_g"], p["ln2_b"]]

    out_shape = [jax.ShapeDtypeStruct((B, S, H), jnp.bfloat16),
                 jax.ShapeDtypeStruct((B, nH, S, S), jnp.float32)]
    out_specs = [pl.BlockSpec((1, S, H), lambda b: (b, 0, 0)),
                 pl.BlockSpec((1, nH, S, S), lambda b: (b, 0, 0, 0))]

    if fuse_head:
        C = head_p["cls_w"].shape[1]
        in_specs += [rep((H, H)), rep((1, H)), rep((H, C)), rep((1, C))]
        args += [head_p["pooler_w"], head_p["pooler_b"],
                 head_p["cls_w"], head_p["cls_b"]]
        out_shape.append(jax.ShapeDtypeStruct((B, 1, C), jnp.float32))
        out_specs.append(pl.BlockSpec((1, 1, C), lambda b: (b, 0, 0)))

    results = pl.pallas_call(
        kernel,
        out_shape=tuple(out_shape),
        grid=(B,),
        in_specs=in_specs,
        out_specs=tuple(out_specs),
        compiler_params=pltpu.CompilerParams(
            dimension_semantics=("parallel",)),   # v7x: one batch element per TC
    )(*args)

    if fuse_head:
        out, probs, logits = results
        return out, probs, logits[:, 0, :]
    out, probs = results
    return out, probs, None


# ------------------------------- BERT model --------------------------------- #

CFG = dict(vocab=50, hidden=32, heads=4, layers=2, intermediate=64,
           max_pos=16, type_vocab=2, num_classes=2)


def init_params(key, cfg):
    H, I, V = cfg["hidden"], cfg["intermediate"], cfg["vocab"]
    P, T, C, L = cfg["max_pos"], cfg["type_vocab"], cfg["num_classes"], cfg["layers"]
    nH = cfg["heads"]
    q_scale = 1.0 / math.sqrt(H // nH)
    keys = jax.random.split(key, 6 + L)

    def norm(k, shape, dtype=jnp.float32):
        return (0.02 * jax.random.normal(k, shape, jnp.float32)).astype(dtype)

    wdt = jnp.bfloat16  # matmul weights in bf16 (MXU operands); LN/softmax math in f32.

    params = {
        "word_emb": norm(keys[0], (V, H)),
        "pos_emb": norm(keys[1], (P, H)),
        "type_emb": norm(keys[2], (T, H)),
        "emb_ln_g": jnp.ones((1, H), jnp.float32),
        "emb_ln_b": jnp.zeros((1, H), jnp.float32),
        "head": {
            "pooler_w": norm(keys[3], (H, H), wdt),
            "pooler_b": jnp.zeros((1, H), jnp.float32),
            "cls_w": norm(keys[4], (H, C), wdt),
            "cls_b": jnp.zeros((1, C), jnp.float32),
        },
        "layers": [],
    }
    for l in range(L):
        lk = jax.random.split(keys[5 + l], 6)
        wq = norm(lk[0], (H, H))
        wk = norm(lk[1], (H, H))
        wv = norm(lk[2], (H, H))
        bq = bk = bv = jnp.zeros((H,), jnp.float32)
        params["layers"].append({
            # 1/sqrt(dH) attention scale pre-folded into the Q projection.
            "wqkv": jnp.concatenate([wq * q_scale, wk, wv], axis=1).astype(wdt),  # [H, 3H]
            "bqkv": jnp.concatenate([bq * q_scale, bk, bv]).reshape(1, 3 * H),
            "wo": norm(lk[3], (H, H), wdt), "bo": jnp.zeros((1, H), jnp.float32),
            "ln1_g": jnp.ones((1, H), jnp.float32), "ln1_b": jnp.zeros((1, H), jnp.float32),
            "w1": norm(lk[4], (H, I), wdt), "b1": jnp.zeros((1, I), jnp.float32),
            "w2": norm(lk[5], (I, H), wdt), "b2": jnp.zeros((1, H), jnp.float32),
            "ln2_g": jnp.ones((1, H), jnp.float32), "ln2_b": jnp.zeros((1, H), jnp.float32),
        })
    return params


def bert_sentiment_forward(params, input_ids, attention_mask, cfg):
    B, S = input_ids.shape
    nH, L = cfg["heads"], cfg["layers"]

    # Embeddings: gathers are plain-JAX glue; the embedding LayerNorm runs
    # inside the first encoder-layer kernel.
    # TODO(synk): token_type_ids hard-coded to type 0 (matches default BERT usage).
    hidden = (params["word_emb"][input_ids]
              + params["pos_emb"][jnp.arange(S)][None, :, :]
              + params["type_emb"][0][None, None, :])                # (B, S, H) f32

    # Tiny additive attention mask [B, 1, S]; broadcast once inside the kernel.
    mask_add = ((1.0 - attention_mask.astype(jnp.float32)) * -1e9).reshape(B, 1, S)

    emb_ln = (params["emb_ln_g"], params["emb_ln_b"])
    attentions = []
    logits = None
    for li, layer in enumerate(params["layers"]):
        head_p = params["head"] if li == L - 1 else None   # pooler+classifier in last layer
        hidden, probs, lg = pallas_encoder_layer(
            hidden, mask_add, emb_ln, layer, head_p,
            num_heads=nH, input_ln=(li == 0))
        attentions.append(probs)
        if lg is not None:
            logits = lg
    return logits, tuple(attentions)


# ---------------------------------- main ------------------------------------ #

if __name__ == "__main__":
    B, S = 2, 8
    key = jax.random.PRNGKey(0)
    k_param, k_ids = jax.random.split(key)

    params = init_params(k_param, CFG)
    input_ids = jax.random.randint(k_ids, (B, S), 0, CFG["vocab"], dtype=jnp.int32)
    attention_mask = jnp.array(
        [[1, 1, 1, 1, 1, 1, 1, 1],
         [1, 1, 1, 1, 1, 1, 0, 0]], dtype=jnp.int32)

    forward = jax.jit(lambda p, ids, m: bert_sentiment_forward(p, ids, m, CFG))
    logits, attentions = forward(params, input_ids, attention_mask)
    jax.block_until_ready(logits)
    jax.block_until_ready(attentions)

    assert logits.shape == (B, CFG["num_classes"])
    assert len(attentions) == CFG["layers"]
    assert attentions[0].shape == (B, CFG["heads"], S, S)
    print("KERNEL_OK")
</pallas_src>

<mosaic_0001>
module attributes {stable_mosaic.version = 11 : i64} {
  func.func @kernel(%arg0: i32, %arg1: memref<1x8x32xf32, #tpu.memory_space<vmem>>, %arg2: memref<1x1x8xf32, #tpu.memory_space<vmem>>, %arg3: memref<1x32xf32, #tpu.memory_space<vmem>>, %arg4: memref<1x32xf32, #tpu.memory_space<vmem>>, %arg5: memref<32x96xbf16, #tpu.memory_space<vmem>>, %arg6: memref<1x96xf32, #tpu.memory_space<vmem>>, %arg7: memref<32x32xbf16, #tpu.memory_space<vmem>>, %arg8: memref<1x32xf32, #tpu.memory_space<vmem>>, %arg9: memref<1x32xf32, #tpu.memory_space<vmem>>, %arg10: memref<1x32xf32, #tpu.memory_space<vmem>>, %arg11: memref<32x64xbf16, #tpu.memory_space<vmem>>, %arg12: memref<1x64xf32, #tpu.memory_space<vmem>>, %arg13: memref<64x32xbf16, #tpu.memory_space<vmem>>, %arg14: memref<1x32xf32, #tpu.memory_space<vmem>>, %arg15: memref<1x32xf32, #tpu.memory_space<vmem>>, %arg16: memref<1x32xf32, #tpu.memory_space<vmem>>, %arg17: memref<1x8x32xbf16, #tpu.memory_space<vmem>>, %arg18: memref<1x4x8x8xf32, #tpu.memory_space<vmem>>) attributes {dimension_semantics = [#tpu.dimension_semantics<parallel>], iteration_bounds = array<i64: 2>, scalar_prefetch = 0 : i64, scratch_operands = 0 : i64, tpu.core_type = #tpu.core_type<tc>, window_params = [{transform_indices = @transform_0, window_bounds = array<i64: 1, 8, 32>}, {transform_indices = @transform_1, window_bounds = array<i64: 1, 1, 8>}, {pipeline_mode = #tpu.pipeline_mode<synchronous>, transform_indices = @transform_2, window_bounds = array<i64: 1, 32>}, {pipeline_mode = #tpu.pipeline_mode<synchronous>, transform_indices = @transform_3, window_bounds = array<i64: 1, 32>}, {pipeline_mode = #tpu.pipeline_mode<synchronous>, transform_indices = @transform_4, window_bounds = array<i64: 32, 96>}, {pipeline_mode = #tpu.pipeline_mode<synchronous>, transform_indices = @transform_5, window_bounds = array<i64: 1, 96>}, {pipeline_mode = #tpu.pipeline_mode<synchronous>, transform_indices = @transform_6, window_bounds = array<i64: 32, 32>}, {pipeline_mode = #tpu.pipeline_mode<synchronous>, transform_indices = @transform_7, window_bounds = array<i64: 1, 32>}, {pipeline_mode = #tpu.pipeline_mode<synchronous>, transform_indices = @transform_8, window_bounds = array<i64: 1, 32>}, {pipeline_mode = #tpu.pipeline_mode<synchronous>, transform_indices = @transform_9, window_bounds = array<i64: 1, 32>}, {pipeline_mode = #tpu.pipeline_mode<synchronous>, transform_indices = @transform_10, window_bounds = array<i64: 32, 64>}, {pipeline_mode = #tpu.pipeline_mode<synchronous>, transform_indices = @transform_11, window_bounds = array<i64: 1, 64>}, {pipeline_mode = #tpu.pipeline_mode<synchronous>, transform_indices = @transform_12, window_bounds = array<i64: 64, 32>}, {pipeline_mode = #tpu.pipeline_mode<synchronous>, transform_indices = @transform_13, window_bounds = array<i64: 1, 32>}, {pipeline_mode = #tpu.pipeline_mode<synchronous>, transform_indices = @transform_14, window_bounds = array<i64: 1, 32>}, {pipeline_mode = #tpu.pipeline_mode<synchronous>, transform_indices = @transform_15, window_bounds = array<i64: 1, 32>}, {transform_indices = @transform_16, window_bounds = array<i64: 1, 8, 32>}, {transform_indices = @transform_17, window_bounds = array<i64: 1, 4, 8, 8>}]} {
    %c0 = arith.constant 0 : index
    %c0_0 = arith.constant 0 : index
    %c0_1 = arith.constant 0 : index
    %0 = vector.load %arg1[%c0, %c0_0, %c0_1] : memref<1x8x32xf32, #tpu.memory_space<vmem>>, vector<1x8x32xf32>
    %1 = vector.shape_cast %0 : vector<1x8x32xf32> to vector<8x32xf32>
    %c0_2 = arith.constant 0 : index
    %c0_3 = arith.constant 0 : index
    %2 = vector.load %arg3[%c0_2, %c0_3] : memref<1x32xf32, #tpu.memory_space<vmem>>, vector<1x32xf32>
    %c0_4 = arith.constant 0 : index
    %c0_5 = arith.constant 0 : index
    %3 = vector.load %arg4[%c0_4, %c0_5] : memref<1x32xf32, #tpu.memory_space<vmem>>, vector<1x32xf32>
    %cst = arith.constant dense<0.000000e+00> : vector<8xf32>
    %4 = vector.multi_reduction <add>, %1, %cst [1] : vector<8x32xf32> to vector<8xf32>
    %5 = vector.shape_cast %4 : vector<8xf32> to vector<8x1xf32>
    %cst_6 = arith.constant 3.200000e+01 : f32
    %6 = vector.broadcast %cst_6 : f32 to vector<8x1xf32>
    %7 = arith.divf %5, %6 : vector<8x1xf32>
    %8 = vector.broadcast %7 : vector<8x1xf32> to vector<8x32xf32>
    %9 = arith.subf %1, %8 : vector<8x32xf32>
    %10 = arith.mulf %9, %9 : vector<8x32xf32>
    %cst_7 = arith.constant dense<0.000000e+00> : vector<8xf32>
    %11 = vector.multi_reduction <add>, %10, %cst_7 [1] : vector<8x32xf32> to vector<8xf32>
    %12 = vector.shape_cast %11 : vector<8xf32> to vector<8x1xf32>
    %cst_8 = arith.constant 3.200000e+01 : f32
    %13 = vector.broadcast %cst_8 : f32 to vector<8x1xf32>
    %14 = arith.divf %12, %13 : vector<8x1xf32>
    %15 = vector.broadcast %7 : vector<8x1xf32> to vector<8x32xf32>
    %16 = arith.subf %1, %15 : vector<8x32xf32>
    %cst_9 = arith.constant 9.99999996E-13 : f32
    %17 = vector.broadcast %cst_9 : f32 to vector<8x1xf32>
    %18 = arith.addf %14, %17 : vector<8x1xf32>
    %19 = math.rsqrt %18 : vector<8x1xf32>
    %20 = vector.broadcast %19 : vector<8x1xf32> to vector<8x32xf32>
    %21 = arith.mulf %16, %20 : vector<8x32xf32>
    %22 = vector.broadcast %2 : vector<1x32xf32> to vector<8x32xf32>
    %23 = arith.mulf %21, %22 : vector<8x32xf32>
    %24 = vector.broadcast %3 : vector<1x32xf32> to vector<8x32xf32>
    %25 = arith.addf %23, %24 : vector<8x32xf32>
    %26 = arith.truncf %25 : vector<8x32xf32> to vector<8x32xbf16>
    %c0_10 = arith.constant 0 : index
    %c0_11 = arith.constant 0 : index
    %27 = vector.load %arg5[%c0_10, %c0_11] : memref<32x96xbf16, #tpu.memory_space<vmem>>, vector<32x96xbf16>
    %cst_12 = arith.constant dense<0.000000e+00> : vector<8x96xf32>
    %28 = tpu.matmul %26, %27, %cst_12 {dimension_numbers = #tpu.dot_dimension_numbers<[1], [0], [0], [1], [0, 0, 1, 1], [], []>} : vector<8x32xbf16>, vector<32x96xbf16>, vector<8x96xf32> -> vector<8x96xf32>
    %c0_13 = arith.constant 0 : index
    %c0_14 = arith.constant 0 : index
    %29 = vector.load %arg6[%c0_13, %c0_14] : memref<1x96xf32, #tpu.memory_space<vmem>>, vector<1x96xf32>
    %30 = vector.broadcast %29 : vector<1x96xf32> to vector<8x96xf32>
    %31 = arith.addf %28, %30 : vector<8x96xf32>
    %32 = arith.truncf %31 : vector<8x96xf32> to vector<8x96xbf16>
    %33 = vector.extract_strided_slice %32 {offsets = [0, 0], sizes = [8, 8], strides = [1, 1]} : vector<8x96xbf16> to vector<8x8xbf16>
    %34 = vector.extract_strided_slice %32 {offsets = [0, 8], sizes = [8, 8], strides = [1, 1]} : vector<8x96xbf16> to vector<8x8xbf16>
    %35 = vector.extract_strided_slice %32 {offsets = [0, 16], sizes = [8, 8], strides = [1, 1]} : vector<8x96xbf16> to vector<8x8xbf16>
    %36 = vector.extract_strided_slice %32 {offsets = [0, 24], sizes = [8, 8], strides = [1, 1]} : vector<8x96xbf16> to vector<8x8xbf16>
    %37 = vector.shape_cast %33 : vector<8x8xbf16> to vector<1x8x8xbf16>
    %38 = vector.shape_cast %34 : vector<8x8xbf16> to vector<1x8x8xbf16>
    %39 = vector.shape_cast %35 : vector<8x8xbf16> to vector<1x8x8xbf16>
    %40 = vector.shape_cast %36 : vector<8x8xbf16> to vector<1x8x8xbf16>
    %41 = tpu.concatenate %37, %38, %39, %40 in 0 : vector<1x8x8xbf16>, vector<1x8x8xbf16>, vector<1x8x8xbf16>, vector<1x8x8xbf16> -> vector<4x8x8xbf16>
    %42 = vector.extract_strided_slice %32 {offsets = [0, 32], sizes = [8, 8], strides = [1, 1]} : vector<8x96xbf16> to vector<8x8xbf16>
    %43 = vector.extract_strided_slice %32 {offsets = [0, 40], sizes = [8, 8], strides = [1, 1]} : vector<8x96xbf16> to vector<8x8xbf16>
    %44 = vector.extract_strided_slice %32 {offsets = [0, 48], sizes = [8, 8], strides = [1, 1]} : vector<8x96xbf16> to vector<8x8xbf16>
    %45 = vector.extract_strided_slice %32 {offsets = [0, 56], sizes = [8, 8], strides = [1, 1]} : vector<8x96xbf16> to vector<8x8xbf16>
    %46 = vector.shape_cast %42 : vector<8x8xbf16> to vector<1x8x8xbf16>
    %47 = vector.shape_cast %43 : vector<8x8xbf16> to vector<1x8x8xbf16>
    %48 = vector.shape_cast %44 : vector<8x8xbf16> to vector<1x8x8xbf16>
    %49 = vector.shape_cast %45 : vector<8x8xbf16> to vector<1x8x8xbf16>
    %50 = tpu.concatenate %46, %47, %48, %49 in 0 : vector<1x8x8xbf16>, vector<1x8x8xbf16>, vector<1x8x8xbf16>, vector<1x8x8xbf16> -> vector<4x8x8xbf16>
    %51 = vector.extract_strided_slice %32 {offsets = [0, 64], sizes = [8, 8], strides = [1, 1]} : vector<8x96xbf16> to vector<8x8xbf16>
    %52 = vector.extract_strided_slice %32 {offsets = [0, 72], sizes = [8, 8], strides = [1, 1]} : vector<8x96xbf16> to vector<8x8xbf16>
    %53 = vector.extract_strided_slice %32 {offsets = [0, 80], sizes = [8, 8], strides = [1, 1]} : vector<8x96xbf16> to vector<8x8xbf16>
    %54 = vector.extract_strided_slice %32 {offsets = [0, 88], sizes = [8, 8], strides = [1, 1]} : vector<8x96xbf16> to vector<8x8xbf16>
    %55 = vector.shape_cast %51 : vector<8x8xbf16> to vector<1x8x8xbf16>
    %56 = vector.shape_cast %52 : vector<8x8xbf16> to vector<1x8x8xbf16>
    %57 = vector.shape_cast %53 : vector<8x8xbf16> to vector<1x8x8xbf16>
    %58 = vector.shape_cast %54 : vector<8x8xbf16> to vector<1x8x8xbf16>
    %59 = tpu.concatenate %55, %56, %57, %58 in 0 : vector<1x8x8xbf16>, vector<1x8x8xbf16>, vector<1x8x8xbf16>, vector<1x8x8xbf16> -> vector<4x8x8xbf16>
    "tpu.trace_start"() <{level = 10 : i32, message = "hqd,hkd->hqk"}> : () -> ()
    %cst_15 = arith.constant dense<0.000000e+00> : vector<4x8x8xf32>
    %60 = tpu.matmul %41, %50, %cst_15 {dimension_numbers = #tpu.dot_dimension_numbers<[2], [2], [1], [1], [0, 0, 0, 1, 1, 1], [0], [0]>} : vector<4x8x8xbf16>, vector<4x8x8xbf16>, vector<4x8x8xf32> -> vector<4x8x8xf32>
    "tpu.trace_stop"() : () -> ()
    %c0_16 = arith.constant 0 : index
    %c0_17 = arith.constant 0 : index
    %c0_18 = arith.constant 0 : index
    %61 = vector.load %arg2[%c0_16, %c0_17, %c0_18] : memref<1x1x8xf32, #tpu.memory_space<vmem>>, vector<1x1x8xf32>
    %62 = vector.shape_cast %61 : vector<1x1x8xf32> to vector<1x8xf32>
    %63 = vector.shape_cast %62 : vector<1x8xf32> to vector<1x1x8xf32>
    %64 = vector.broadcast %63 : vector<1x1x8xf32> to vector<4x8x8xf32>
    %65 = arith.addf %60, %64 : vector<4x8x8xf32>
    %cst_19 = arith.constant dense<0xFF800000> : vector<4x8xf32>
    %66 = vector.multi_reduction <maximumf>, %65, %cst_19 [2] : vector<4x8x8xf32> to vector<4x8xf32>
    %67 = vector.shape_cast %66 : vector<4x8xf32> to vector<4x8x1xf32>
    %68 = vector.broadcast %67 : vector<4x8x1xf32> to vector<4x8x8xf32>
    %69 = arith.subf %65, %68 : vector<4x8x8xf32>
    %70 = math.exp %69 : vector<4x8x8xf32>
    %cst_20 = arith.constant dense<0.000000e+00> : vector<4x8xf32>
    %71 = vector.multi_reduction <add>, %70, %cst_20 [2] : vector<4x8x8xf32> to vector<4x8xf32>
    %72 = vector.shape_cast %71 : vector<4x8xf32> to vector<4x8x1xf32>
    %73 = tpu.reciprocal %72 {approx = true} : vector<4x8x1xf32> -> vector<4x8x1xf32>
    %74 = vector.broadcast %73 : vector<4x8x1xf32> to vector<4x8x8xf32>
    %75 = arith.mulf %70, %74 : vector<4x8x8xf32>
    %c0_21 = arith.constant 0 : index
    %c0_22 = arith.constant 0 : index
    %c0_23 = arith.constant 0 : index
    %c0_24 = arith.constant 0 : index
    %76 = vector.load %arg18[%c0_21, %c0_22, %c0_23, %c0_24] : memref<1x4x8x8xf32, #tpu.memory_space<vmem>>, vector<1x4x8x8xf32>
    %77 = vector.shape_cast %76 : vector<1x4x8x8xf32> to vector<4x8x8xf32>
    %78 = vector.shape_cast %75 : vector<4x8x8xf32> to vector<1x4x8x8xf32>
    tpu.vector_store %arg18[%c0_21, %c0_22, %c0_23, %c0_24], %78 {strides = array<i32>} : memref<1x4x8x8xf32, #tpu.memory_space<vmem>>, vector<1x4x8x8xf32>,
    %79 = arith.truncf %75 : vector<4x8x8xf32> to vector<4x8x8xbf16>
    "tpu.trace_start"() <{level = 10 : i32, message = "hqk,hkd->hqd"}> : () -> ()
    %cst_25 = arith.constant dense<0.000000e+00> : vector<4x8x8xf32>
    %80 = tpu.matmul %79, %59, %cst_25 {dimension_numbers = #tpu.dot_dimension_numbers<[2], [1], [1], [2], [0, 0, 0, 1, 1, 2], [0], [0]>} : vector<4x8x8xbf16>, vector<4x8x8xbf16>, vector<4x8x8xf32> -> vector<4x8x8xf32>
    "tpu.trace_stop"() : () -> ()
    %81 = vector.extract_strided_slice %80 {offsets = [0, 0, 0], sizes = [1, 8, 8], strides = [1, 1, 1]} : vector<4x8x8xf32> to vector<1x8x8xf32>
    %82 = vector.shape_cast %81 : vector<1x8x8xf32> to vector<8x8xf32>
    %83 = vector.extract_strided_slice %80 {offsets = [1, 0, 0], sizes = [1, 8, 8], strides = [1, 1, 1]} : vector<4x8x8xf32> to vector<1x8x8xf32>
    %84 = vector.shape_cast %83 : vector<1x8x8xf32> to vector<8x8xf32>
    %85 = vector.extract_strided_slice %80 {offsets = [2, 0, 0], sizes = [1, 8, 8], strides = [1, 1, 1]} : vector<4x8x8xf32> to vector<1x8x8xf32>
    %86 = vector.shape_cast %85 : vector<1x8x8xf32> to vector<8x8xf32>
    %87 = vector.extract_strided_slice %80 {offsets = [3, 0, 0], sizes = [1, 8, 8], strides = [1, 1, 1]} : vector<4x8x8xf32> to vector<1x8x8xf32>
    %88 = vector.shape_cast %87 : vector<1x8x8xf32> to vector<8x8xf32>
    %89 = tpu.concatenate %82, %84, %86, %88 in 1 : vector<8x8xf32>, vector<8x8xf32>, vector<8x8xf32>, vector<8x8xf32> -> vector<8x32xf32>
    %c0_26 = arith.constant 0 : index
    %c0_27 = arith.constant 0 : index
    %90 = vector.load %arg7[%c0_26, %c0_27] : memref<32x32xbf16, #tpu.memory_space<vmem>>, vector<32x32xbf16>
    %91 = arith.truncf %89 : vector<8x32xf32> to vector<8x32xbf16>
    %cst_28 = arith.constant dense<0.000000e+00> : vector<8x32xf32>
    %92 = tpu.matmul %91, %90, %cst_28 {dimension_numbers = #tpu.dot_dimension_numbers<[1], [0], [0], [1], [0, 0, 1, 1], [], []>} : vector<8x32xbf16>, vector<32x32xbf16>, vector<8x32xf32> -> vector<8x32xf32>
    %c0_29 = arith.constant 0 : index
    %c0_30 = arith.constant 0 : index
    %93 = vector.load %arg8[%c0_29, %c0_30] : memref<1x32xf32, #tpu.memory_space<vmem>>, vector<1x32xf32>
    %94 = vector.broadcast %93 : vector<1x32xf32> to vector<8x32xf32>
    %95 = arith.addf %92, %94 : vector<8x32xf32>
    %96 = arith.addf %95, %25 : vector<8x32xf32>
    %c0_31 = arith.constant 0 : index
    %c0_32 = arith.constant 0 : index
    %97 = vector.load %arg9[%c0_31, %c0_32] : memref<1x32xf32, #tpu.memory_space<vmem>>, vector<1x32xf32>
    %c0_33 = arith.constant 0 : index
    %c0_34 = arith.constant 0 : index
    %98 = vector.load %arg10[%c0_33, %c0_34] : memref<1x32xf32, #tpu.memory_space<vmem>>, vector<1x32xf32>
    %cst_35 = arith.constant dense<0.000000e+00> : vector<8xf32>
    %99 = vector.multi_reduction <add>, %96, %cst_35 [1] : vector<8x32xf32> to vector<8xf32>
    %100 = vector.shape_cast %99 : vector<8xf32> to vector<8x1xf32>
    %cst_36 = arith.constant 3.200000e+01 : f32
    %101 = vector.broadcast %cst_36 : f32 to vector<8x1xf32>
    %102 = arith.divf %100, %101 : vector<8x1xf32>
    %103 = vector.broadcast %102 : vector<8x1xf32> to vector<8x32xf32>
    %104 = arith.subf %96, %103 : vector<8x32xf32>
    %105 = arith.mulf %104, %104 : vector<8x32xf32>
    %cst_37 = arith.constant dense<0.000000e+00> : vector<8xf32>
    %106 = vector.multi_reduction <add>, %105, %cst_37 [1] : vector<8x32xf32> to vector<8xf32>
    %107 = vector.shape_cast %106 : vector<8xf32> to vector<8x1xf32>
    %cst_38 = arith.constant 3.200000e+01 : f32
    %108 = vector.broadcast %cst_38 : f32 to vector<8x1xf32>
    %109 = arith.divf %107, %108 : vector<8x1xf32>
    %110 = vector.broadcast %102 : vector<8x1xf32> to vector<8x32xf32>
    %111 = arith.subf %96, %110 : vector<8x32xf32>
    %cst_39 = arith.constant 9.99999996E-13 : f32
    %112 = vector.broadcast %cst_39 : f32 to vector<8x1xf32>
    %113 = arith.addf %109, %112 : vector<8x1xf32>
    %114 = math.rsqrt %113 : vector<8x1xf32>
    %115 = vector.broadcast %114 : vector<8x1xf32> to vector<8x32xf32>
    %116 = arith.mulf %111, %115 : vector<8x32xf32>
    %117 = vector.broadcast %97 : vector<1x32xf32> to vector<8x32xf32>
    %118 = arith.mulf %116, %117 : vector<8x32xf32>
    %119 = vector.broadcast %98 : vector<1x32xf32> to vector<8x32xf32>
    %120 = arith.addf %118, %119 : vector<8x32xf32>
    %c0_40 = arith.constant 0 : index
    %c0_41 = arith.constant 0 : index
    %121 = vector.load %arg11[%c0_40, %c0_41] : memref<32x64xbf16, #tpu.memory_space<vmem>>, vector<32x64xbf16>
    %122 = arith.truncf %120 : vector<8x32xf32> to vector<8x32xbf16>
    %cst_42 = arith.constant dense<0.000000e+00> : vector<8x64xf32>
    %123 = tpu.matmul %122, %121, %cst_42 {dimension_numbers = #tpu.dot_dimension_numbers<[1], [0], [0], [1], [0, 0, 1, 1], [], []>} : vector<8x32xbf16>, vector<32x64xbf16>, vector<8x64xf32> -> vector<8x64xf32>
    %c0_43 = arith.constant 0 : index
    %c0_44 = arith.constant 0 : index
    %124 = vector.load %arg12[%c0_43, %c0_44] : memref<1x64xf32, #tpu.memory_space<vmem>>, vector<1x64xf32>
    %125 = vector.broadcast %124 : vector<1x64xf32> to vector<8x64xf32>
    %126 = arith.addf %123, %125 : vector<8x64xf32>
    %cst_45 = arith.constant 5.000000e-01 : f32
    %127 = vector.broadcast %cst_45 : f32 to vector<8x64xf32>
    %128 = arith.mulf %127, %126 : vector<8x64xf32>
    %cst_46 = arith.constant 4.471500e-02 : f32
    %129 = vector.broadcast %cst_46 : f32 to vector<8x64xf32>
    %130 = arith.mulf %129, %126 : vector<8x64xf32>
    %131 = arith.mulf %130, %126 : vector<8x64xf32>
    %132 = arith.mulf %131, %126 : vector<8x64xf32>
    %133 = arith.addf %126, %132 : vector<8x64xf32>
    %cst_47 = arith.constant 0.797884583 : f32
    %134 = vector.broadcast %cst_47 : f32 to vector<8x64xf32>
    %135 = arith.mulf %134, %133 : vector<8x64xf32>
    %136 = math.tanh %135 : vector<8x64xf32>
    %cst_48 = arith.constant 1.000000e+00 : f32
    %137 = vector.broadcast %cst_48 : f32 to vector<8x64xf32>
    %138 = arith.addf %137, %136 : vector<8x64xf32>
    %139 = arith.mulf %128, %138 : vector<8x64xf32>
    %c0_49 = arith.constant 0 : index
    %c0_50 = arith.constant 0 : index
    %140 = vector.load %arg13[%c0_49, %c0_50] : memref<64x32xbf16, #tpu.memory_space<vmem>>, vector<64x32xbf16>
    %141 = arith.truncf %139 : vector<8x64xf32> to vector<8x64xbf16>
    %cst_51 = arith.constant dense<0.000000e+00> : vector<8x32xf32>
    %142 = tpu.matmul %141, %140, %cst_51 {dimension_numbers = #tpu.dot_dimension_numbers<[1], [0], [0], [1], [0, 0, 1, 1], [], []>} : vector<8x64xbf16>, vector<64x32xbf16>, vector<8x32xf32> -> vector<8x32xf32>
    %c0_52 = arith.constant 0 : index
    %c0_53 = arith.constant 0 : index
    %143 = vector.load %arg14[%c0_52, %c0_53] : memref<1x32xf32, #tpu.memory_space<vmem>>, vector<1x32xf32>
    %144 = vector.broadcast %143 : vector<1x32xf32> to vector<8x32xf32>
    %145 = arith.addf %142, %144 : vector<8x32xf32>
    %146 = arith.addf %145, %120 : vector<8x32xf32>
    %c0_54 = arith.constant 0 : index
    %c0_55 = arith.constant 0 : index
    %147 = vector.load %arg15[%c0_54, %c0_55] : memref<1x32xf32, #tpu.memory_space<vmem>>, vector<1x32xf32>
    %c0_56 = arith.constant 0 : index
    %c0_57 = arith.constant 0 : index
    %148 = vector.load %arg16[%c0_56, %c0_57] : memref<1x32xf32, #tpu.memory_space<vmem>>, vector<1x32xf32>
    %cst_58 = arith.constant dense<0.000000e+00> : vector<8xf32>
    %149 = vector.multi_reduction <add>, %146, %cst_58 [1] : vector<8x32xf32> to vector<8xf32>
    %150 = vector.shape_cast %149 : vector<8xf32> to vector<8x1xf32>
    %cst_59 = arith.constant 3.200000e+01 : f32
    %151 = vector.broadcast %cst_59 : f32 to vector<8x1xf32>
    %152 = arith.divf %150, %151 : vector<8x1xf32>
    %153 = vector.broadcast %152 : vector<8x1xf32> to vector<8x32xf32>
    %154 = arith.subf %146, %153 : vector<8x32xf32>
    %155 = arith.mulf %154, %154 : vector<8x32xf32>
    %cst_60 = arith.constant dense<0.000000e+00> : vector<8xf32>
    %156 = vector.multi_reduction <add>, %155, %cst_60 [1] : vector<8x32xf32> to vector<8xf32>
    %157 = vector.shape_cast %156 : vector<8xf32> to vector<8x1xf32>
    %cst_61 = arith.constant 3.200000e+01 : f32
    %158 = vector.broadcast %cst_61 : f32 to vector<8x1xf32>
    %159 = arith.divf %157, %158 : vector<8x1xf32>
    %160 = vector.broadcast %152 : vector<8x1xf32> to vector<8x32xf32>
    %161 = arith.subf %146, %160 : vector<8x32xf32>
    %cst_62 = arith.constant 9.99999996E-13 : f32
    %162 = vector.broadcast %cst_62 : f32 to vector<8x1xf32>
    %163 = arith.addf %159, %162 : vector<8x1xf32>
    %164 = math.rsqrt %163 : vector<8x1xf32>
    %165 = vector.broadcast %164 : vector<8x1xf32> to vector<8x32xf32>
    %166 = arith.mulf %161, %165 : vector<8x32xf32>
    %167 = vector.broadcast %147 : vector<1x32xf32> to vector<8x32xf32>
    %168 = arith.mulf %166, %167 : vector<8x32xf32>
    %169 = vector.broadcast %148 : vector<1x32xf32> to vector<8x32xf32>
    %170 = arith.addf %168, %169 : vector<8x32xf32>
    %171 = arith.truncf %170 : vector<8x32xf32> to vector<8x32xbf16>
    %c0_63 = arith.constant 0 : index
    %c0_64 = arith.constant 0 : index
    %c0_65 = arith.constant 0 : index
    %172 = vector.load %arg17[%c0_63, %c0_64, %c0_65] : memref<1x8x32xbf16, #tpu.memory_space<vmem>>, vector<1x8x32xbf16>
    %173 = vector.shape_cast %172 : vector<1x8x32xbf16> to vector<8x32xbf16>
    %174 = vector.shape_cast %171 : vector<8x32xbf16> to vector<1x8x32xbf16>
    tpu.vector_store %arg17[%c0_63, %c0_64, %c0_65], %174 {strides = array<i32>} : memref<1x8x32xbf16, #tpu.memory_space<vmem>>, vector<1x8x32xbf16>,
    return
  }
  func.func @transform_0(%arg0: i32) -> (i32, i32, i32) {
    %c0_i32 = arith.constant 0 : i32
    %c0_i32_0 = arith.constant 0 : i32
    %c0_i32_1 = arith.constant 0 : i32
    return %arg0, %c0_i32, %c0_i32_0 : i32, i32, i32
  }
  func.func @transform_1(%arg0: i32) -> (i32, i32, i32) {
    %c0_i32 = arith.constant 0 : i32
    %c0_i32_0 = arith.constant 0 : i32
    %c0_i32_1 = arith.constant 0 : i32
    return %arg0, %c0_i32, %c0_i32_0 : i32, i32, i32
  }
  func.func @transform_2(%arg0: i32) -> (i32, i32) {
    %c0_i32 = arith.constant 0 : i32
    %c0_i32_0 = arith.constant 0 : i32
    %c0_i32_1 = arith.constant 0 : i32
    return %c0_i32, %c0_i32_0 : i32, i32
  }
  func.func @transform_3(%arg0: i32) -> (i32, i32) {
    %c0_i32 = arith.constant 0 : i32
    %c0_i32_0 = arith.constant 0 : i32
    %c0_i32_1 = arith.constant 0 : i32
    return %c0_i32, %c0_i32_0 : i32, i32
  }
  func.func @transform_4(%arg0: i32) -> (i32, i32) {
    %c0_i32 = arith.constant 0 : i32
    %c0_i32_0 = arith.constant 0 : i32
    %c0_i32_1 = arith.constant 0 : i32
    return %c0_i32, %c0_i32_0 : i32, i32
  }
  func.func @transform_5(%arg0: i32) -> (i32, i32) {
    %c0_i32 = arith.constant 0 : i32
    %c0_i32_0 = arith.constant 0 : i32
    %c0_i32_1 = arith.constant 0 : i32
    return %c0_i32, %c0_i32_0 : i32, i32
  }
  func.func @transform_6(%arg0: i32) -> (i32, i32) {
    %c0_i32 = arith.constant 0 : i32
    %c0_i32_0 = arith.constant 0 : i32
    %c0_i32_1 = arith.constant 0 : i32
    return %c0_i32, %c0_i32_0 : i32, i32
  }
  func.func @transform_7(%arg0: i32) -> (i32, i32) {
    %c0_i32 = arith.constant 0 : i32
    %c0_i32_0 = arith.constant 0 : i32
    %c0_i32_1 = arith.constant 0 : i32
    return %c0_i32, %c0_i32_0 : i32, i32
  }
  func.func @transform_8(%arg0: i32) -> (i32, i32) {
    %c0_i32 = arith.constant 0 : i32
    %c0_i32_0 = arith.constant 0 : i32
    %c0_i32_1 = arith.constant 0 : i32
    return %c0_i32, %c0_i32_0 : i32, i32
  }
  func.func @transform_9(%arg0: i32) -> (i32, i32) {
    %c0_i32 = arith.constant 0 : i32
    %c0_i32_0 = arith.constant 0 : i32
    %c0_i32_1 = arith.constant 0 : i32
    return %c0_i32, %c0_i32_0 : i32, i32
  }
  func.func @transform_10(%arg0: i32) -> (i32, i32) {
    %c0_i32 = arith.constant 0 : i32
    %c0_i32_0 = arith.constant 0 : i32
    %c0_i32_1 = arith.constant 0 : i32
    return %c0_i32, %c0_i32_0 : i32, i32
  }
  func.func @transform_11(%arg0: i32) -> (i32, i32) {
    %c0_i32 = arith.constant 0 : i32
    %c0_i32_0 = arith.constant 0 : i32
    %c0_i32_1 = arith.constant 0 : i32
    return %c0_i32, %c0_i32_0 : i32, i32
  }
  func.func @transform_12(%arg0: i32) -> (i32, i32) {
    %c0_i32 = arith.constant 0 : i32
    %c0_i32_0 = arith.constant 0 : i32
    %c0_i32_1 = arith.constant 0 : i32
    return %c0_i32, %c0_i32_0 : i32, i32
  }
  func.func @transform_13(%arg0: i32) -> (i32, i32) {
    %c0_i32 = arith.constant 0 : i32
    %c0_i32_0 = arith.constant 0 : i32
    %c0_i32_1 = arith.constant 0 : i32
    return %c0_i32, %c0_i32_0 : i32, i32
  }
  func.func @transform_14(%arg0: i32) -> (i32, i32) {
    %c0_i32 = arith.constant 0 : i32
    %c0_i32_0 = arith.constant 0 : i32
    %c0_i32_1 = arith.constant 0 : i32
    return %c0_i32, %c0_i32_0 : i32, i32
  }
  func.func @transform_15(%arg0: i32) -> (i32, i32) {
    %c0_i32 = arith.constant 0 : i32
    %c0_i32_0 = arith.constant 0 : i32
    %c0_i32_1 = arith.constant 0 : i32
    return %c0_i32, %c0_i32_0 : i32, i32
  }
  func.func @transform_16(%arg0: i32) -> (i32, i32, i32) {
    %c0_i32 = arith.constant 0 : i32
    %c0_i32_0 = arith.constant 0 : i32
    %c0_i32_1 = arith.constant 0 : i32
    return %arg0, %c0_i32, %c0_i32_0 : i32, i32, i32
  }
  func.func @transform_17(%arg0: i32) -> (i32, i32, i32, i32) {
    %c0_i32 = arith.constant 0 : i32
    %c0_i32_0 = arith.constant 0 : i32
    %c0_i32_1 = arith.constant 0 : i32
    %c0_i32_2 = arith.constant 0 : i32
    return %arg0, %c0_i32, %c0_i32_0, %c0_i32_1 : i32, i32, i32, i32
  }
}

module attributes {stable_mosaic.version = 11 : i64} {
  func.func @kernel(%arg0: i32, %arg1: memref<1x8x32xbf16, #tpu.memory_space<vmem>>, %arg2: memref<1x1x8xf32, #tpu.memory_space<vmem>>, %arg3: memref<1x32xf32, #tpu.memory_space<vmem>>, %arg4: memref<1x32xf32, #tpu.memory_space<vmem>>, %arg5: memref<32x96xbf16, #tpu.memory_space<vmem>>, %arg6: memref<1x96xf32, #tpu.memory_space<vmem>>, %arg7: memref<32x32xbf16, #tpu.memory_space<vmem>>, %arg8: memref<1x32xf32, #tpu.memory_space<vmem>>, %arg9: memref<1x32xf32, #tpu.memory_space<vmem>>, %arg10: memref<1x32xf32, #tpu.memory_space<vmem>>, %arg11: memref<32x64xbf16, #tpu.memory_space<vmem>>, %arg12: memref<1x64xf32, #tpu.memory_space<vmem>>, %arg13: memref<64x32xbf16, #tpu.memory_space<vmem>>, %arg14: memref<1x32xf32, #tpu.memory_space<vmem>>, %arg15: memref<1x32xf32, #tpu.memory_space<vmem>>, %arg16: memref<1x32xf32, #tpu.memory_space<vmem>>, %arg17: memref<32x32xbf16, #tpu.memory_space<vmem>>, %arg18: memref<1x32xf32, #tpu.memory_space<vmem>>, %arg19: memref<32x2xbf16, #tpu.memory_space<vmem>>, %arg20: memref<1x2xf32, #tpu.memory_space<vmem>>, %arg21: memref<1x8x32xbf16, #tpu.memory_space<vmem>>, %arg22: memref<1x4x8x8xf32, #tpu.memory_space<vmem>>, %arg23: memref<1x1x2xf32, #tpu.memory_space<vmem>>) attributes {dimension_semantics = [#tpu.dimension_semantics<parallel>], iteration_bounds = array<i64: 2>, scalar_prefetch = 0 : i64, scratch_operands = 0 : i64, tpu.core_type = #tpu.core_type<tc>, window_params = [{transform_indices = @transform_0, window_bounds = array<i64: 1, 8, 32>}, {transform_indices = @transform_1, window_bounds = array<i64: 1, 1, 8>}, {pipeline_mode = #tpu.pipeline_mode<synchronous>, transform_indices = @transform_2, window_bounds = array<i64: 1, 32>}, {pipeline_mode = #tpu.pipeline_mode<synchronous>, transform_indices = @transform_3, window_bounds = array<i64: 1, 32>}, {pipeline_mode = #tpu.pipeline_mode<synchronous>, transform_indices = @transform_4, window_bounds = array<i64: 32, 96>}, {pipeline_mode = #tpu.pipeline_mode<synchronous>, transform_indices = @transform_5, window_bounds = array<i64: 1, 96>}, {pipeline_mode = #tpu.pipeline_mode<synchronous>, transform_indices = @transform_6, window_bounds = array<i64: 32, 32>}, {pipeline_mode = #tpu.pipeline_mode<synchronous>, transform_indices = @transform_7, window_bounds = array<i64: 1, 32>}, {pipeline_mode = #tpu.pipeline_mode<synchronous>, transform_indices = @transform_8, window_bounds = array<i64: 1, 32>}, {pipeline_mode = #tpu.pipeline_mode<synchronous>, transform_indices = @transform_9, window_bounds = array<i64: 1, 32>}, {pipeline_mode = #tpu.pipeline_mode<synchronous>, transform_indices = @transform_10, window_bounds = array<i64: 32, 64>}, {pipeline_mode = #tpu.pipeline_mode<synchronous>, transform_indices = @transform_11, window_bounds = array<i64: 1, 64>}, {pipeline_mode = #tpu.pipeline_mode<synchronous>, transform_indices = @transform_12, window_bounds = array<i64: 64, 32>}, {pipeline_mode = #tpu.pipeline_mode<synchronous>, transform_indices = @transform_13, window_bounds = array<i64: 1, 32>}, {pipeline_mode = #tpu.pipeline_mode<synchronous>, transform_indices = @transform_14, window_bounds = array<i64: 1, 32>}, {pipeline_mode = #tpu.pipeline_mode<synchronous>, transform_indices = @transform_15, window_bounds = array<i64: 1, 32>}, {pipeline_mode = #tpu.pipeline_mode<synchronous>, transform_indices = @transform_16, window_bounds = array<i64: 32, 32>}, {pipeline_mode = #tpu.pipeline_mode<synchronous>, transform_indices = @transform_17, window_bounds = array<i64: 1, 32>}, {pipeline_mode = #tpu.pipeline_mode<synchronous>, transform_indices = @transform_18, window_bounds = array<i64: 32, 2>}, {pipeline_mode = #tpu.pipeline_mode<synchronous>, transform_indices = @transform_19, window_bounds = array<i64: 1, 2>}, {transform_indices = @transform_20, window_bounds = array<i64: 1, 8, 32>}, {transform_indices = @transform_21, window_bounds = array<i64: 1, 4, 8, 8>}, {transform_indices = @transform_22, window_bounds = array<i64: 1, 1, 2>}]} {
    %c0 = arith.constant 0 : index
    %c0_0 = arith.constant 0 : index
    %c0_1 = arith.constant 0 : index
    %0 = vector.load %arg1[%c0, %c0_0, %c0_1] : memref<1x8x32xbf16, #tpu.memory_space<vmem>>, vector<1x8x32xbf16>
    %1 = vector.shape_cast %0 : vector<1x8x32xbf16> to vector<8x32xbf16>
    %2 = arith.extf %1 : vector<8x32xbf16> to vector<8x32xf32>
    %3 = arith.truncf %2 : vector<8x32xf32> to vector<8x32xbf16>
    %c0_2 = arith.constant 0 : index
    %c0_3 = arith.constant 0 : index
    %4 = vector.load %arg5[%c0_2, %c0_3] : memref<32x96xbf16, #tpu.memory_space<vmem>>, vector<32x96xbf16>
    %cst = arith.constant dense<0.000000e+00> : vector<8x96xf32>
    %5 = tpu.matmul %3, %4, %cst {dimension_numbers = #tpu.dot_dimension_numbers<[1], [0], [0], [1], [0, 0, 1, 1], [], []>} : vector<8x32xbf16>, vector<32x96xbf16>, vector<8x96xf32> -> vector<8x96xf32>
    %c0_4 = arith.constant 0 : index
    %c0_5 = arith.constant 0 : index
    %6 = vector.load %arg6[%c0_4, %c0_5] : memref<1x96xf32, #tpu.memory_space<vmem>>, vector<1x96xf32>
    %7 = vector.broadcast %6 : vector<1x96xf32> to vector<8x96xf32>
    %8 = arith.addf %5, %7 : vector<8x96xf32>
    %9 = arith.truncf %8 : vector<8x96xf32> to vector<8x96xbf16>
    %10 = vector.extract_strided_slice %9 {offsets = [0, 0], sizes = [8, 8], strides = [1, 1]} : vector<8x96xbf16> to vector<8x8xbf16>
    %11 = vector.extract_strided_slice %9 {offsets = [0, 8], sizes = [8, 8], strides = [1, 1]} : vector<8x96xbf16> to vector<8x8xbf16>
    %12 = vector.extract_strided_slice %9 {offsets = [0, 16], sizes = [8, 8], strides = [1, 1]} : vector<8x96xbf16> to vector<8x8xbf16>
    %13 = vector.extract_strided_slice %9 {offsets = [0, 24], sizes = [8, 8], strides = [1, 1]} : vector<8x96xbf16> to vector<8x8xbf16>
    %14 = vector.shape_cast %10 : vector<8x8xbf16> to vector<1x8x8xbf16>
    %15 = vector.shape_cast %11 : vector<8x8xbf16> to vector<1x8x8xbf16>
    %16 = vector.shape_cast %12 : vector<8x8xbf16> to vector<1x8x8xbf16>
    %17 = vector.shape_cast %13 : vector<8x8xbf16> to vector<1x8x8xbf16>
    %18 = tpu.concatenate %14, %15, %16, %17 in 0 : vector<1x8x8xbf16>, vector<1x8x8xbf16>, vector<1x8x8xbf16>, vector<1x8x8xbf16> -> vector<4x8x8xbf16>
    %19 = vector.extract_strided_slice %9 {offsets = [0, 32], sizes = [8, 8], strides = [1, 1]} : vector<8x96xbf16> to vector<8x8xbf16>
    %20 = vector.extract_strided_slice %9 {offsets = [0, 40], sizes = [8, 8], strides = [1, 1]} : vector<8x96xbf16> to vector<8x8xbf16>
    %21 = vector.extract_strided_slice %9 {offsets = [0, 48], sizes = [8, 8], strides = [1, 1]} : vector<8x96xbf16> to vector<8x8xbf16>
    %22 = vector.extract_strided_slice %9 {offsets = [0, 56], sizes = [8, 8], strides = [1, 1]} : vector<8x96xbf16> to vector<8x8xbf16>
    %23 = vector.shape_cast %19 : vector<8x8xbf16> to vector<1x8x8xbf16>
    %24 = vector.shape_cast %20 : vector<8x8xbf16> to vector<1x8x8xbf16>
    %25 = vector.shape_cast %21 : vector<8x8xbf16> to vector<1x8x8xbf16>
    %26 = vector.shape_cast %22 : vector<8x8xbf16> to vector<1x8x8xbf16>
    %27 = tpu.concatenate %23, %24, %25, %26 in 0 : vector<1x8x8xbf16>, vector<1x8x8xbf16>, vector<1x8x8xbf16>, vector<1x8x8xbf16> -> vector<4x8x8xbf16>
    %28 = vector.extract_strided_slice %9 {offsets = [0, 64], sizes = [8, 8], strides = [1, 1]} : vector<8x96xbf16> to vector<8x8xbf16>
    %29 = vector.extract_strided_slice %9 {offsets = [0, 72], sizes = [8, 8], strides = [1, 1]} : vector<8x96xbf16> to vector<8x8xbf16>
    %30 = vector.extract_strided_slice %9 {offsets = [0, 80], sizes = [8, 8], strides = [1, 1]} : vector<8x96xbf16> to vector<8x8xbf16>
    %31 = vector.extract_strided_slice %9 {offsets = [0, 88], sizes = [8, 8], strides = [1, 1]} : vector<8x96xbf16> to vector<8x8xbf16>
    %32 = vector.shape_cast %28 : vector<8x8xbf16> to vector<1x8x8xbf16>
    %33 = vector.shape_cast %29 : vector<8x8xbf16> to vector<1x8x8xbf16>
    %34 = vector.shape_cast %30 : vector<8x8xbf16> to vector<1x8x8xbf16>
    %35 = vector.shape_cast %31 : vector<8x8xbf16> to vector<1x8x8xbf16>
    %36 = tpu.concatenate %32, %33, %34, %35 in 0 : vector<1x8x8xbf16>, vector<1x8x8xbf16>, vector<1x8x8xbf16>, vector<1x8x8xbf16> -> vector<4x8x8xbf16>
    "tpu.trace_start"() <{level = 10 : i32, message = "hqd,hkd->hqk"}> : () -> ()
    %cst_6 = arith.constant dense<0.000000e+00> : vector<4x8x8xf32>
    %37 = tpu.matmul %18, %27, %cst_6 {dimension_numbers = #tpu.dot_dimension_numbers<[2], [2], [1], [1], [0, 0, 0, 1, 1, 1], [0], [0]>} : vector<4x8x8xbf16>, vector<4x8x8xbf16>, vector<4x8x8xf32> -> vector<4x8x8xf32>
    "tpu.trace_stop"() : () -> ()
    %c0_7 = arith.constant 0 : index
    %c0_8 = arith.constant 0 : index
    %c0_9 = arith.constant 0 : index
    %38 = vector.load %arg2[%c0_7, %c0_8, %c0_9] : memref<1x1x8xf32, #tpu.memory_space<vmem>>, vector<1x1x8xf32>
    %39 = vector.shape_cast %38 : vector<1x1x8xf32> to vector<1x8xf32>
    %40 = vector.shape_cast %39 : vector<1x8xf32> to vector<1x1x8xf32>
    %41 = vector.broadcast %40 : vector<1x1x8xf32> to vector<4x8x8xf32>
    %42 = arith.addf %37, %41 : vector<4x8x8xf32>
    %cst_10 = arith.constant dense<0xFF800000> : vector<4x8xf32>
    %43 = vector.multi_reduction <maximumf>, %42, %cst_10 [2] : vector<4x8x8xf32> to vector<4x8xf32>
    %44 = vector.shape_cast %43 : vector<4x8xf32> to vector<4x8x1xf32>
    %45 = vector.broadcast %44 : vector<4x8x1xf32> to vector<4x8x8xf32>
    %46 = arith.subf %42, %45 : vector<4x8x8xf32>
    %47 = math.exp %46 : vector<4x8x8xf32>
    %cst_11 = arith.constant dense<0.000000e+00> : vector<4x8xf32>
    %48 = vector.multi_reduction <add>, %47, %cst_11 [2] : vector<4x8x8xf32> to vector<4x8xf32>
    %49 = vector.shape_cast %48 : vector<4x8xf32> to vector<4x8x1xf32>
    %50 = tpu.reciprocal %49 {approx = true} : vector<4x8x1xf32> -> vector<4x8x1xf32>
    %51 = vector.broadcast %50 : vector<4x8x1xf32> to vector<4x8x8xf32>
    %52 = arith.mulf %47, %51 : vector<4x8x8xf32>
    %c0_12 = arith.constant 0 : index
    %c0_13 = arith.constant 0 : index
    %c0_14 = arith.constant 0 : index
    %c0_15 = arith.constant 0 : index
    %53 = vector.load %arg22[%c0_12, %c0_13, %c0_14, %c0_15] : memref<1x4x8x8xf32, #tpu.memory_space<vmem>>, vector<1x4x8x8xf32>
    %54 = vector.shape_cast %53 : vector<1x4x8x8xf32> to vector<4x8x8xf32>
    %55 = vector.shape_cast %52 : vector<4x8x8xf32> to vector<1x4x8x8xf32>
    tpu.vector_store %arg22[%c0_12, %c0_13, %c0_14, %c0_15], %55 {strides = array<i32>} : memref<1x4x8x8xf32, #tpu.memory_space<vmem>>, vector<1x4x8x8xf32>,
    %56 = arith.truncf %52 : vector<4x8x8xf32> to vector<4x8x8xbf16>
    "tpu.trace_start"() <{level = 10 : i32, message = "hqk,hkd->hqd"}> : () -> ()
    %cst_16 = arith.constant dense<0.000000e+00> : vector<4x8x8xf32>
    %57 = tpu.matmul %56, %36, %cst_16 {dimension_numbers = #tpu.dot_dimension_numbers<[2], [1], [1], [2], [0, 0, 0, 1, 1, 2], [0], [0]>} : vector<4x8x8xbf16>, vector<4x8x8xbf16>, vector<4x8x8xf32> -> vector<4x8x8xf32>
    "tpu.trace_stop"() : () -> ()
    %58 = vector.extract_strided_slice %57 {offsets = [0, 0, 0], sizes = [1, 8, 8], strides = [1, 1, 1]} : vector<4x8x8xf32> to vector<1x8x8xf32>
    %59 = vector.shape_cast %58 : vector<1x8x8xf32> to vector<8x8xf32>
    %60 = vector.extract_strided_slice %57 {offsets = [1, 0, 0], sizes = [1, 8, 8], strides = [1, 1, 1]} : vector<4x8x8xf32> to vector<1x8x8xf32>
    %61 = vector.shape_cast %60 : vector<1x8x8xf32> to vector<8x8xf32>
    %62 = vector.extract_strided_slice %57 {offsets = [2, 0, 0], sizes = [1, 8, 8], strides = [1, 1, 1]} : vector<4x8x8xf32> to vector<1x8x8xf32>
    %63 = vector.shape_cast %62 : vector<1x8x8xf32> to vector<8x8xf32>
    %64 = vector.extract_strided_slice %57 {offsets = [3, 0, 0], sizes = [1, 8, 8], strides = [1, 1, 1]} : vector<4x8x8xf32> to vector<1x8x8xf32>
    %65 = vector.shape_cast %64 : vector<1x8x8xf32> to vector<8x8xf32>
    %66 = tpu.concatenate %59, %61, %63, %65 in 1 : vector<8x8xf32>, vector<8x8xf32>, vector<8x8xf32>, vector<8x8xf32> -> vector<8x32xf32>
    %c0_17 = arith.constant 0 : index
    %c0_18 = arith.constant 0 : index
    %67 = vector.load %arg7[%c0_17, %c0_18] : memref<32x32xbf16, #tpu.memory_space<vmem>>, vector<32x32xbf16>
    %68 = arith.truncf %66 : vector<8x32xf32> to vector<8x32xbf16>
    %cst_19 = arith.constant dense<0.000000e+00> : vector<8x32xf32>
    %69 = tpu.matmul %68, %67, %cst_19 {dimension_numbers = #tpu.dot_dimension_numbers<[1], [0], [0], [1], [0, 0, 1, 1], [], []>} : vector<8x32xbf16>, vector<32x32xbf16>, vector<8x32xf32> -> vector<8x32xf32>
    %c0_20 = arith.constant 0 : index
    %c0_21 = arith.constant 0 : index
    %70 = vector.load %arg8[%c0_20, %c0_21] : memref<1x32xf32, #tpu.memory_space<vmem>>, vector<1x32xf32>
    %71 = vector.broadcast %70 : vector<1x32xf32> to vector<8x32xf32>
    %72 = arith.addf %69, %71 : vector<8x32xf32>
    %73 = arith.addf %72, %2 : vector<8x32xf32>
    %c0_22 = arith.constant 0 : index
    %c0_23 = arith.constant 0 : index
    %74 = vector.load %arg9[%c0_22, %c0_23] : memref<1x32xf32, #tpu.memory_space<vmem>>, vector<1x32xf32>
    %c0_24 = arith.constant 0 : index
    %c0_25 = arith.constant 0 : index
    %75 = vector.load %arg10[%c0_24, %c0_25] : memref<1x32xf32, #tpu.memory_space<vmem>>, vector<1x32xf32>
    %cst_26 = arith.constant dense<0.000000e+00> : vector<8xf32>
    %76 = vector.multi_reduction <add>, %73, %cst_26 [1] : vector<8x32xf32> to vector<8xf32>
    %77 = vector.shape_cast %76 : vector<8xf32> to vector<8x1xf32>
    %cst_27 = arith.constant 3.200000e+01 : f32
    %78 = vector.broadcast %cst_27 : f32 to vector<8x1xf32>
    %79 = arith.divf %77, %78 : vector<8x1xf32>
    %80 = vector.broadcast %79 : vector<8x1xf32> to vector<8x32xf32>
    %81 = arith.subf %73, %80 : vector<8x32xf32>
    %82 = arith.mulf %81, %81 : vector<8x32xf32>
    %cst_28 = arith.constant dense<0.000000e+00> : vector<8xf32>
    %83 = vector.multi_reduction <add>, %82, %cst_28 [1] : vector<8x32xf32> to vector<8xf32>
    %84 = vector.shape_cast %83 : vector<8xf32> to vector<8x1xf32>
    %cst_29 = arith.constant 3.200000e+01 : f32
    %85 = vector.broadcast %cst_29 : f32 to vector<8x1xf32>
    %86 = arith.divf %84, %85 : vector<8x1xf32>
    %87 = vector.broadcast %79 : vector<8x1xf32> to vector<8x32xf32>
    %88 = arith.subf %73, %87 : vector<8x32xf32>
    %cst_30 = arith.constant 9.99999996E-13 : f32
    %89 = vector.broadcast %cst_30 : f32 to vector<8x1xf32>
    %90 = arith.addf %86, %89 : vector<8x1xf32>
    %91 = math.rsqrt %90 : vector<8x1xf32>
    %92 = vector.broadcast %91 : vector<8x1xf32> to vector<8x32xf32>
    %93 = arith.mulf %88, %92 : vector<8x32xf32>
    %94 = vector.broadcast %74 : vector<1x32xf32> to vector<8x32xf32>
    %95 = arith.mulf %93, %94 : vector<8x32xf32>
    %96 = vector.broadcast %75 : vector<1x32xf32> to vector<8x32xf32>
    %97 = arith.addf %95, %96 : vector<8x32xf32>
    %c0_31 = arith.constant 0 : index
    %c0_32 = arith.constant 0 : index
    %98 = vector.load %arg11[%c0_31, %c0_32] : memref<32x64xbf16, #tpu.memory_space<vmem>>, vector<32x64xbf16>
    %99 = arith.truncf %97 : vector<8x32xf32> to vector<8x32xbf16>
    %cst_33 = arith.constant dense<0.000000e+00> : vector<8x64xf32>
    %100 = tpu.matmul %99, %98, %cst_33 {dimension_numbers = #tpu.dot_dimension_numbers<[1], [0], [0], [1], [0, 0, 1, 1], [], []>} : vector<8x32xbf16>, vector<32x64xbf16>, vector<8x64xf32> -> vector<8x64xf32>
    %c0_34 = arith.constant 0 : index
    %c0_35 = arith.constant 0 : index
    %101 = vector.load %arg12[%c0_34, %c0_35] : memref<1x64xf32, #tpu.memory_space<vmem>>, vector<1x64xf32>
    %102 = vector.broadcast %101 : vector<1x64xf32> to vector<8x64xf32>
    %103 = arith.addf %100, %102 : vector<8x64xf32>
    %cst_36 = arith.constant 5.000000e-01 : f32
    %104 = vector.broadcast %cst_36 : f32 to vector<8x64xf32>
    %105 = arith.mulf %104, %103 : vector<8x64xf32>
    %cst_37 = arith.constant 4.471500e-02 : f32
    %106 = vector.broadcast %cst_37 : f32 to vector<8x64xf32>
    %107 = arith.mulf %106, %103 : vector<8x64xf32>
    %108 = arith.mulf %107, %103 : vector<8x64xf32>
    %109 = arith.mulf %108, %103 : vector<8x64xf32>
    %110 = arith.addf %103, %109 : vector<8x64xf32>
    %cst_38 = arith.constant 0.797884583 : f32
    %111 = vector.broadcast %cst_38 : f32 to vector<8x64xf32>
    %112 = arith.mulf %111, %110 : vector<8x64xf32>
    %113 = math.tanh %112 : vector<8x64xf32>
    %cst_39 = arith.constant 1.000000e+00 : f32
    %114 = vector.broadcast %cst_39 : f32 to vector<8x64xf32>
    %115 = arith.addf %114, %113 : vector<8x64xf32>
    %116 = arith.mulf %105, %115 : vector<8x64xf32>
    %c0_40 = arith.constant 0 : index
    %c0_41 = arith.constant 0 : index
    %117 = vector.load %arg13[%c0_40, %c0_41] : memref<64x32xbf16, #tpu.memory_space<vmem>>, vector<64x32xbf16>
    %118 = arith.truncf %116 : vector<8x64xf32> to vector<8x64xbf16>
    %cst_42 = arith.constant dense<0.000000e+00> : vector<8x32xf32>
    %119 = tpu.matmul %118, %117, %cst_42 {dimension_numbers = #tpu.dot_dimension_numbers<[1], [0], [0], [1], [0, 0, 1, 1], [], []>} : vector<8x64xbf16>, vector<64x32xbf16>, vector<8x32xf32> -> vector<8x32xf32>
    %c0_43 = arith.constant 0 : index
    %c0_44 = arith.constant 0 : index
    %120 = vector.load %arg14[%c0_43, %c0_44] : memref<1x32xf32, #tpu.memory_space<vmem>>, vector<1x32xf32>
    %121 = vector.broadcast %120 : vector<1x32xf32> to vector<8x32xf32>
    %122 = arith.addf %119, %121 : vector<8x32xf32>
    %123 = arith.addf %122, %97 : vector<8x32xf32>
    %c0_45 = arith.constant 0 : index
    %c0_46 = arith.constant 0 : index
    %124 = vector.load %arg15[%c0_45, %c0_46] : memref<1x32xf32, #tpu.memory_space<vmem>>, vector<1x32xf32>
    %c0_47 = arith.constant 0 : index
    %c0_48 = arith.constant 0 : index
    %125 = vector.load %arg16[%c0_47, %c0_48] : memref<1x32xf32, #tpu.memory_space<vmem>>, vector<1x32xf32>
    %cst_49 = arith.constant dense<0.000000e+00> : vector<8xf32>
    %126 = vector.multi_reduction <add>, %123, %cst_49 [1] : vector<8x32xf32> to vector<8xf32>
    %127 = vector.shape_cast %126 : vector<8xf32> to vector<8x1xf32>
    %cst_50 = arith.constant 3.200000e+01 : f32
    %128 = vector.broadcast %cst_50 : f32 to vector<8x1xf32>
    %129 = arith.divf %127, %128 : vector<8x1xf32>
    %130 = vector.broadcast %129 : vector<8x1xf32> to vector<8x32xf32>
    %131 = arith.subf %123, %130 : vector<8x32xf32>
    %132 = arith.mulf %131, %131 : vector<8x32xf32>
    %cst_51 = arith.constant dense<0.000000e+00> : vector<8xf32>
    %133 = vector.multi_reduction <add>, %132, %cst_51 [1] : vector<8x32xf32> to vector<8xf32>
    %134 = vector.shape_cast %133 : vector<8xf32> to vector<8x1xf32>
    %cst_52 = arith.constant 3.200000e+01 : f32
    %135 = vector.broadcast %cst_52 : f32 to vector<8x1xf32>
    %136 = arith.divf %134, %135 : vector<8x1xf32>
    %137 = vector.broadcast %129 : vector<8x1xf32> to vector<8x32xf32>
    %138 = arith.subf %123, %137 : vector<8x32xf32>
    %cst_53 = arith.constant 9.99999996E-13 : f32
    %139 = vector.broadcast %cst_53 : f32 to vector<8x1xf32>
    %140 = arith.addf %136, %139 : vector<8x1xf32>
    %141 = math.rsqrt %140 : vector<8x1xf32>
    %142 = vector.broadcast %141 : vector<8x1xf32> to vector<8x32xf32>
    %143 = arith.mulf %138, %142 : vector<8x32xf32>
    %144 = vector.broadcast %124 : vector<1x32xf32> to vector<8x32xf32>
    %145 = arith.mulf %143, %144 : vector<8x32xf32>
    %146 = vector.broadcast %125 : vector<1x32xf32> to vector<8x32xf32>
    %147 = arith.addf %145, %146 : vector<8x32xf32>
    %148 = arith.truncf %147 : vector<8x32xf32> to vector<8x32xbf16>
    %c0_54 = arith.constant 0 : index
    %c0_55 = arith.constant 0 : index
    %c0_56 = arith.constant 0 : index
    %149 = vector.load %arg21[%c0_54, %c0_55, %c0_56] : memref<1x8x32xbf16, #tpu.memory_space<vmem>>, vector<1x8x32xbf16>
    %150 = vector.shape_cast %149 : vector<1x8x32xbf16> to vector<8x32xbf16>
    %151 = vector.shape_cast %148 : vector<8x32xbf16> to vector<1x8x32xbf16>
    tpu.vector_store %arg21[%c0_54, %c0_55, %c0_56], %151 {strides = array<i32>} : memref<1x8x32xbf16, #tpu.memory_space<vmem>>, vector<1x8x32xbf16>,
    %152 = vector.extract_strided_slice %147 {offsets = [0, 0], sizes = [1, 32], strides = [1, 1]} : vector<8x32xf32> to vector<1x32xf32>
    %c0_57 = arith.constant 0 : index
    %c0_58 = arith.constant 0 : index
    %153 = vector.load %arg17[%c0_57, %c0_58] : memref<32x32xbf16, #tpu.memory_space<vmem>>, vector<32x32xbf16>
    %154 = arith.truncf %152 : vector<1x32xf32> to vector<1x32xbf16>
    %cst_59 = arith.constant dense<0.000000e+00> : vector<1x32xf32>
    %155 = tpu.matmul %154, %153, %cst_59 {dimension_numbers = #tpu.dot_dimension_numbers<[1], [0], [0], [1], [0, 0, 1, 1], [], []>} : vector<1x32xbf16>, vector<32x32xbf16>, vector<1x32xf32> -> vector<1x32xf32>
    %c0_60 = arith.constant 0 : index
    %c0_61 = arith.constant 0 : index
    %156 = vector.load %arg18[%c0_60, %c0_61] : memref<1x32xf32, #tpu.memory_space<vmem>>, vector<1x32xf32>
    %157 = arith.addf %155, %156 : vector<1x32xf32>
    %158 = math.tanh %157 : vector<1x32xf32>
    %c0_62 = arith.constant 0 : index
    %c0_63 = arith.constant 0 : index
    %159 = vector.load %arg19[%c0_62, %c0_63] : memref<32x2xbf16, #tpu.memory_space<vmem>>, vector<32x2xbf16>
    %160 = arith.truncf %158 : vector<1x32xf32> to vector<1x32xbf16>
    %cst_64 = arith.constant dense<0.000000e+00> : vector<1x2xf32>
    %161 = tpu.matmul %160, %159, %cst_64 {dimension_numbers = #tpu.dot_dimension_numbers<[1], [0], [0], [1], [0, 0, 1, 1], [], []>} : vector<1x32xbf16>, vector<32x2xbf16>, vector<1x2xf32> -> vector<1x2xf32>
    %c0_65 = arith.constant 0 : index
    %c0_66 = arith.constant 0 : index
    %162 = vector.load %arg20[%c0_65, %c0_66] : memref<1x2xf32, #tpu.memory_space<vmem>>, vector<1x2xf32>
    %163 = arith.addf %161, %162 : vector<1x2xf32>
    %c0_67 = arith.constant 0 : index
    %c0_68 = arith.constant 0 : index
    %c0_69 = arith.constant 0 : index
    %164 = vector.load %arg23[%c0_67, %c0_68, %c0_69] : memref<1x1x2xf32, #tpu.memory_space<vmem>>, vector<1x1x2xf32>
    %165 = vector.shape_cast %164 : vector<1x1x2xf32> to vector<1x2xf32>
    %166 = vector.shape_cast %163 : vector<1x2xf32> to vector<1x1x2xf32>
    tpu.vector_store %arg23[%c0_67, %c0_68, %c0_69], %166 {strides = array<i32>} : memref<1x1x2xf32, #tpu.memory_space<vmem>>, vector<1x1x2xf32>,
    return
  }
  func.func @transform_0(%arg0: i32) -> (i32, i32, i32) {
    %c0_i32 = arith.constant 0 : i32
    %c0_i32_0 = arith.constant 0 : i32
    %c0_i32_1 = arith.constant 0 : i32
    return %arg0, %c0_i32, %c0_i32_0 : i32, i32, i32
  }
  func.func @transform_1(%arg0: i32) -> (i32, i32, i32) {
    %c0_i32 = arith.constant 0 : i32
    %c0_i32_0 = arith.constant 0 : i32
    %c0_i32_1 = arith.constant 0 : i32
    return %arg0, %c0_i32, %c0_i32_0 : i32, i32, i32
  }
  func.func @transform_2(%arg0: i32) -> (i32, i32) {
    %c0_i32 = arith.constant 0 : i32
    %c0_i32_0 = arith.constant 0 : i32
    %c0_i32_1 = arith.constant 0 : i32
    return %c0_i32, %c0_i32_0 : i32, i32
  }
  func.func @transform_3(%arg0: i32) -> (i32, i32) {
    %c0_i32 = arith.constant 0 : i32
    %c0_i32_0 = arith.constant 0 : i32
    %c0_i32_1 = arith.constant 0 : i32
    return %c0_i32, %c0_i32_0 : i32, i32
  }
  func.func @transform_4(%arg0: i32) -> (i32, i32) {
    %c0_i32 = arith.constant 0 : i32
    %c0_i32_0 = arith.constant 0 : i32
    %c0_i32_1 = arith.constant 0 : i32
    return %c0_i32, %c0_i32_0 : i32, i32
  }
  func.func @transform_5(%arg0: i32) -> (i32, i32) {
    %c0_i32 = arith.constant 0 : i32
    %c0_i32_0 = arith.constant 0 : i32
    %c0_i32_1 = arith.constant 0 : i32
    return %c0_i32, %c0_i32_0 : i32, i32
  }
  func.func @transform_6(%arg0: i32) -> (i32, i32) {
    %c0_i32 = arith.constant 0 : i32
    %c0_i32_0 = arith.constant 0 : i32
    %c0_i32_1 = arith.constant 0 : i32
    return %c0_i32, %c0_i32_0 : i32, i32
  }
  func.func @transform_7(%arg0: i32) -> (i32, i32) {
    %c0_i32 = arith.constant 0 : i32
    %c0_i32_0 = arith.constant 0 : i32
    %c0_i32_1 = arith.constant 0 : i32
    return %c0_i32, %c0_i32_0 : i32, i32
  }
  func.func @transform_8(%arg0: i32) -> (i32, i32) {
    %c0_i32 = arith.constant 0 : i32
    %c0_i32_0 = arith.constant 0 : i32
    %c0_i32_1 = arith.constant 0 : i32
    return %c0_i32, %c0_i32_0 : i32, i32
  }
  func.func @transform_9(%arg0: i32) -> (i32, i32) {
    %c0_i32 = arith.constant 0 : i32
    %c0_i32_0 = arith.constant 0 : i32
    %c0_i32_1 = arith.constant 0 : i32
    return %c0_i32, %c0_i32_0 : i32, i32
  }
  func.func @transform_10(%arg0: i32) -> (i32, i32) {
    %c0_i32 = arith.constant 0 : i32
    %c0_i32_0 = arith.constant 0 : i32
    %c0_i32_1 = arith.constant 0 : i32
    return %c0_i32, %c0_i32_0 : i32, i32
  }
  func.func @transform_11(%arg0: i32) -> (i32, i32) {
    %c0_i32 = arith.constant 0 : i32
    %c0_i32_0 = arith.constant 0 : i32
    %c0_i32_1 = arith.constant 0 : i32
    return %c0_i32, %c0_i32_0 : i32, i32
  }
  func.func @transform_12(%arg0: i32) -> (i32, i32) {
    %c0_i32 = arith.constant 0 : i32
    %c0_i32_0 = arith.constant 0 : i32
    %c0_i32_1 = arith.constant 0 : i32
    return %c0_i32, %c0_i32_0 : i32, i32
  }
  func.func @transform_13(%arg0: i32) -> (i32, i32) {
    %c0_i32 = arith.constant 0 : i32
    %c0_i32_0 = arith.constant 0 : i32
    %c0_i32_1 = arith.constant 0 : i32
    return %c0_i32, %c0_i32_0 : i32, i32
  }
  func.func @transform_14(%arg0: i32) -> (i32, i32) {
    %c0_i32 = arith.constant 0 : i32
    %c0_i32_0 = arith.constant 0 : i32
    %c0_i32_1 = arith.constant 0 : i32
    return %c0_i32, %c0_i32_0 : i32, i32
  }
  func.func @transform_15(%arg0: i32) -> (i32, i32) {
    %c0_i32 = arith.constant 0 : i32
    %c0_i32_0 = arith.constant 0 : i32
    %c0_i32_1 = arith.constant 0 : i32
    return %c0_i32, %c0_i32_0 : i32, i32
  }
  func.func @transform_16(%arg0: i32) -> (i32, i32) {
    %c0_i32 = arith.constant 0 : i32
    %c0_i32_0 = arith.constant 0 : i32
    %c0_i32_1 = arith.constant 0 : i32
    return %c0_i32, %c0_i32_0 : i32, i32
  }
  func.func @transform_17(%arg0: i32) -> (i32, i32) {
    %c0_i32 = arith.constant 0 : i32
    %c0_i32_0 = arith.constant 0 : i32
    %c0_i32_1 = arith.constant 0 : i32
    return %c0_i32, %c0_i32_0 : i32, i32
  }
  func.func @transform_18(%arg0: i32) -> (i32, i32) {
    %c0_i32 = arith.constant 0 : i32
    %c0_i32_0 = arith.constant 0 : i32
    %c0_i32_1 = arith.constant 0 : i32
    return %c0_i32, %c0_i32_0 : i32, i32
  }
  func.func @transform_19(%arg0: i32) -> (i32, i32) {
    %c0_i32 = arith.constant 0 : i32
    %c0_i32_0 = arith.constant 0 : i32
    %c0_i32_1 = arith.constant 0 : i32
    return %c0_i32, %c0_i32_0 : i32, i32
  }
  func.func @transform_20(%arg0: i32) -> (i32, i32, i32) {
    %c0_i32 = arith.constant 0 : i32
    %c0_i32_0 = arith.constant 0 : i32
    %c0_i32_1 = arith.constant 0 : i32
    return %arg0, %c0_i32, %c0_i32_0 : i32, i32, i32
  }
  func.func @transform_21(%arg0: i32) -> (i32, i32, i32, i32) {
    %c0_i32 = arith.constant 0 : i32
    %c0_i32_0 = arith.constant 0 : i32
    %c0_i32_1 = arith.constant 0 : i32
    %c0_i32_2 = arith.constant 0 : i32
    return %arg0, %c0_i32, %c0_i32_0, %c0_i32_1 : i32, i32, i32, i32
  }
  func.func @transform_22(%arg0: i32) -> (i32, i32, i32) {
    %c0_i32 = arith.constant 0 : i32
    %c0_i32_0 = arith.constant 0 : i32
    %c0_i32_1 = arith.constant 0 : i32
    return %arg0, %c0_i32, %c0_i32_0 : i32, i32, i32
  }
}

</mosaic_0001>

<llo_original>
// kernel: _lambda_.2
$region0: #{_lambda_.2}
  #allocation0 [shape = 'u32[]', space=smem, size = 0x4, offset = 0x4, fixed_abs, tag = 'smem constant byte address 0x4 - core index']
  #allocation1 [shape = 'u32[144,128]{1,0:T(1,128)}', space=vmem, size = 0x12000, scoped, tag = 'internal scratch']
  %s0 = inlined_call_operand.vmem [shape: f32[2,8,32], index: 0, kind: input, shape index: {}]
  %s1 = inlined_call_operand.vmem [shape: f32[2,1,8], index: 1, kind: input, shape index: {}]
  %s2 = inlined_call_operand.vmem [shape: f32[1,32], index: 2, kind: input, shape index: {}]
  %s3 = inlined_call_operand.vmem [shape: f32[1,32], index: 3, kind: input, shape index: {}]
  %s4 = inlined_call_operand.vmem [shape: bf16[32,96], index: 4, kind: input, shape index: {}]
  %s5 = inlined_call_operand.vmem [shape: f32[1,96], index: 5, kind: input, shape index: {}]
  %s6 = inlined_call_operand.vmem [shape: bf16[32,32], index: 6, kind: input, shape index: {}]
  %s7 = inlined_call_operand.vmem [shape: f32[1,32], index: 7, kind: input, shape index: {}]
  %s8 = inlined_call_operand.vmem [shape: f32[1,32], index: 8, kind: input, shape index: {}]
  %s9 = inlined_call_operand.vmem [shape: f32[1,32], index: 9, kind: input, shape index: {}]
  %s10 = inlined_call_operand.vmem [shape: bf16[32,64], index: 10, kind: input, shape index: {}]
  %s11 = inlined_call_operand.vmem [shape: f32[1,64], index: 11, kind: input, shape index: {}]
  %s12 = inlined_call_operand.vmem [shape: bf16[64,32], index: 12, kind: input, shape index: {}]
  %s13 = inlined_call_operand.vmem [shape: f32[1,32], index: 13, kind: input, shape index: {}]
  %s14 = inlined_call_operand.vmem [shape: f32[1,32], index: 14, kind: input, shape index: {}]
  %s15 = inlined_call_operand.vmem [shape: f32[1,32], index: 15, kind: input, shape index: {}]
  %s16 = inlined_call_operand.vmem [shape: bf16[2,8,32], index: 16, kind: output, shape index: {0}]
  %s17 = inlined_call_operand.hbm [shape: f32[2,4,8,8], index: 17, kind: output, shape index: {1}]
  %18 = xla_tuple %s16, %s17
  %s19 = sld [smem:[#allocation0]]
  $region105: #{_lambda_.2} parent=0
    _
  %s21 = ssub.s32 1, %s19
  %s22 = scalar_select 0, %s21, %s19
  $region1: #{_lambda_.2} parent=0
    #allocation2 [shape = 'u8[32768]{0}', space=vmem, size = 0x8000, scoped, tag = 'output window, operand 1']
    #allocation3 [shape = 's32[2]{0}', space=sflag, size = 0x8, scoped, tag = 'scoped memory for _lambda_.2']
    %23 = vsyncpa [#allocation3], 0
    %s24 = scalar_lea.sflag [#allocation3], 1
    %25 = vsyncpa %s24, 0
    loop: start=0, step=1, limit=4
    $region2: #{_lambda_.2} parent=1 // loop_pre_header
      _
    $region3: #{_lambda_.2} parent=1 // loop_header
      %s27 = sphi 0, %s31
      %p28 = scmp.ge.s32.totalorder %s27, 4
      %s37 = sphi 0, %s39
      %s40 = sphi 0, %s37
      %s41 = sphi 0, %s40
      %s57 = sphi 0, %s41
      %s63 = sphi 0, %s65
      %s66 = sphi 0, %s63
      %s67 = sphi 0, %s66
      %s83 = sphi 0, %s67
      %s87 = sphi 0, %s87
      %s89 = sphi 0, %s87
      %s90 = sphi 0, %s89
      %s104 = sphi 0, %s90
      %s108 = sphi 0, %s108
      %s110 = sphi 0, %s108
      %s111 = sphi 0, %s110
      %s125 = sphi 0, %s111
      %s129 = sphi 0, %s129
      %s131 = sphi 0, %s129
      %s132 = sphi 0, %s131
      %s146 = sphi 0, %s132
      %s150 = sphi 0, %s150
      %s152 = sphi 0, %s150
      %s153 = sphi 0, %s152
      %s167 = sphi 0, %s153
      %s171 = sphi 0, %s171
      %s173 = sphi 0, %s171
      %s174 = sphi 0, %s173
      %s188 = sphi 0, %s174
      %s192 = sphi 0, %s192
      %s194 = sphi 0, %s192
      %s195 = sphi 0, %s194
      %s209 = sphi 0, %s195
      %s213 = sphi 0, %s213
      %s215 = sphi 0, %s213
      %s216 = sphi 0, %s215
      %s230 = sphi 0, %s216
      %s234 = sphi 0, %s234
      %s236 = sphi 0, %s234
      %s237 = sphi 0, %s236
      %s251 = sphi 0, %s237
      %s255 = sphi 0, %s255
      %s257 = sphi 0, %s255
      %s258 = sphi 0, %s257
      %s272 = sphi 0, %s258
      %s276 = sphi 0, %s276
      %s278 = sphi 0, %s276
      %s279 = sphi 0, %s278
      %s293 = sphi 0, %s279
      %s297 = sphi 0, %s297
      %s299 = sphi 0, %s297
      %s300 = sphi 0, %s299
      %s314 = sphi 0, %s300
      %s318 = sphi 0, %s318
      %s320 = sphi 0, %s318
      %s321 = sphi 0, %s320
      %s335 = sphi 0, %s321
      %s339 = sphi 0, %s339
      %s341 = sphi 0, %s339
      %s342 = sphi 0, %s341
      %s356 = sphi 0, %s342
      %s360 = sphi 0, %s360
      %s362 = sphi 0, %s360
      %s363 = sphi 0, %s362
      %s377 = sphi 0, %s363
      %s383 = sphi 0, %s385
      %s386 = sphi 0, %s383
      %s387 = sphi 0, %s386
      %s403 = sphi 0, %s387
      %s409 = sphi 0, %s411
      %s412 = sphi 0, %s409
      %s413 = sphi 0, %s412
      %s429 = sphi 0, %s413
    $region4: #{_lambda_.2} parent=1 // loop_header_branch
      %30 = sbr.rel (%p28) target = $region8
    $region5: #{_lambda_.2} parent=1 // loop_body
      %s32 = ssub.s32 %s27, 1
      %s33 = ssub.s32 %s27, 2
      %s34 = sadd.s32 %s27, 1
      %s35 = ssub.s32 %s27, %s34
      %p36 = scmp.eq.s32.totalorder %s35, 0
      %s38 = sadd.s32 %s37, 1
      %s39 = scalar_select %p36, %s37, %s38
      %p42 = pneg %p36
      %p43 = scmp.eq.s32.totalorder %s27, 1
      %p44 = por %p42, %p43
      %p45 = scmp.ne.s32.totalorder %s37, %s40
      %p46 = scmp.eq.s32.totalorder %s27, 0
      %p47 = por %p45, %p46
      %p48 = scmp.ne.s32.totalorder %s37, %s40
      %p49 = scmp.eq.s32.totalorder %s32, 1
      %p50 = por %p48, %p49
      %p51 = scmp.ne.s32.totalorder %s40, %s41
      %p52 = scmp.eq.s32.totalorder %s32, 0
      %p53 = por %p51, %p52
      %p54 = scmp.ne.s32.totalorder %s40, %s41
      %p55 = scmp.eq.s32.totalorder %s33, 1
      %p56 = por %p54, %p55
      %p58 = scmp.ne.s32.totalorder %s41, %s57
      %p59 = scmp.eq.s32.totalorder %s33, 0
      %p60 = por %p58, %p59
      %s61 = ssub.s32 %s27, %s34
      %p62 = scmp.eq.s32.totalorder %s61, 0
      %s64 = sadd.s32 %s63, 1
      %s65 = scalar_select %p62, %s63, %s64
      %p68 = pneg %p62
      %p69 = scmp.eq.s32.totalorder %s27, 1
      %p70 = por %p68, %p69
      %p71 = scmp.ne.s32.totalorder %s63, %s66
      %p72 = scmp.eq.s32.totalorder %s27, 0
      %p73 = por %p71, %p72
      %p74 = scmp.ne.s32.totalorder %s63, %s66
      %p75 = scmp.eq.s32.totalorder %s32, 1
      %p76 = por %p74, %p75
      %p77 = scmp.ne.s32.totalorder %s66, %s67
      %p78 = scmp.eq.s32.totalorder %s32, 0
      %p79 = por %p77, %p78
      %p80 = scmp.ne.s32.totalorder %s66, %s67
      %p81 = scmp.eq.s32.totalorder %s33, 1
      %p82 = por %p80, %p81
      %p84 = scmp.ne.s32.totalorder %s67, %s83
      %p85 = scmp.eq.s32.totalorder %s33, 0
      %p86 = por %p84, %p85
      %s88 = sadd.s32 %s87, 1
      %p91 = scmp.eq.s32.totalorder %s27, 1
      %p92 = scmp.ne.s32.totalorder %s87, %s89
      %p93 = scmp.eq.s32.totalorder %s27, 0
      %p94 = por %p92, %p93
      %p95 = scmp.ne.s32.totalorder %s87, %s89
      %p96 = scmp.eq.s32.totalorder %s32, 1
      %p97 = por %p95, %p96
      %p98 = scmp.ne.s32.totalorder %s89, %s90
      %p99 = scmp.eq.s32.totalorder %s32, 0
      %p100 = por %p98, %p99
      %p101 = scmp.ne.s32.totalorder %s89, %s90
      %p102 = scmp.eq.s32.totalorder %s33, 1
      %p103 = por %p101, %p102
      %p105 = scmp.ne.s32.totalorder %s90, %s104
      %p106 = scmp.eq.s32.totalorder %s33, 0
      %p107 = por %p105, %p106
      %s109 = sadd.s32 %s108, 1
      %p112 = scmp.eq.s32.totalorder %s27, 1
      %p113 = scmp.ne.s32.totalorder %s108, %s110
      %p114 = scmp.eq.s32.totalorder %s27, 0
      %p115 = por %p113, %p114
      %p116 = scmp.ne.s32.totalorder %s108, %s110
      %p117 = scmp.eq.s32.totalorder %s32, 1
      %p118 = por %p116, %p117
      %p119 = scmp.ne.s32.totalorder %s110, %s111
      %p120 = scmp.eq.s32.totalorder %s32, 0
      %p121 = por %p119, %p120
      %p122 = scmp.ne.s32.totalorder %s110, %s111
      %p123 = scmp.eq.s32.totalorder %s33, 1
      %p124 = por %p122, %p123
      %p126 = scmp.ne.s32.totalorder %s111, %s125
      %p127 = scmp.eq.s32.totalorder %s33, 0
      %p128 = por %p126, %p127
      %s130 = sadd.s32 %s129, 1
      %p133 = scmp.eq.s32.totalorder %s27, 1
      %p134 = scmp.ne.s32.totalorder %s129, %s131
      %p135 = scmp.eq.s32.totalorder %s27, 0
      %p136 = por %p134, %p135
      %p137 = scmp.ne.s32.totalorder %s129, %s131
      %p138 = scmp.eq.s32.totalorder %s32, 1
      %p139 = por %p137, %p138
      %p140 = scmp.ne.s32.totalorder %s131, %s132
      %p141 = scmp.eq.s32.totalorder %s32, 0
      %p142 = por %p140, %p141
      %p143 = scmp.ne.s32.totalorder %s131, %s132
      %p144 = scmp.eq.s32.totalorder %s33, 1
      %p145 = por %p143, %p144
      %p147 = scmp.ne.s32.totalorder %s132, %s146
      %p148 = scmp.eq.s32.totalorder %s33, 0
      %p149 = por %p147, %p148
      %s151 = sadd.s32 %s150, 1
      %p154 = scmp.eq.s32.totalorder %s27, 1
      %p155 = scmp.ne.s32.totalorder %s150, %s152
      %p156 = scmp.eq.s32.totalorder %s27, 0
      %p157 = por %p155, %p156
      %p158 = scmp.ne.s32.totalorder %s150, %s152
      %p159 = scmp.eq.s32.totalorder %s32, 1
      %p160 = por %p158, %p159
      %p161 = scmp.ne.s32.totalorder %s152, %s153
      %p162 = scmp.eq.s32.totalorder %s32, 0
      %p163 = por %p161, %p162
      %p164 = scmp.ne.s32.totalorder %s152, %s153
      %p165 = scmp.eq.s32.totalorder %s33, 1
      %p166 = por %p164, %p165
      %p168 = scmp.ne.s32.totalorder %s153, %s167
      %p169 = scmp.eq.s32.totalorder %s33, 0
      %p170 = por %p168, %p169
      %s172 = sadd.s32 %s171, 1
      %p175 = scmp.eq.s32.totalorder %s27, 1
      %p176 = scmp.ne.s32.totalorder %s171, %s173
      %p177 = scmp.eq.s32.totalorder %s27, 0
      %p178 = por %p176, %p177
      %p179 = scmp.ne.s32.totalorder %s171, %s173
      %p180 = scmp.eq.s32.totalorder %s32, 1
      %p181 = por %p179, %p180
      %p182 = scmp.ne.s32.totalorder %s173, %s174
      %p183 = scmp.eq.s32.totalorder %s32, 0
      %p184 = por %p182, %p183
      %p185 = scmp.ne.s32.totalorder %s173, %s174
      %p186 = scmp.eq.s32.totalorder %s33, 1
      %p187 = por %p185, %p186
      %p189 = scmp.ne.s32.totalorder %s174, %s188
      %p190 = scmp.eq.s32.totalorder %s33, 0
      %p191 = por %p189, %p190
      %s193 = sadd.s32 %s192, 1
      %p196 = scmp.eq.s32.totalorder %s27, 1
      %p197 = scmp.ne.s32.totalorder %s192, %s194
      %p198 = scmp.eq.s32.totalorder %s27, 0
      %p199 = por %p197, %p198
      %p200 = scmp.ne.s32.totalorder %s192, %s194
      %p201 = scmp.eq.s32.totalorder %s32, 1
      %p202 = por %p200, %p201
      %p203 = scmp.ne.s32.totalorder %s194, %s195
      %p204 = scmp.eq.s32.totalorder %s32, 0
      %p205 = por %p203, %p204
      %p206 = scmp.ne.s32.totalorder %s194, %s195
      %p207 = scmp.eq.s32.totalorder %s33, 1
      %p208 = por %p206, %p207
      %p210 = scmp.ne.s32.totalorder %s195, %s209
      %p211 = scmp.eq.s32.totalorder %s33, 0
      %p212 = por %p210, %p211
      %s214 = sadd.s32 %s213, 1
      %p217 = scmp.eq.s32.totalorder %s27, 1
      %p218 = scmp.ne.s32.totalorder %s213, %s215
      %p219 = scmp.eq.s32.totalorder %s27, 0
      %p220 = por %p218, %p219
      %p221 = scmp.ne.s32.totalorder %s213, %s215
      %p222 = scmp.eq.s32.totalorder %s32, 1
      %p223 = por %p221, %p222
      %p224 = scmp.ne.s32.totalorder %s215, %s216
      %p225 = scmp.eq.s32.totalorder %s32, 0
      %p226 = por %p224, %p225
      %p227 = scmp.ne.s32.totalorder %s215, %s216
      %p228 = scmp.eq.s32.totalorder %s33, 1
      %p229 = por %p227, %p228
      %p231 = scmp.ne.s32.totalorder %s216, %s230
      %p232 = scmp.eq.s32.totalorder %s33, 0
      %p233 = por %p231, %p232
      %s235 = sadd.s32 %s234, 1
      %p238 = scmp.eq.s32.totalorder %s27, 1
      %p239 = scmp.ne.s32.totalorder %s234, %s236
      %p240 = scmp.eq.s32.totalorder %s27, 0
      %p241 = por %p239, %p240
      %p242 = scmp.ne.s32.totalorder %s234, %s236
      %p243 = scmp.eq.s32.totalorder %s32, 1
      %p244 = por %p242, %p243
      %p245 = scmp.ne.s32.totalorder %s236, %s237
      %p246 = scmp.eq.s32.totalorder %s32, 0
      %p247 = por %p245, %p246
      %p248 = scmp.ne.s32.totalorder %s236, %s237
      %p249 = scmp.eq.s32.totalorder %s33, 1
      %p250 = por %p248, %p249
      %p252 = scmp.ne.s32.totalorder %s237, %s251
      %p253 = scmp.eq.s32.totalorder %s33, 0
      %p254 = por %p252, %p253
      %s256 = sadd.s32 %s255, 1
      %p259 = scmp.eq.s32.totalorder %s27, 1
      %p260 = scmp.ne.s32.totalorder %s255, %s257
      %p261 = scmp.eq.s32.totalorder %s27, 0
      %p262 = por %p260, %p261
      %p263 = scmp.ne.s32.totalorder %s255, %s257
      %p264 = scmp.eq.s32.totalorder %s32, 1
      %p265 = por %p263, %p264
      %p266 = scmp.ne.s32.totalorder %s257, %s258
      %p267 = scmp.eq.s32.totalorder %s32, 0
      %p268 = por %p266, %p267
      %p269 = scmp.ne.s32.totalorder %s257, %s258
      %p270 = scmp.eq.s32.totalorder %s33, 1
      %p271 = por %p269, %p270
      %p273 = scmp.ne.s32.totalorder %s258, %s272
      %p274 = scmp.eq.s32.totalorder %s33, 0
      %p275 = por %p273, %p274
      %s277 = sadd.s32 %s276, 1
      %p280 = scmp.eq.s32.totalorder %s27, 1
      %p281 = scmp.ne.s32.totalorder %s276, %s278
      %p282 = scmp.eq.s32.totalorder %s27, 0
      %p283 = por %p281, %p282
      %p284 = scmp.ne.s32.totalorder %s276, %s278
      %p285 = scmp.eq.s32.totalorder %s32, 1
      %p286 = por %p284, %p285
      %p287 = scmp.ne.s32.totalorder %s278, %s279
      %p288 = scmp.eq.s32.totalorder %s32, 0
      %p289 = por %p287, %p288
      %p290 = scmp.ne.s32.totalorder %s278, %s279
      %p291 = scmp.eq.s32.totalorder %s33, 1
      %p292 = por %p290, %p291
      %p294 = scmp.ne.s32.totalorder %s279, %s293
      %p295 = scmp.eq.s32.totalorder %s33, 0
      %p296 = por %p294, %p295
      %s298 = sadd.s32 %s297, 1
      %p301 = scmp.eq.s32.totalorder %s27, 1
      %p302 = scmp.ne.s32.totalorder %s297, %s299
      %p303 = scmp.eq.s32.totalorder %s27, 0
      %p304 = por %p302, %p303
      %p305 = scmp.ne.s32.totalorder %s297, %s299
      %p306 = scmp.eq.s32.totalorder %s32, 1
      %p307 = por %p305, %p306
      %p308 = scmp.ne.s32.totalorder %s299, %s300
      %p309 = scmp.eq.s32.totalorder %s32, 0
      %p310 = por %p308, %p309
      %p311 = scmp.ne.s32.totalorder %s299, %s300
      %p312 = scmp.eq.s32.totalorder %s33, 1
      %p313 = por %p311, %p312
      %p315 = scmp.ne.s32.totalorder %s300, %s314
      %p316 = scmp.eq.s32.totalorder %s33, 0
      %p317 = por %p315, %p316
      %s319 = sadd.s32 %s318, 1
      %p322 = scmp.eq.s32.totalorder %s27, 1
      %p323 = scmp.ne.s32.totalorder %s318, %s320
      %p324 = scmp.eq.s32.totalorder %s27, 0
      %p325 = por %p323, %p324
      %p326 = scmp.ne.s32.totalorder %s318, %s320
      %p327 = scmp.eq.s32.totalorder %s32, 1
      %p328 = por %p326, %p327
      %p329 = scmp.ne.s32.totalorder %s320, %s321
      %p330 = scmp.eq.s32.totalorder %s32, 0
      %p331 = por %p329, %p330
      %p332 = scmp.ne.s32.totalorder %s320, %s321
      %p333 = scmp.eq.s32.totalorder %s33, 1
      %p334 = por %p332, %p333
      %p336 = scmp.ne.s32.totalorder %s321, %s335
      %p337 = scmp.eq.s32.totalorder %s33, 0
      %p338 = por %p336, %p337
      %s340 = sadd.s32 %s339, 1
      %p343 = scmp.eq.s32.totalorder %s27, 1
      %p344 = scmp.ne.s32.totalorder %s339, %s341
      %p345 = scmp.eq.s32.totalorder %s27, 0
      %p346 = por %p344, %p345
      %p347 = scmp.ne.s32.totalorder %s339, %s341
      %p348 = scmp.eq.s32.totalorder %s32, 1
      %p349 = por %p347, %p348
      %p350 = scmp.ne.s32.totalorder %s341, %s342
      %p351 = scmp.eq.s32.totalorder %s32, 0
      %p352 = por %p350, %p351
      %p353 = scmp.ne.s32.totalorder %s341, %s342
      %p354 = scmp.eq.s32.totalorder %s33, 1
      %p355 = por %p353, %p354
      %p357 = scmp.ne.s32.totalorder %s342, %s356
      %p358 = scmp.eq.s32.totalorder %s33, 0
      %p359 = por %p357, %p358
      %s361 = sadd.s32 %s360, 1
      %p364 = scmp.eq.s32.totalorder %s27, 1
      %p365 = scmp.ne.s32.totalorder %s360, %s362
      %p366 = scmp.eq.s32.totalorder %s27, 0
      %p367 = por %p365, %p366
      %p368 = scmp.ne.s32.totalorder %s360, %s362
      %p369 = scmp.eq.s32.totalorder %s32, 1
      %p370 = por %p368, %p369
      %p371 = scmp.ne.s32.totalorder %s362, %s363
      %p372 = scmp.eq.s32.totalorder %s32, 0
      %p373 = por %p371, %p372
      %p374 = scmp.ne.s32.totalorder %s362, %s363
      %p375 = scmp.eq.s32.totalorder %s33, 1
      %p376 = por %p374, %p375
      %p378 = scmp.ne.s32.totalorder %s363, %s377
      %p379 = scmp.eq.s32.totalorder %s33, 0
      %p380 = por %p378, %p379
      %s381 = ssub.s32 %s27, %s34
      %p382 = scmp.eq.s32.totalorder %s381, 0
      %s384 = sadd.s32 %s383, 1
      %s385 = scalar_select %p382, %s383, %s384
      %p388 = pneg %p382
      %p389 = scmp.eq.s32.totalorder %s27, 1
      %p390 = por %p388, %p389
      %p391 = scmp.ne.s32.totalorder %s383, %s386
      %p392 = scmp.eq.s32.totalorder %s27, 0
      %p393 = por %p391, %p392
      %p394 = scmp.ne.s32.totalorder %s383, %s386
      %p395 = scmp.eq.s32.totalorder %s32, 1
      %p396 = por %p394, %p395
      %p397 = scmp.ne.s32.totalorder %s386, %s387
      %p398 = scmp.eq.s32.totalorder %s32, 0
      %p399 = por %p397, %p398
      %p400 = scmp.ne.s32.totalorder %s386, %s387
      %p401 = scmp.eq.s32.totalorder %s33, 1
      %p402 = por %p400, %p401
      %p404 = scmp.ne.s32.totalorder %s387, %s403
      %p405 = scmp.eq.s32.totalorder %s33, 0
      %p406 = por %p404, %p405
      %s407 = ssub.s32 %s27, %s34
      %p408 = scmp.eq.s32.totalorder %s407, 0
      %s410 = sadd.s32 %s409, 1
      %s411 = scalar_select %p408, %s409, %s410
      %p414 = pneg %p408
      %p415 = scmp.eq.s32.totalorder %s27, 1
      %p416 = por %p414, %p415
      %p417 = scmp.ne.s32.totalorder %s409, %s412
      %p418 = scmp.eq.s32.totalorder %s27, 0
      %p419 = por %p417, %p418
      %p420 = scmp.ne.s32.totalorder %s409, %s412
      %p421 = scmp.eq.s32.totalorder %s32, 1
      %p422 = por %p420, %p421
      %p423 = scmp.ne.s32.totalorder %s412, %s413
      %p424 = scmp.eq.s32.totalorder %s32, 0
      %p425 = por %p423, %p424
      %p426 = scmp.ne.s32.totalorder %s412, %s413
      %p427 = scmp.eq.s32.totalorder %s33, 1
      %p428 = por %p426, %p427
      %p430 = scmp.ne.s32.totalorder %s413, %s429
      %p431 = scmp.eq.s32.totalorder %s33, 0
      %p432 = por %p430, %p431
      %p433 = scmp.le.s32.totalorder 1, %s27
      %p434 = scmp.lt.s32.totalorder %s27, 3
      %p435 = pnand %p433, %p434
      %p436 = pneg %p435
      // Predicated region
      $region9: #{_lambda_.2} parent=5 // pred_check
        _
      $region10: #{_lambda_.2} parent=5 // pred_check_branch
        %438 = sbr.rel (%p435) target = $region12
      $region11: #{_lambda_.2} parent=5 // pred_region
        %s439 = ssub.s32 %s27, 1
        // Predicated region
        $region13: #{_lambda_.2} parent=11 // pred_check
          %p440 = pneg %p100
        $region14: #{_lambda_.2} parent=11 // pred_check_branch
          %442 = sbr.rel (%p440) target = $region16
        $region15: #{_lambda_.2} parent=11 // pred_region
          _
        $region16: #{_lambda_.2} parent=11 // pred_fallthru
          _
        // Predicated region
        $region17: #{_lambda_.2} parent=11 // pred_check
          %p443 = pneg %p121
        $region18: #{_lambda_.2} parent=11 // pred_check_branch
          %445 = sbr.rel (%p443) target = $region20
        $region19: #{_lambda_.2} parent=11 // pred_region
          _
        $region20: #{_lambda_.2} parent=11 // pred_fallthru
          _
        // Predicated region
        $region21: #{_lambda_.2} parent=11 // pred_check
          %p446 = pneg %p142
        $region22: #{_lambda_.2} parent=11 // pred_check_branch
          %448 = sbr.rel (%p446) target = $region24
        $region23: #{_lambda_.2} parent=11 // pred_region
          _
        $region24: #{_lambda_.2} parent=11 // pred_fallthru
          _
        // Predicated region
        $region25: #{_lambda_.2} parent=11 // pred_check
          %p449 = pneg %p163
        $region26: #{_lambda_.2} parent=11 // pred_check_branch
          %451 = sbr.rel (%p449) target = $region28
        $region27: #{_lambda_.2} parent=11 // pred_region
          _
        $region28: #{_lambda_.2} parent=11 // pred_fallthru
          _
        // Predicated region
        $region29: #{_lambda_.2} parent=11 // pred_check
          %p452 = pneg %p184
        $region30: #{_lambda_.2} parent=11 // pred_check_branch
          %454 = sbr.rel (%p452) target = $region32
        $region31: #{_lambda_.2} parent=11 // pred_region
          _
        $region32: #{_lambda_.2} parent=11 // pred_fallthru
          _
        // Predicated region
        $region33: #{_lambda_.2} parent=11 // pred_check
          %p455 = pneg %p205
        $region34: #{_lambda_.2} parent=11 // pred_check_branch
          %457 = sbr.rel (%p455) target = $region36
        $region35: #{_lambda_.2} parent=11 // pred_region
          _
        $region36: #{_lambda_.2} parent=11 // pred_fallthru
          _
        // Predicated region
        $region37: #{_lambda_.2} parent=11 // pred_check
          %p458 = pneg %p226
        $region38: #{_lambda_.2} parent=11 // pred_check_branch
          %460 = sbr.rel (%p458) target = $region40
        $region39: #{_lambda_.2} parent=11 // pred_region
          _
        $region40: #{_lambda_.2} parent=11 // pred_fallthru
          _
        // Predicated region
        $region41: #{_lambda_.2} parent=11 // pred_check
          %p461 = pneg %p247
        $region42: #{_lambda_.2} parent=11 // pred_check_branch
          %463 = sbr.rel (%p461) target = $region44
        $region43: #{_lambda_.2} parent=11 // pred_region
          _
        $region44: #{_lambda_.2} parent=11 // pred_fallthru
          _
        // Predicated region
        $region45: #{_lambda_.2} parent=11 // pred_check
          %p464 = pneg %p268
        $region46: #{_lambda_.2} parent=11 // pred_check_branch
          %466 = sbr.rel (%p464) target = $region48
        $region47: #{_lambda_.2} parent=11 // pred_region
          _
        $region48: #{_lambda_.2} parent=11 // pred_fallthru
          _
        // Predicated region
        $region49: #{_lambda_.2} parent=11 // pred_check
          %p467 = pneg %p289
        $region50: #{_lambda_.2} parent=11 // pred_check_branch
          %469 = sbr.rel (%p467) target = $region52
        $region51: #{_lambda_.2} parent=11 // pred_region
          _
        $region52: #{_lambda_.2} parent=11 // pred_fallthru
          _
        // Predicated region
        $region53: #{_lambda_.2} parent=11 // pred_check
          %p470 = pneg %p310
        $region54: #{_lambda_.2} parent=11 // pred_check_branch
          %472 = sbr.rel (%p470) target = $region56
        $region55: #{_lambda_.2} parent=11 // pred_region
          _
        $region56: #{_lambda_.2} parent=11 // pred_fallthru
          _
        // Predicated region
        $region57: #{_lambda_.2} parent=11 // pred_check
          %p473 = pneg %p331
        $region58: #{_lambda_.2} parent=11 // pred_check_branch
          %475 = sbr.rel (%p473) target = $region60
        $region59: #{_lambda_.2} parent=11 // pred_region
          _
        $region60: #{_lambda_.2} parent=11 // pred_fallthru
          _
        // Predicated region
        $region61: #{_lambda_.2} parent=11 // pred_check
          %p476 = pneg %p352
        $region62: #{_lambda_.2} parent=11 // pred_check_branch
          %478 = sbr.rel (%p476) target = $region64
        $region63: #{_lambda_.2} parent=11 // pred_region
          _
        $region64: #{_lambda_.2} parent=11 // pred_fallthru
          _
        // Predicated region
        $region65: #{_lambda_.2} parent=11 // pred_check
          %p479 = pneg %p373
        $region66: #{_lambda_.2} parent=11 // pred_check_branch
          %481 = sbr.rel (%p479) target = $region68
        $region67: #{_lambda_.2} parent=11 // pred_region
          _
        $region68: #{_lambda_.2} parent=11 // pred_fallthru
          _
      $region12: #{_lambda_.2} parent=5 // pred_fallthru
        _
      %p482 = scmp.lt.s32.totalorder %s27, 2
      // Predicated region
      $region69: #{_lambda_.2} parent=5 // pred_check
        %p483 = pneg %p482
      $region70: #{_lambda_.2} parent=5 // pred_check_branch
        %485 = sbr.rel (%p483) target = $region72
      $region71: #{_lambda_.2} parent=5 // pred_region
        // Predicated region
        $region73: #{_lambda_.2} parent=71 // pred_check
          %p486 = pneg %p47
        $region74: #{_lambda_.2} parent=71 // pred_check_branch
          %488 = sbr.rel (%p486) target = $region76
        $region75: #{_lambda_.2} parent=71 // pred_region
          %p489 = scmp.lt.s32.totalorder %s27, 1
          %s490 = scalar_select %p489, %s27, 1
          %s491 = smul.addr %s490, 8
          %s492 = scalar_lea.vmem %s0, %s491
        $region76: #{_lambda_.2} parent=71 // pred_fallthru
          _
        // Predicated region
        $region77: #{_lambda_.2} parent=71 // pred_check
          %p493 = pneg %p73
        $region78: #{_lambda_.2} parent=71 // pred_check_branch
          %495 = sbr.rel (%p493) target = $region80
        $region79: #{_lambda_.2} parent=71 // pred_region
          %p496 = scmp.lt.s32.totalorder %s27, 1
          %s497 = scalar_select %p496, %s27, 1
          %s498 = scalar_lea.vmem %s1, %s497
        $region80: #{_lambda_.2} parent=71 // pred_fallthru
          _
      $region72: #{_lambda_.2} parent=5 // pred_fallthru
        _
      %p499 = scmp.le.s32.totalorder 1, %s27
      %p500 = scmp.lt.s32.totalorder %s27, 3
      %p501 = pnand %p499, %p500
      %p502 = pneg %p501
      // Predicated region
      $region81: #{_lambda_.2} parent=5 // pred_check
        _
      $region82: #{_lambda_.2} parent=5 // pred_check_branch
        %504 = sbr.rel (%p501) target = $region84
      $region83: #{_lambda_.2} parent=5 // pred_region
        %s505 = ssub.s32 %s27, 1
        %p506 = scmp.lt.s32.totalorder %s32, 1
        %s507 = scalar_select %p506, %s32, 1
        %s508 = smul.addr %s507, 8
        %s509 = scalar_lea.vmem %s0, %s508
        %p510 = pneg %p53
        %p511 = pneg %p50
        %p512 = scmp.lt.s32.totalorder %s32, 1
        %s513 = scalar_select %p512, %s32, 1
        %s514 = scalar_lea.vmem %s1, %s513
        %p515 = pneg %p79
        %p516 = pneg %p76
        %p517 = pneg %p100
        %p518 = pneg %p97
        %p519 = pneg %p121
        %p520 = pneg %p118
        %p521 = pneg %p142
        %p522 = pneg %p139
        %p523 = pneg %p163
        %p524 = pneg %p160
        %p525 = pneg %p184
        %p526 = pneg %p181
        %p527 = pneg %p205
        %p528 = pneg %p202
        %p529 = pneg %p226
        %p530 = pneg %p223
        %p531 = pneg %p247
        %p532 = pneg %p244
        %p533 = pneg %p268
        %p534 = pneg %p265
        %p535 = pneg %p289
        %p536 = pneg %p286
        %p537 = pneg %p310
        %p538 = pneg %p307
        %p539 = pneg %p331
        %p540 = pneg %p328
        %p541 = pneg %p352
        %p542 = pneg %p349
        %p543 = pneg %p373
        %p544 = pneg %p370
        %p545 = pneg %p399
        %p546 = pneg %p396
        %p547 = scmp.lt.s32.totalorder %s32, 1
        %s548 = scalar_select %p547, %s32, 1
        %s549 = smul.addr %s548, 4
        %s550 = scalar_lea.vmem %s16, %s549
        %p551 = pneg %p425
        %p552 = pneg %p422
        %s553 = sand.u32 %s412, 1
        %s554 = scalar_lea.sflag [#allocation3], %s553
        %s555 = sand.u32 %s412, 1
        %s556 = smul.addr %s555, 32
        %s557 = scalar_lea.vmem [#allocation2], %s556
        %p558 = scmp.lt.s32.totalorder %s32, 1
        %s559 = scalar_select %p558, %s32, 1
        %s560 = smul.addr %s559, 8
        %s561 = scalar_lea.vmem %s0, %s560
        %p562 = scmp.lt.s32.totalorder %s32, 1
        %s563 = scalar_select %p562, %s32, 1
        %s564 = scalar_lea.vmem %s1, %s563
        %p565 = scmp.lt.s32.totalorder %s32, 1
        %s566 = scalar_select %p565, %s32, 1
        %s567 = smul.addr %s566, 4
        %s568 = scalar_lea.vmem %s16, %s567
        %v570 = vld [vmem:[%s561] sm:$0xff]
        %v571 = vld [vmem:[%s2] sm:$0x1]
        %v572 = vld [vmem:[%s3] sm:$0x1]
        %vm573 = vcmask 261120
        %v574 = vsel %vm573, %v570, 0.0
        %575 = vadd.xlane.f32.xlu0 %v574
        %v576 = vpop.xlane.xlu0 %575
        %v577 = vrcp.pop 32.0
        %v578 = vmul.f32 %v576, %v577
        %v579 = vsub.f32 %v570, %v578
        %v580 = vmul.f32 %v579, %v579
        %v581 = vsel %vm573, %v580, 0.0
        %582 = vadd.xlane.f32.xlu0 %v581
        %v583 = vpop.xlane.xlu0 %582
        %v584 = vmul.f32 %v583, %v577
        %v585 = vadd.f32 %v584, 1e-12
        %v586 = vrsqrt.pop %v585
        %v587 = vmul.f32 %v579, %v586
        %v589 = vlaneseq
        %v590 = vshrl.u32 %v589, 7
        %v591 = vsub.s32 0, %v590
        %v592 = vrot.slane %v571, %v591
        %v594 = vmul.f32 %v587, %v592
        %v596 = vlaneseq
        %v597 = vshrl.u32 %v596, 7
        %v598 = vsub.s32 0, %v597
        %v599 = vrot.slane %v572, %v598
        %v601 = vadd.f32 %v594, %v599
        %v602 = vpack.c.bf16 %v601, %v601
        %v603 = vld [vmem:[%s4] sm:$0xf]
        %v604 = vld [vmem:[%s4 + $0x4] sm:$0xf]
        %v605 = vld [vmem:[%s4 + $0x8] sm:$0xf]
        %v606 = vld [vmem:[%s4 + $0xc] sm:$0xf]
        %v607 = vld [vmem:[%s5] sm:$0x1]
        %v609 = vlaneseq
        %v610 = vshrl.u32 %v609, 7
        %v611 = vsub.s32 0, %v610
        %v612 = vrot.slane %v607, %v611
        %v618 = vunpack.c.l.b16 %v603
        %v619 = vunpack.c.l.b16 %v604
        %v620 = vunpack.c.l.b16 %v605
        %v621 = vunpack.c.l.b16 %v606
        %v622 = vpack.c.b16 %v619, %v618
        %v623 = vpack.c.b16 %v621, %v620
        %v627 = vsel %vm573, %v602, 0
        %629 = vmatprep.subr.bf16.mxu0 0
        %630 = vmatpush1.bf16.msra.mxu0 %v622
        %631 = vmatprep.subr.bf16.mxu0 0
        %632 = vmatpush1.bf16.msra.mxu0 %v623
        %633 = vmatprep.subr.bf16.mxu0 0
        %634 = vmatpush1.bf16.msra.mxu0 0
        %635 = vmatprep.subr.bf16.mxu0 0
        %636 = vmatpush1.bf16.msra.mxu0 0
        %637 = vmatprep.subr.bf16.mxu0 0
        %638 = vmatpush1.bf16.msra.mxu0 0
        %639 = vmatprep.subr.bf16.mxu0 0
        %640 = vmatpush1.bf16.msra.mxu0 0
        %641 = vmatprep.subr.bf16.mxu0 0
        %642 = vmatpush1.bf16.msra.mxu0 0
        %643 = vmatprep.subr.bf16.mxu0 0
        %644 = vmatpush1.bf16.msra.mxu0 0
        %645 = vmatprep.subr.bf16.mxu0 0
        %646 = vmatpush1.bf16.msra.mxu0 0
        %647 = vmatprep.subr.bf16.mxu0 0
        %648 = vmatpush1.bf16.msra.mxu0 0
        %649 = vmatprep.subr.bf16.mxu0 0
        %650 = vmatpush1.bf16.msra.mxu0 0
        %651 = vmatprep.subr.bf16.mxu0 0
        %652 = vmatpush1.bf16.msra.mxu0 0
        %653 = vmatprep.subr.bf16.mxu0 0
        %654 = vmatpush1.bf16.msra.mxu0 0
        %655 = vmatprep.subr.bf16.mxu0 0
        %656 = vmatpush1.bf16.msra.mxu0 0
        %657 = vmatprep.subr.bf16.mxu0 0
        %658 = vmatpush1.bf16.msra.mxu0 0
        %659 = vmatprep.subr.bf16.mxu0 0
        %660 = vmatpush1.bf16.msra.mxu0 0
        %661 = vmatprep.mubr.bf16.mxu0 0
        %662 = vmatmul.mubr.bf16.gmra.mrb[0].mxu0 %v627
        %v663 = vpop.f32.mrb[0].mxu0
        %v664 = vadd.f32 %v612, %v663
        %v665 = vpop.f32.mrb[0].mxu0
        %v666 = vpop.f32.mrb[0].mxu0
        %v667 = vpop.f32.mrb[0].mxu0
        %668 = vdwg.mxu0
        %v669 = vpack.c.bf16 %v664, %v664
        %671 = vrot.lane.b32.xlu0 %v669, 120
        %v672 = vpop.permute.xlu0 %671
        %673 = vrot.lane.b32.xlu0 %v669, 112
        %v674 = vpop.permute.xlu0 %673
        %675 = vrot.lane.b32.xlu0 %v669, 104
        %v676 = vpop.permute.xlu0 %675
        %v677 = vld [vmem:[%s564] sm:$0x1]
        %v679 = vlaneseq
        %v680 = vshrl.u32 %v679, 7
        %v681 = vsub.s32 0, %v680
        %v682 = vrot.slane %v677, %v681
        %684 = vrot.lane.b32.xlu0 %v669, 96
        %v685 = vpop.permute.xlu0 %684
        %vm686 = vcmask 64512
        %v688 = vsel %vm686, %v669, 0
        %v691 = vsel %vm686, %v685, 0
        %693 = vmatprep.subr.bf16.mxu0 0
        %694 = vmatpush1.bf16.xpose.msra.mxu0 %v691
        %695 = vmatprep.subr.bf16.mxu0 0
        %696 = vmatpush1.bf16.xpose.msra.mxu0 0
        %697 = vmatprep.subr.bf16.mxu0 0
        %698 = vmatpush1.bf16.xpose.msra.mxu0 0
        %699 = vmatprep.subr.bf16.mxu0 0
        %700 = vmatpush1.bf16.xpose.msra.mxu0 0
        %701 = vmatprep.subr.bf16.mxu0 0
        %702 = vmatpush1.bf16.xpose.msra.mxu0 0
        %703 = vmatprep.subr.bf16.mxu0 0
        %704 = vmatpush1.bf16.xpose.msra.mxu0 0
        %705 = vmatprep.subr.bf16.mxu0 0
        %706 = vmatpush1.bf16.xpose.msra.mxu0 0
        %707 = vmatprep.subr.bf16.mxu0 0
        %708 = vmatpush1.bf16.xpose.msra.mxu0 0
        %709 = vmatprep.subr.bf16.mxu0 0
        %710 = vmatpush1.bf16.xpose.msra.mxu0 0
        %711 = vmatprep.subr.bf16.mxu0 0
        %712 = vmatpush1.bf16.xpose.msra.mxu0 0
        %713 = vmatprep.subr.bf16.mxu0 0
        %714 = vmatpush1.bf16.xpose.msra.mxu0 0
        %715 = vmatprep.subr.bf16.mxu0 0
        %716 = vmatpush1.bf16.xpose.msra.mxu0 0
        %717 = vmatprep.subr.bf16.mxu0 0
        %718 = vmatpush1.bf16.xpose.msra.mxu0 0
        %719 = vmatprep.subr.bf16.mxu0 0
        %720 = vmatpush1.bf16.xpose.msra.mxu0 0
        %721 = vmatprep.subr.bf16.mxu0 0
        %722 = vmatpush1.bf16.xpose.msra.mxu0 0
        %723 = vmatprep.subr.bf16.mxu0 0
        %724 = vmatpush1.bf16.xpose.msra.mxu0 0
        %725 = vmatprep.mubr.bf16.mxu0 0
        %726 = vmatmul.mubr.bf16.gmra.mrb[0].mxu0 %v688
        %v727 = vpop.f32.mrb[0].mxu0
        %v728 = vadd.f32 %v682, %v727
        %v729 = vpop.f32.mrb[0].mxu0
        %v730 = vpop.f32.mrb[0].mxu0
        %v731 = vpop.f32.mrb[0].mxu0
        %732 = vdwg.mxu0
        %733 = vrot.lane.b32.xlu0 %v672, 96
        %v734 = vpop.permute.xlu0 %733
        %v736 = vsel %vm686, %v672, 0
        %v739 = vsel %vm686, %v734, 0
        %741 = vmatprep.subr.bf16.mxu0 0
        %742 = vmatpush1.bf16.xpose.msra.mxu0 %v739
        %743 = vmatprep.subr.bf16.mxu0 0
        %744 = vmatpush1.bf16.xpose.msra.mxu0 0
        %745 = vmatprep.subr.bf16.mxu0 0
        %746 = vmatpush1.bf16.xpose.msra.mxu0 0
        %747 = vmatprep.subr.bf16.mxu0 0
        %748 = vmatpush1.bf16.xpose.msra.mxu0 0
        %749 = vmatprep.subr.bf16.mxu0 0
        %750 = vmatpush1.bf16.xpose.msra.mxu0 0
        %751 = vmatprep.subr.bf16.mxu0 0
        %752 = vmatpush1.bf16.xpose.msra.mxu0 0
        %753 = vmatprep.subr.bf16.mxu0 0
        %754 = vmatpush1.bf16.xpose.msra.mxu0 0
        %755 = vmatprep.subr.bf16.mxu0 0
        %756 = vmatpush1.bf16.xpose.msra.mxu0 0
        %757 = vmatprep.subr.bf16.mxu0 0
        %758 = vmatpush1.bf16.xpose.msra.mxu0 0
        %759 = vmatprep.subr.bf16.mxu0 0
        %760 = vmatpush1.bf16.xpose.msra.mxu0 0
        %761 = vmatprep.subr.bf16.mxu0 0
        %762 = vmatpush1.bf16.xpose.msra.mxu0 0
        %763 = vmatprep.subr.bf16.mxu0 0
        %764 = vmatpush1.bf16.xpose.msra.mxu0 0
        %765 = vmatprep.subr.bf16.mxu0 0
        %766 = vmatpush1.bf16.xpose.msra.mxu0 0
        %767 = vmatprep.subr.bf16.mxu0 0
        %768 = vmatpush1.bf16.xpose.msra.mxu0 0
        %769 = vmatprep.subr.bf16.mxu0 0
        %770 = vmatpush1.bf16.xpose.msra.mxu0 0
        %771 = vmatprep.subr.bf16.mxu0 0
        %772 = vmatpush1.bf16.xpose.msra.mxu0 0
        %773 = vmatprep.mubr.bf16.mxu0 0
        %774 = vmatmul.mubr.bf16.gmra.mrb[0].mxu0 %v736
        %v775 = vpop.f32.mrb[0].mxu0
        %v776 = vadd.f32 %v682, %v775
        %v777 = vpop.f32.mrb[0].mxu0
        %v778 = vpop.f32.mrb[0].mxu0
        %v779 = vpop.f32.mrb[0].mxu0
        %780 = vdwg.mxu0
        %781 = vrot.lane.b32.xlu0 %v674, 96
        %v782 = vpop.permute.xlu0 %781
        %v784 = vsel %vm686, %v674, 0
        %v787 = vsel %vm686, %v782, 0
        %789 = vmatprep.subr.bf16.mxu0 0
        %790 = vmatpush1.bf16.xpose.msra.mxu0 %v787
        %791 = vmatprep.subr.bf16.mxu0 0
        %792 = vmatpush1.bf16.xpose.msra.mxu0 0
        %793 = vmatprep.subr.bf16.mxu0 0
        %794 = vmatpush1.bf16.xpose.msra.mxu0 0
        %795 = vmatprep.subr.bf16.mxu0 0
        %796 = vmatpush1.bf16.xpose.msra.mxu0 0
        %797 = vmatprep.subr.bf16.mxu0 0
        %798 = vmatpush1.bf16.xpose.msra.mxu0 0
        %799 = vmatprep.subr.bf16.mxu0 0
        %800 = vmatpush1.bf16.xpose.msra.mxu0 0
        %801 = vmatprep.subr.bf16.mxu0 0
        %802 = vmatpush1.bf16.xpose.msra.mxu0 0
        %803 = vmatprep.subr.bf16.mxu0 0
        %804 = vmatpush1.bf16.xpose.msra.mxu0 0
        %805 = vmatprep.subr.bf16.mxu0 0
        %806 = vmatpush1.bf16.xpose.msra.mxu0 0
        %807 = vmatprep.subr.bf16.mxu0 0
        %808 = vmatpush1.bf16.xpose.msra.mxu0 0
        %809 = vmatprep.subr.bf16.mxu0 0
        %810 = vmatpush1.bf16.xpose.msra.mxu0 0
        %811 = vmatprep.subr.bf16.mxu0 0
        %812 = vmatpush1.bf16.xpose.msra.mxu0 0
        %813 = vmatprep.subr.bf16.mxu0 0
        %814 = vmatpush1.bf16.xpose.msra.mxu0 0
        %815 = vmatprep.subr.bf16.mxu0 0
        %816 = vmatpush1.bf16.xpose.msra.mxu0 0
        %817 = vmatprep.subr.bf16.mxu0 0
        %818 = vmatpush1.bf16.xpose.msra.mxu0 0
        %819 = vmatprep.subr.bf16.mxu0 0
        %820 = vmatpush1.bf16.xpose.msra.mxu0 0
        %821 = vmatprep.mubr.bf16.mxu0 0
        %822 = vmatmul.mubr.bf16.gmra.mrb[0].mxu0 %v784
        %v823 = vpop.f32.mrb[0].mxu0
        %v824 = vadd.f32 %v682, %v823
        %v825 = vpop.f32.mrb[0].mxu0
        %v826 = vpop.f32.mrb[0].mxu0
        %v827 = vpop.f32.mrb[0].mxu0
        %828 = vdwg.mxu0
        %829 = vrot.lane.b32.xlu0 %v676, 96
        %v830 = vpop.permute.xlu0 %829
        %v832 = vsel %vm686, %v676, 0
        %v835 = vsel %vm686, %v830, 0
        %837 = vmatprep.subr.bf16.mxu0 0
        %838 = vmatpush1.bf16.xpose.msra.mxu0 %v835
        %839 = vmatprep.subr.bf16.mxu0 0
        %840 = vmatpush1.bf16.xpose.msra.mxu0 0
        %841 = vmatprep.subr.bf16.mxu0 0
        %842 = vmatpush1.bf16.xpose.msra.mxu0 0
        %843 = vmatprep.subr.bf16.mxu0 0
        %844 = vmatpush1.bf16.xpose.msra.mxu0 0
        %845 = vmatprep.subr.bf16.mxu0 0
        %846 = vmatpush1.bf16.xpose.msra.mxu0 0
        %847 = vmatprep.subr.bf16.mxu0 0
        %848 = vmatpush1.bf16.xpose.msra.mxu0 0
        %849 = vmatprep.subr.bf16.mxu0 0
        %850 = vmatpush1.bf16.xpose.msra.mxu0 0
        %851 = vmatprep.subr.bf16.mxu0 0
        %852 = vmatpush1.bf16.xpose.msra.mxu0 0
        %853 = vmatprep.subr.bf16.mxu0 0
        %854 = vmatpush1.bf16.xpose.msra.mxu0 0
        %855 = vmatprep.subr.bf16.mxu0 0
        %856 = vmatpush1.bf16.xpose.msra.mxu0 0
        %857 = vmatprep.subr.bf16.mxu0 0
        %858 = vmatpush1.bf16.xpose.msra.mxu0 0
        %859 = vmatprep.subr.bf16.mxu0 0
        %860 = vmatpush1.bf16.xpose.msra.mxu0 0
        %861 = vmatprep.subr.bf16.mxu0 0
        %862 = vmatpush1.bf16.xpose.msra.mxu0 0
        %863 = vmatprep.subr.bf16.mxu0 0
        %864 = vmatpush1.bf16.xpose.msra.mxu0 0
        %865 = vmatprep.subr.bf16.mxu0 0
        %866 = vmatpush1.bf16.xpose.msra.mxu0 0
        %867 = vmatprep.subr.bf16.mxu0 0
        %868 = vmatpush1.bf16.xpose.msra.mxu0 0
        %869 = vmatprep.mubr.bf16.mxu0 0
        %870 = vmatmul.mubr.bf16.gmra.mrb[0].mxu0 %v832
        %v871 = vpop.f32.mrb[0].mxu0
        %v872 = vadd.f32 %v682, %v871
        %v873 = vpop.f32.mrb[0].mxu0
        %v874 = vpop.f32.mrb[0].mxu0
        %v875 = vpop.f32.mrb[0].mxu0
        %876 = vdwg.mxu0
        %v877 = vsel %vm686, %v728, -inf
        %878 = vmax.xlane.f32.xlu0 %v877
        %v879 = vpop.xlane.xlu0 %878
        %v880 = vsel %vm686, %v776, -inf
        %881 = vmax.xlane.f32.xlu0 %v880
        %v882 = vpop.xlane.xlu0 %881
        %v883 = vsel %vm686, %v824, -inf
        %884 = vmax.xlane.f32.xlu0 %v883
        %v885 = vpop.xlane.xlu0 %884
        %v886 = vsel %vm686, %v872, -inf
        %887 = vmax.xlane.f32.xlu0 %v886
        %v888 = vpop.xlane.xlu0 %887
        %v889 = vsub.f32 %v728, %v879
        %v890 = vsub.f32 %v776, %v882
        %v891 = vsub.f32 %v824, %v885
        %v892 = vsub.f32 %v872, %v888
        %v893 = vmul.f32 %v889, 1.442695
        %v894 = vpow.pop %v893
        %v895 = vmul.f32 %v890, 1.442695
        %v896 = vpow.pop %v895
        %v897 = vmul.f32 %v891, 1.442695
        %v898 = vpow.pop %v897
        %v899 = vmul.f32 %v892, 1.442695
        %v900 = vpow.pop %v899
        %v901 = vsel %vm686, %v894, 0.0
        %902 = vadd.xlane.f32.xlu0 %v901
        %v903 = vpop.xlane.xlu0 %902
        %v904 = vsel %vm686, %v896, 0.0
        %905 = vadd.xlane.f32.xlu0 %v904
        %v906 = vpop.xlane.xlu0 %905
        %v907 = vsel %vm686, %v898, 0.0
        %908 = vadd.xlane.f32.xlu0 %v907
        %v909 = vpop.xlane.xlu0 %908
        %v910 = vsel %vm686, %v900, 0.0
        %911 = vadd.xlane.f32.xlu0 %v910
        %v912 = vpop.xlane.xlu0 %911
        %v913 = vrcp.pop %v903
        %v914 = vrcp.pop %v906
        %v915 = vrcp.pop %v909
        %v916 = vrcp.pop %v912
        %v917 = vmul.f32 %v894, %v913
        %v918 = vmul.f32 %v896, %v914
        %v919 = vmul.f32 %v898, %v915
        %v920 = vmul.f32 %v900, %v916
        %921 = vst.msk [vmem:[%s557] sm:$0xff] %vm686, %v917
        %922 = vst.msk [vmem:[%s557 + $0x8] sm:$0xff] %vm686, %v918
        %923 = vst.msk [vmem:[%s557 + $0x10] sm:$0xff] %vm686, %v919
        %924 = vst.msk [vmem:[%s557 + $0x18] sm:$0xff] %vm686, %v920
        %v925 = vpack.c.bf16 %v917, %v917
        %v926 = vpack.c.bf16 %v918, %v918
        %v927 = vpack.c.bf16 %v919, %v919
        %v928 = vpack.c.bf16 %v920, %v920
        %929 = vrot.lane.b32.xlu0 %v669, 64
        %v930 = vpop.permute.xlu0 %929
        %v932 = vsel %vm686, %v925, 0
        %vm934 = vcmask 1043456
        %v936 = vsel %vm934, %v930, 0
        %938 = vmatprep.subr.bf16.mxu0 0
        %939 = vmatpush1.bf16.msra.mxu0 %v936
        %940 = vmatprep.subr.bf16.mxu0 0
        %941 = vmatpush1.bf16.msra.mxu0 0
        %942 = vmatprep.subr.bf16.mxu0 0
        %943 = vmatpush1.bf16.msra.mxu0 0
        %944 = vmatprep.subr.bf16.mxu0 0
        %945 = vmatpush1.bf16.msra.mxu0 0
        %946 = vmatprep.subr.bf16.mxu0 0
        %947 = vmatpush1.bf16.msra.mxu0 0
        %948 = vmatprep.subr.bf16.mxu0 0
        %949 = vmatpush1.bf16.msra.mxu0 0
        %950 = vmatprep.subr.bf16.mxu0 0
        %951 = vmatpush1.bf16.msra.mxu0 0
        %952 = vmatprep.subr.bf16.mxu0 0
        %953 = vmatpush1.bf16.msra.mxu0 0
        %954 = vmatprep.subr.bf16.mxu0 0
        %955 = vmatpush1.bf16.msra.mxu0 0
        %956 = vmatprep.subr.bf16.mxu0 0
        %957 = vmatpush1.bf16.msra.mxu0 0
        %958 = vmatprep.subr.bf16.mxu0 0
        %959 = vmatpush1.bf16.msra.mxu0 0
        %960 = vmatprep.subr.bf16.mxu0 0
        %961 = vmatpush1.bf16.msra.mxu0 0
        %962 = vmatprep.subr.bf16.mxu0 0
        %963 = vmatpush1.bf16.msra.mxu0 0
        %964 = vmatprep.subr.bf16.mxu0 0
        %965 = vmatpush1.bf16.msra.mxu0 0
        %966 = vmatprep.subr.bf16.mxu0 0
        %967 = vmatpush1.bf16.msra.mxu0 0
        %968 = vmatprep.subr.bf16.mxu0 0
        %969 = vmatpush1.bf16.msra.mxu0 0
        %970 = vmatprep.mubr.bf16.mxu0 0
        %971 = vmatmul.mubr.bf16.gmra.mrb[0].mxu0 %v932
        %v972 = vpop.f32.mrb[0].mxu0
        %v973 = vadd.f32 0.0, %v972
        %v974 = vpop.f32.mrb[0].mxu0
        %v975 = vpop.f32.mrb[0].mxu0
        %v976 = vpop.f32.mrb[0].mxu0
        %977 = vdwg.mxu0
        %978 = vrot.lane.b32.xlu0 %v672, 64
        %v979 = vpop.permute.xlu0 %978
        %v981 = vsel %vm686, %v926, 0
        %v984 = vsel %vm934, %v979, 0
        %986 = vmatprep.subr.bf16.mxu0 0
        %987 = vmatpush1.bf16.msra.mxu0 %v984
        %988 = vmatprep.subr.bf16.mxu0 0
        %989 = vmatpush1.bf16.msra.mxu0 0
        %990 = vmatprep.subr.bf16.mxu0 0
        %991 = vmatpush1.bf16.msra.mxu0 0
        %992 = vmatprep.subr.bf16.mxu0 0
        %993 = vmatpush1.bf16.msra.mxu0 0
        %994 = vmatprep.subr.bf16.mxu0 0
        %995 = vmatpush1.bf16.msra.mxu0 0
        %996 = vmatprep.subr.bf16.mxu0 0
        %997 = vmatpush1.bf16.msra.mxu0 0
        %998 = vmatprep.subr.bf16.mxu0 0
        %999 = vmatpush1.bf16.msra.mxu0 0
        %1000 = vmatprep.subr.bf16.mxu0 0
        %1001 = vmatpush1.bf16.msra.mxu0 0
        %1002 = vmatprep.subr.bf16.mxu0 0
        %1003 = vmatpush1.bf16.msra.mxu0 0
        %1004 = vmatprep.subr.bf16.mxu0 0
        %1005 = vmatpush1.bf16.msra.mxu0 0
        %1006 = vmatprep.subr.bf16.mxu0 0
        %1007 = vmatpush1.bf16.msra.mxu0 0
        %1008 = vmatprep.subr.bf16.mxu0 0
        %1009 = vmatpush1.bf16.msra.mxu0 0
        %1010 = vmatprep.subr.bf16.mxu0 0
        %1011 = vmatpush1.bf16.msra.mxu0 0
        %1012 = vmatprep.subr.bf16.mxu0 0
        %1013 = vmatpush1.bf16.msra.mxu0 0
        %1014 = vmatprep.subr.bf16.mxu0 0
        %1015 = vmatpush1.bf16.msra.mxu0 0
        %1016 = vmatprep.subr.bf16.mxu0 0
        %1017 = vmatpush1.bf16.msra.mxu0 0
        %1018 = vmatprep.mubr.bf16.mxu0 0
        %1019 = vmatmul.mubr.bf16.gmra.mrb[0].mxu0 %v981
        %v1020 = vpop.f32.mrb[0].mxu0
        %v1021 = vadd.f32 0.0, %v1020
        %v1022 = vpop.f32.mrb[0].mxu0
        %v1023 = vpop.f32.mrb[0].mxu0
        %v1024 = vpop.f32.mrb[0].mxu0
        %1025 = vdwg.mxu0
        %1026 = vrot.lane.b32.xlu0 %v674, 64
        %v1027 = vpop.permute.xlu0 %1026
        %v1029 = vsel %vm686, %v927, 0
        %v1032 = vsel %vm934, %v1027, 0
        %1034 = vmatprep.subr.bf16.mxu0 0
        %1035 = vmatpush1.bf16.msra.mxu0 %v1032
        %1036 = vmatprep.subr.bf16.mxu0 0
        %1037 = vmatpush1.bf16.msra.mxu0 0
        %1038 = vmatprep.subr.bf16.mxu0 0
        %1039 = vmatpush1.bf16.msra.mxu0 0
        %1040 = vmatprep.subr.bf16.mxu0 0
        %1041 = vmatpush1.bf16.msra.mxu0 0
        %1042 = vmatprep.subr.bf16.mxu0 0
        %1043 = vmatpush1.bf16.msra.mxu0 0
        %1044 = vmatprep.subr.bf16.mxu0 0
        %1045 = vmatpush1.bf16.msra.mxu0 0
        %1046 = vmatprep.subr.bf16.mxu0 0
        %1047 = vmatpush1.bf16.msra.mxu0 0
        %1048 = vmatprep.subr.bf16.mxu0 0
        %1049 = vmatpush1.bf16.msra.mxu0 0
        %1050 = vmatprep.subr.bf16.mxu0 0
        %1051 = vmatpush1.bf16.msra.mxu0 0
        %1052 = vmatprep.subr.bf16.mxu0 0
        %1053 = vmatpush1.bf16.msra.mxu0 0
        %1054 = vmatprep.subr.bf16.mxu0 0
        %1055 = vmatpush1.bf16.msra.mxu0 0
        %1056 = vmatprep.subr.bf16.mxu0 0
        %1057 = vmatpush1.bf16.msra.mxu0 0
        %1058 = vmatprep.subr.bf16.mxu0 0
        %1059 = vmatpush1.bf16.msra.mxu0 0
        %1060 = vmatprep.subr.bf16.mxu0 0
        %1061 = vmatpush1.bf16.msra.mxu0 0
        %1062 = vmatprep.subr.bf16.mxu0 0
        %1063 = vmatpush1.bf16.msra.mxu0 0
        %1064 = vmatprep.subr.bf16.mxu0 0
        %1065 = vmatpush1.bf16.msra.mxu0 0
        %1066 = vmatprep.mubr.bf16.mxu0 0
        %1067 = vmatmul.mubr.bf16.gmra.mrb[0].mxu0 %v1029
        %v1068 = vpop.f32.mrb[0].mxu0
        %v1069 = vadd.f32 0.0, %v1068
        %v1070 = vpop.f32.mrb[0].mxu0
        %v1071 = vpop.f32.mrb[0].mxu0
        %v1072 = vpop.f32.mrb[0].mxu0
        %1073 = vdwg.mxu0
        %1074 = vrot.lane.b32.xlu0 %v676, 64
        %v1075 = vpop.permute.xlu0 %1074
        %v1077 = vsel %vm686, %v928, 0
        %v1080 = vsel %vm934, %v1075, 0
        %1082 = vmatprep.subr.bf16.mxu0 0
        %1083 = vmatpush1.bf16.msra.mxu0 %v1080
        %1084 = vmatprep.subr.bf16.mxu0 0
        %1085 = vmatpush1.bf16.msra.mxu0 0
        %1086 = vmatprep.subr.bf16.mxu0 0
        %1087 = vmatpush1.bf16.msra.mxu0 0
        %1088 = vmatprep.subr.bf16.mxu0 0
        %1089 = vmatpush1.bf16.msra.mxu0 0
        %1090 = vmatprep.subr.bf16.mxu0 0
        %1091 = vmatpush1.bf16.msra.mxu0 0
        %1092 = vmatprep.subr.bf16.mxu0 0
        %1093 = vmatpush1.bf16.msra.mxu0 0
        %1094 = vmatprep.subr.bf16.mxu0 0
        %1095 = vmatpush1.bf16.msra.mxu0 0
        %1096 = vmatprep.subr.bf16.mxu0 0
        %1097 = vmatpush1.bf16.msra.mxu0 0
        %1098 = vmatprep.subr.bf16.mxu0 0
        %1099 = vmatpush1.bf16.msra.mxu0 0
        %1100 = vmatprep.subr.bf16.mxu0 0
        %1101 = vmatpush1.bf16.msra.mxu0 0
        %1102 = vmatprep.subr.bf16.mxu0 0
        %1103 = vmatpush1.bf16.msra.mxu0 0
        %1104 = vmatprep.subr.bf16.mxu0 0
        %1105 = vmatpush1.bf16.msra.mxu0 0
        %1106 = vmatprep.subr.bf16.mxu0 0
        %1107 = vmatpush1.bf16.msra.mxu0 0
        %1108 = vmatprep.subr.bf16.mxu0 0
        %1109 = vmatpush1.bf16.msra.mxu0 0
        %1110 = vmatprep.subr.bf16.mxu0 0
        %1111 = vmatpush1.bf16.msra.mxu0 0
        %1112 = vmatprep.subr.bf16.mxu0 0
        %1113 = vmatpush1.bf16.msra.mxu0 0
        %1114 = vmatprep.mubr.bf16.mxu0 0
        %1115 = vmatmul.mubr.bf16.gmra.mrb[0].mxu0 %v1077
        %v1116 = vpop.f32.mrb[0].mxu0
        %v1117 = vadd.f32 0.0, %v1116
        %v1118 = vpop.f32.mrb[0].mxu0
        %v1119 = vpop.f32.mrb[0].mxu0
        %v1120 = vpop.f32.mrb[0].mxu0
        %1121 = vdwg.mxu0
        %1123 = vrot.lane.b32.xlu0 %v1021, 8
        %v1124 = vpop.permute.xlu0 %1123
        %1127 = vrot.lane.b32.xlu0 %v1069, 16
        %v1128 = vpop.permute.xlu0 %1127
        %1131 = vrot.lane.b32.xlu0 %v1117, 24
        %v1132 = vpop.permute.xlu0 %1131
        %v1134 = vsel %vm686, %v973, %v1124
        %vm1135 = vcmask 130048
        %v1136 = vsel %vm1135, %v1134, %v1128
        %vm1137 = vcmask 195584
        %v1138 = vsel %vm1137, %v1136, %v1132
        %v1139 = vld [vmem:[%s6] sm:$0xf]
        %v1140 = vld [vmem:[%s6 + $0x4] sm:$0xf]
        %v1141 = vld [vmem:[%s6 + $0x8] sm:$0xf]
        %v1142 = vld [vmem:[%s6 + $0xc] sm:$0xf]
        %v1143 = vpack.c.bf16 %v1138, %v1138
        %v1144 = vld [vmem:[%s7] sm:$0x1]
        %v1146 = vlaneseq
        %v1147 = vshrl.u32 %v1146, 7
        %v1148 = vsub.s32 0, %v1147
        %v1149 = vrot.slane %v1144, %v1148
        %v1155 = vunpack.c.l.b16 %v1139
        %v1156 = vunpack.c.l.b16 %v1140
        %v1157 = vunpack.c.l.b16 %v1141
        %v1158 = vunpack.c.l.b16 %v1142
        %v1159 = vpack.c.b16 %v1156, %v1155
        %v1160 = vpack.c.b16 %v1158, %v1157
        %v1164 = vsel %vm573, %v1143, 0
        %1166 = vmatprep.subr.bf16.mxu0 0
        %1167 = vmatpush1.bf16.msra.mxu0 %v1159
        %1168 = vmatprep.subr.bf16.mxu0 0
        %1169 = vmatpush1.bf16.msra.mxu0 %v1160
        %1170 = vmatprep.subr.bf16.mxu0 0
        %1171 = vmatpush1.bf16.msra.mxu0 0
        %1172 = vmatprep.subr.bf16.mxu0 0
        %1173 = vmatpush1.bf16.msra.mxu0 0
        %1174 = vmatprep.subr.bf16.mxu0 0
        %1175 = vmatpush1.bf16.msra.mxu0 0
        %1176 = vmatprep.subr.bf16.mxu0 0
        %1177 = vmatpush1.bf16.msra.mxu0 0
        %1178 = vmatprep.subr.bf16.mxu0 0
        %1179 = vmatpush1.bf16.msra.mxu0 0
        %1180 = vmatprep.subr.bf16.mxu0 0
        %1181 = vmatpush1.bf16.msra.mxu0 0
        %1182 = vmatprep.subr.bf16.mxu0 0
        %1183 = vmatpush1.bf16.msra.mxu0 0
        %1184 = vmatprep.subr.bf16.mxu0 0
        %1185 = vmatpush1.bf16.msra.mxu0 0
        %1186 = vmatprep.subr.bf16.mxu0 0
        %1187 = vmatpush1.bf16.msra.mxu0 0
        %1188 = vmatprep.subr.bf16.mxu0 0
        %1189 = vmatpush1.bf16.msra.mxu0 0
        %1190 = vmatprep.subr.bf16.mxu0 0
        %1191 = vmatpush1.bf16.msra.mxu0 0
        %1192 = vmatprep.subr.bf16.mxu0 0
        %1193 = vmatpush1.bf16.msra.mxu0 0
        %1194 = vmatprep.subr.bf16.mxu0 0
        %1195 = vmatpush1.bf16.msra.mxu0 0
        %1196 = vmatprep.subr.bf16.mxu0 0
        %1197 = vmatpush1.bf16.msra.mxu0 0
        %1198 = vmatprep.mubr.bf16.mxu0 0
        %1199 = vmatmul.mubr.bf16.gmra.mrb[0].mxu0 %v1164
        %v1200 = vpop.f32.mrb[0].mxu0
        %v1201 = vadd.f32 %v1149, %v1200
        %v1202 = vpop.f32.mrb[0].mxu0
        %v1203 = vpop.f32.mrb[0].mxu0
        %v1204 = vpop.f32.mrb[0].mxu0
        %1205 = vdwg.mxu0
        %v1206 = vadd.f32 %v1201, %v601
        %v1207 = vld [vmem:[%s8] sm:$0x1]
        %v1208 = vld [vmem:[%s9] sm:$0x1]
        %v1209 = vsel %vm573, %v1206, 0.0
        %1210 = vadd.xlane.f32.xlu0 %v1209
        %v1211 = vpop.xlane.xlu0 %1210
        %v1212 = vmul.f32 %v1211, %v577
        %v1213 = vsub.f32 %v1206, %v1212
        %v1214 = vmul.f32 %v1213, %v1213
        %v1215 = vsel %vm573, %v1214, 0.0
        %1216 = vadd.xlane.f32.xlu0 %v1215
        %v1217 = vpop.xlane.xlu0 %1216
        %v1218 = vmul.f32 %v1217, %v577
        %v1219 = vadd.f32 %v1218, 1e-12
        %v1220 = vrsqrt.pop %v1219
        %v1221 = vmul.f32 %v1213, %v1220
        %v1223 = vlaneseq
        %v1224 = vshrl.u32 %v1223, 7
        %v1225 = vsub.s32 0, %v1224
        %v1226 = vrot.slane %v1207, %v1225
        %v1228 = vmul.f32 %v1221, %v1226
        %v1230 = vlaneseq
        %v1231 = vshrl.u32 %v1230, 7
        %v1232 = vsub.s32 0, %v1231
        %v1233 = vrot.slane %v1208, %v1232
        %v1235 = vadd.f32 %v1228, %v1233
        %v1236 = vld [vmem:[%s10] sm:$0xf]
        %v1237 = vld [vmem:[%s10 + $0x4] sm:$0xf]
        %v1238 = vld [vmem:[%s10 + $0x8] sm:$0xf]
        %v1239 = vld [vmem:[%s10 + $0xc] sm:$0xf]
        %v1240 = vpack.c.bf16 %v1235, %v1235
        %v1241 = vld [vmem:[%s11] sm:$0x1]
        %v1243 = vlaneseq
        %v1244 = vshrl.u32 %v1243, 7
        %v1245 = vsub.s32 0, %v1244
        %v1246 = vrot.slane %v1241, %v1245
        %v1252 = vunpack.c.l.b16 %v1236
        %v1253 = vunpack.c.l.b16 %v1237
        %v1254 = vunpack.c.l.b16 %v1238
        %v1255 = vunpack.c.l.b16 %v1239
        %v1256 = vpack.c.b16 %v1253, %v1252
        %v1257 = vpack.c.b16 %v1255, %v1254
        %v1261 = vsel %vm573, %v1240, 0
        %1263 = vmatprep.subr.bf16.mxu0 0
        %1264 = vmatpush1.bf16.msra.mxu0 %v1256
        %1265 = vmatprep.subr.bf16.mxu0 0
        %1266 = vmatpush1.bf16.msra.mxu0 %v1257
        %1267 = vmatprep.subr.bf16.mxu0 0
        %1268 = vmatpush1.bf16.msra.mxu0 0
        %1269 = vmatprep.subr.bf16.mxu0 0
        %1270 = vmatpush1.bf16.msra.mxu0 0
        %1271 = vmatprep.subr.bf16.mxu0 0
        %1272 = vmatpush1.bf16.msra.mxu0 0
        %1273 = vmatprep.subr.bf16.mxu0 0
        %1274 = vmatpush1.bf16.msra.mxu0 0
        %1275 = vmatprep.subr.bf16.mxu0 0
        %1276 = vmatpush1.bf16.msra.mxu0 0
        %1277 = vmatprep.subr.bf16.mxu0 0
        %1278 = vmatpush1.bf16.msra.mxu0 0
        %1279 = vmatprep.subr.bf16.mxu0 0
        %1280 = vmatpush1.bf16.msra.mxu0 0
        %1281 = vmatprep.subr.bf16.mxu0 0
        %1282 = vmatpush1.bf16.msra.mxu0 0
        %1283 = vmatprep.subr.bf16.mxu0 0
        %1284 = vmatpush1.bf16.msra.mxu0 0
        %1285 = vmatprep.subr.bf16.mxu0 0
        %1286 = vmatpush1.bf16.msra.mxu0 0
        %1287 = vmatprep.subr.bf16.mxu0 0
        %1288 = vmatpush1.bf16.msra.mxu0 0
        %1289 = vmatprep.subr.bf16.mxu0 0
        %1290 = vmatpush1.bf16.msra.mxu0 0
        %1291 = vmatprep.subr.bf16.mxu0 0
        %1292 = vmatpush1.bf16.msra.mxu0 0
        %1293 = vmatprep.subr.bf16.mxu0 0
        %1294 = vmatpush1.bf16.msra.mxu0 0
        %1295 = vmatprep.mubr.bf16.mxu0 0
        %1296 = vmatmul.mubr.bf16.gmra.mrb[0].mxu0 %v1261
        %v1297 = vpop.f32.mrb[0].mxu0
        %v1298 = vadd.f32 %v1246, %v1297
        %v1299 = vpop.f32.mrb[0].mxu0
        %v1300 = vpop.f32.mrb[0].mxu0
        %v1301 = vpop.f32.mrb[0].mxu0
        %1302 = vdwg.mxu0
        %v1303 = vmul.f32 %v1298, 0.5
        %v1304 = vmul.f32 %v1298, 0.044715
        %v1305 = vmul.f32 %v1304, %v1298
        %v1306 = vmul.f32 %v1305, %v1298
        %v1307 = vadd.f32 %v1298, %v1306
        %v1308 = vmul.f32 %v1307, 0.7978846
        %v1309 = vtanh.pop %v1308
        %v1310 = vadd.f32 %v1309, 1.0
        %v1311 = vmul.f32 %v1303, %v1310
        %v1312 = vld [vmem:[%s12] sm:$0xf]
        %v1313 = vld [vmem:[%s12 + $0x4] sm:$0xf]
        %v1314 = vld [vmem:[%s12 + $0x8] sm:$0xf]
        %v1315 = vld [vmem:[%s12 + $0xc] sm:$0xf]
        %v1316 = vld [vmem:[%s12 + $0x10] sm:$0xf]
        %v1317 = vld [vmem:[%s12 + $0x14] sm:$0xf]
        %v1318 = vld [vmem:[%s12 + $0x18] sm:$0xf]
        %v1319 = vld [vmem:[%s12 + $0x1c] sm:$0xf]
        %v1320 = vpack.c.bf16 %v1311, %v1311
        %v1321 = vld [vmem:[%s13] sm:$0x1]
        %v1323 = vlaneseq
        %v1324 = vshrl.u32 %v1323, 7
        %v1325 = vsub.s32 0, %v1324
        %v1326 = vrot.slane %v1321, %v1325
        %v1336 = vunpack.c.l.b16 %v1312
        %v1337 = vunpack.c.l.b16 %v1313
        %v1338 = vunpack.c.l.b16 %v1314
        %v1339 = vunpack.c.l.b16 %v1315
        %v1340 = vunpack.c.l.b16 %v1316
        %v1341 = vunpack.c.l.b16 %v1317
        %v1342 = vunpack.c.l.b16 %v1318
        %v1343 = vunpack.c.l.b16 %v1319
        %v1344 = vpack.c.b16 %v1337, %v1336
        %v1345 = vpack.c.b16 %v1339, %v1338
        %v1346 = vpack.c.b16 %v1341, %v1340
        %v1347 = vpack.c.b16 %v1343, %v1342
        %vm1352 = vcmask 523264
        %v1354 = vsel %vm1352, %v1320, 0
        %1356 = vmatprep.subr.bf16.mxu0 0
        %1357 = vmatpush1.bf16.msra.mxu0 %v1344
        %1358 = vmatprep.subr.bf16.mxu0 0
        %1359 = vmatpush1.bf16.msra.mxu0 %v1345
        %1360 = vmatprep.subr.bf16.mxu0 0
        %1361 = vmatpush1.bf16.msra.mxu0 %v1346
        %1362 = vmatprep.subr.bf16.mxu0 0
        %1363 = vmatpush1.bf16.msra.mxu0 %v1347
        %1364 = vmatprep.subr.bf16.mxu0 0
        %1365 = vmatpush1.bf16.msra.mxu0 0
        %1366 = vmatprep.subr.bf16.mxu0 0
        %1367 = vmatpush1.bf16.msra.mxu0 0
        %1368 = vmatprep.subr.bf16.mxu0 0
        %1369 = vmatpush1.bf16.msra.mxu0 0
        %1370 = vmatprep.subr.bf16.mxu0 0
        %1371 = vmatpush1.bf16.msra.mxu0 0
        %1372 = vmatprep.subr.bf16.mxu0 0
        %1373 = vmatpush1.bf16.msra.mxu0 0
        %1374 = vmatprep.subr.bf16.mxu0 0
        %1375 = vmatpush1.bf16.msra.mxu0 0
        %1376 = vmatprep.subr.bf16.mxu0 0
        %1377 = vmatpush1.bf16.msra.mxu0 0
        %1378 = vmatprep.subr.bf16.mxu0 0
        %1379 = vmatpush1.bf16.msra.mxu0 0
        %1380 = vmatprep.subr.bf16.mxu0 0
        %1381 = vmatpush1.bf16.msra.mxu0 0
        %1382 = vmatprep.subr.bf16.mxu0 0
        %1383 = vmatpush1.bf16.msra.mxu0 0
        %1384 = vmatprep.subr.bf16.mxu0 0
        %1385 = vmatpush1.bf16.msra.mxu0 0
        %1386 = vmatprep.subr.bf16.mxu0 0
        %1387 = vmatpush1.bf16.msra.mxu0 0
        %1388 = vmatprep.mubr.bf16.mxu0 0
        %1389 = vmatmul.mubr.bf16.gmra.mrb[0].mxu0 %v1354
        %v1390 = vpop.f32.mrb[0].mxu0
        %v1391 = vadd.f32 %v1326, %v1390
        %v1392 = vpop.f32.mrb[0].mxu0
        %v1393 = vpop.f32.mrb[0].mxu0
        %v1394 = vpop.f32.mrb[0].mxu0
        %1395 = vdwg.mxu0
        %v1396 = vadd.f32 %v1391, %v1235
        %v1397 = vld [vmem:[%s14] sm:$0x1]
        %v1398 = vld [vmem:[%s15] sm:$0x1]
        %v1399 = vsel %vm573, %v1396, 0.0
        %1400 = vadd.xlane.f32.xlu0 %v1399
        %v1401 = vpop.xlane.xlu0 %1400
        %v1402 = vmul.f32 %v1401, %v577
        %v1403 = vsub.f32 %v1396, %v1402
        %v1404 = vmul.f32 %v1403, %v1403
        %v1405 = vsel %vm573, %v1404, 0.0
        %1406 = vadd.xlane.f32.xlu0 %v1405
        %v1407 = vpop.xlane.xlu0 %1406
        %v1408 = vmul.f32 %v1407, %v577
        %v1409 = vadd.f32 %v1408, 1e-12
        %v1410 = vrsqrt.pop %v1409
        %v1411 = vmul.f32 %v1403, %v1410
        %v1413 = vlaneseq
        %v1414 = vshrl.u32 %v1413, 7
        %v1415 = vsub.s32 0, %v1414
        %v1416 = vrot.slane %v1397, %v1415
        %v1418 = vmul.f32 %v1411, %v1416
        %v1420 = vlaneseq
        %v1421 = vshrl.u32 %v1420, 7
        %v1422 = vsub.s32 0, %v1421
        %v1423 = vrot.slane %v1398, %v1422
        %v1425 = vadd.f32 %v1418, %v1423
        %v1426 = vpack.c.bf16 %v1425, %v1425
        %vm1427 = vcmask 257024
        %1428 = vst.msk [vmem:[%s568] sm:$0xf] %vm1427, %v1426
        %p1429 = scmp.lt.s32.totalorder %s32, 1
        %s1430 = scalar_select %p1429, %s32, 1
        %s1431 = smul.addr %s1430, 4
        %s1432 = scalar_lea.vmem %s16, %s1431
        %s1433 = sand.u32 %s412, 1
        %s1434 = scalar_lea.sflag [#allocation3], %s1433
        %s1435 = sand.u32 %s412, 1
        %s1436 = smul.addr %s1435, 32
        %s1437 = scalar_lea.vmem [#allocation2], %s1436
        // Predicated region
        $region85: #{_lambda_.2} parent=83 // pred_check
          %p1438 = pneg %p396
        $region86: #{_lambda_.2} parent=83 // pred_check_branch
          %1440 = sbr.rel (%p1438) target = $region88
        $region87: #{_lambda_.2} parent=83 // pred_region
          _
        $region88: #{_lambda_.2} parent=83 // pred_fallthru
          _
        // Predicated region
        $region89: #{_lambda_.2} parent=83 // pred_check
          %p1441 = pneg %p422
        $region90: #{_lambda_.2} parent=83 // pred_check_branch
          %1443 = sbr.rel (%p1441) target = $region92
        $region91: #{_lambda_.2} parent=83 // pred_region
          %s1445 = ssub.s32 512, 512
          %1446 = vsyncadd %s1434, %s1445
          %s1447 = smul.addr %s32, 4
          %s1448 = smul.addr %s1447, 128
          %s1449 = scalar_lea.hbm %s17, %s1448
          %s1450 = sshll.u32 %s1437, 4
          %s1451 = int_to_ptr.vmem [resolvable:$true] %s1450
          %1456 = dma.vmem_to_hbm [thread:$0]  %s1451, 512, %s1449, %s1434, 128, 128, 8
        $region92: #{_lambda_.2} parent=83 // pred_fallthru
          _
      $region84: #{_lambda_.2} parent=5 // pred_fallthru
        _
      %p1457 = scmp.le.s32.totalorder 2, %s27
      // Predicated region
      $region93: #{_lambda_.2} parent=5 // pred_check
        %p1458 = pneg %p1457
      $region94: #{_lambda_.2} parent=5 // pred_check_branch
        %1460 = sbr.rel (%p1458) target = $region96
      $region95: #{_lambda_.2} parent=5 // pred_region
        %s1461 = ssub.s32 %s27, 2
        // Predicated region
        $region97: #{_lambda_.2} parent=95 // pred_check
          %p1462 = pneg %p402
        $region98: #{_lambda_.2} parent=95 // pred_check_branch
          %1464 = sbr.rel (%p1462) target = $region100
        $region99: #{_lambda_.2} parent=95 // pred_region
          %p1465 = scmp.lt.s32.totalorder %s33, 1
          %s1466 = scalar_select %p1465, %s33, 1
          %s1467 = smul.addr %s1466, 4
          %s1468 = scalar_lea.vmem %s16, %s1467
        $region100: #{_lambda_.2} parent=95 // pred_fallthru
          _
        // Predicated region
        $region101: #{_lambda_.2} parent=95 // pred_check
          %p1469 = pneg %p428
        $region102: #{_lambda_.2} parent=95 // pred_check_branch
          %1471 = sbr.rel (%p1469) target = $region104
        $region103: #{_lambda_.2} parent=95 // pred_region
          %s1472 = sand.u32 %s413, 1
          %s1473 = scalar_lea.sflag [#allocation3], %s1472
          %s1474 = sand.u32 %s413, 1
          %s1475 = smul.addr %s1474, 32
          %s1476 = scalar_lea.vmem [#allocation2], %s1475
          %1477 = dma.done %s1473, 512
        $region104: #{_lambda_.2} parent=95 // pred_fallthru
          _
      $region96: #{_lambda_.2} parent=5 // pred_fallthru
        _
    $region6: #{_lambda_.2} parent=1 // loop_footer
      %s31 = sadd.s32 1, %s27
    $region7: #{_lambda_.2} parent=1 // loop_footer_branch
      %26 = sbr.rel target = $region3
    $region8: #{_lambda_.2} parent=1 // loop_exit
      _
    %1478 = vsyncpa [#allocation3], 1
    %s1479 = scalar_lea.sflag [#allocation3], 1
    %1480 = vsyncpa %s1479, 1

// kernel: _lambda_.3
$region0: #{_lambda_.3}
  #allocation0 [shape = 'u32[]', space=smem, size = 0x4, offset = 0x4, fixed_abs, tag = 'smem constant byte address 0x4 - core index']
  #allocation1 [shape = 'u32[144,128]{1,0:T(1,128)}', space=vmem, size = 0x12000, scoped, tag = 'internal scratch']
  %s0 = inlined_call_operand.vmem [shape: bf16[2,8,32], index: 0, kind: input, shape index: {}]
  %s1 = inlined_call_operand.vmem [shape: f32[2,1,8], index: 1, kind: input, shape index: {}]
  %s2 = inlined_call_operand.vmem [shape: f32[1,32], index: 2, kind: input, shape index: {}]
  %s3 = inlined_call_operand.vmem [shape: f32[1,32], index: 3, kind: input, shape index: {}]
  %s4 = inlined_call_operand.vmem [shape: bf16[32,96], index: 4, kind: input, shape index: {}]
  %s5 = inlined_call_operand.vmem [shape: f32[1,96], index: 5, kind: input, shape index: {}]
  %s6 = inlined_call_operand.vmem [shape: bf16[32,32], index: 6, kind: input, shape index: {}]
  %s7 = inlined_call_operand.vmem [shape: f32[1,32], index: 7, kind: input, shape index: {}]
  %s8 = inlined_call_operand.vmem [shape: f32[1,32], index: 8, kind: input, shape index: {}]
  %s9 = inlined_call_operand.vmem [shape: f32[1,32], index: 9, kind: input, shape index: {}]
  %s10 = inlined_call_operand.vmem [shape: bf16[32,64], index: 10, kind: input, shape index: {}]
  %s11 = inlined_call_operand.vmem [shape: f32[1,64], index: 11, kind: input, shape index: {}]
  %s12 = inlined_call_operand.vmem [shape: bf16[64,32], index: 12, kind: input, shape index: {}]
  %s13 = inlined_call_operand.vmem [shape: f32[1,32], index: 13, kind: input, shape index: {}]
  %s14 = inlined_call_operand.vmem [shape: f32[1,32], index: 14, kind: input, shape index: {}]
  %s15 = inlined_call_operand.vmem [shape: f32[1,32], index: 15, kind: input, shape index: {}]
  %s16 = inlined_call_operand.vmem [shape: bf16[32,32], index: 16, kind: input, shape index: {}]
  %s17 = inlined_call_operand.vmem [shape: f32[1,32], index: 17, kind: input, shape index: {}]
  %s18 = inlined_call_operand.vmem [shape: bf16[32,2], index: 18, kind: input, shape index: {}]
  %s19 = inlined_call_operand.vmem [shape: f32[1,2], index: 19, kind: input, shape index: {}]
  %s20 = inlined_call_operand.hbm [shape: bf16[2,8,32], index: 20, kind: output, shape index: {0}]
  %s21 = inlined_call_operand.hbm [shape: f32[2,4,8,8], index: 21, kind: output, shape index: {1}]
  %s22 = inlined_call_operand.hbm [shape: f32[2,1,2], index: 22, kind: output, shape index: {2}]
  %23 = xla_tuple %s20, %s21, %s22
  %s24 = sld [smem:[#allocation0]]
  $region129: #{_lambda_.3} parent=0
    _
  %s26 = ssub.s32 1, %s24
  %s27 = scalar_select 0, %s26, %s24
  $region1: #{_lambda_.3} parent=0
    #allocation2 [shape = 'u8[4096]{0}', space=vmem, size = 0x1000, scoped, tag = 'output window, operand 0']
    #allocation3 [shape = 's32[2]{0}', space=sflag, size = 0x8, scoped, tag = 'scoped memory for _lambda_.3']
    #allocation4 [shape = 'u8[32768]{0}', space=vmem, size = 0x8000, scoped, tag = 'output window, operand 1']
    #allocation5 [shape = 's32[2]{0}', space=sflag, size = 0x8, scoped, tag = 'scoped memory for _lambda_.3']
    #allocation6 [shape = 'u8[1024]{0}', space=vmem, size = 0x400, scoped, tag = 'output window, operand 2']
    %28 = vsyncpa [#allocation3], 0
    %s29 = scalar_lea.sflag [#allocation3], 1
    %30 = vsyncpa %s29, 0
    %31 = vsyncpa [#allocation5], 0
    %s32 = scalar_lea.sflag [#allocation5], 1
    %33 = vsyncpa %s32, 0
    loop: start=0, step=1, limit=4
    $region2: #{_lambda_.3} parent=1 // loop_pre_header
      _
    $region3: #{_lambda_.3} parent=1 // loop_header
      %s35 = sphi 0, %s39
      %p36 = scmp.ge.s32.totalorder %s35, 4
      %s45 = sphi 0, %s47
      %s48 = sphi 0, %s45
      %s49 = sphi 0, %s48
      %s65 = sphi 0, %s49
      %s71 = sphi 0, %s73
      %s74 = sphi 0, %s71
      %s75 = sphi 0, %s74
      %s91 = sphi 0, %s75
      %s95 = sphi 0, %s95
      %s97 = sphi 0, %s95
      %s98 = sphi 0, %s97
      %s112 = sphi 0, %s98
      %s116 = sphi 0, %s116
      %s118 = sphi 0, %s116
      %s119 = sphi 0, %s118
      %s133 = sphi 0, %s119
      %s137 = sphi 0, %s137
      %s139 = sphi 0, %s137
      %s140 = sphi 0, %s139
      %s154 = sphi 0, %s140
      %s158 = sphi 0, %s158
      %s160 = sphi 0, %s158
      %s161 = sphi 0, %s160
      %s175 = sphi 0, %s161
      %s179 = sphi 0, %s179
      %s181 = sphi 0, %s179
      %s182 = sphi 0, %s181
      %s196 = sphi 0, %s182
      %s200 = sphi 0, %s200
      %s202 = sphi 0, %s200
      %s203 = sphi 0, %s202
      %s217 = sphi 0, %s203
      %s221 = sphi 0, %s221
      %s223 = sphi 0, %s221
      %s224 = sphi 0, %s223
      %s238 = sphi 0, %s224
      %s242 = sphi 0, %s242
      %s244 = sphi 0, %s242
      %s245 = sphi 0, %s244
      %s259 = sphi 0, %s245
      %s263 = sphi 0, %s263
      %s265 = sphi 0, %s263
      %s266 = sphi 0, %s265
      %s280 = sphi 0, %s266
      %s284 = sphi 0, %s284
      %s286 = sphi 0, %s284
      %s287 = sphi 0, %s286
      %s301 = sphi 0, %s287
      %s305 = sphi 0, %s305
      %s307 = sphi 0, %s305
      %s308 = sphi 0, %s307
      %s322 = sphi 0, %s308
      %s326 = sphi 0, %s326
      %s328 = sphi 0, %s326
      %s329 = sphi 0, %s328
      %s343 = sphi 0, %s329
      %s347 = sphi 0, %s347
      %s349 = sphi 0, %s347
      %s350 = sphi 0, %s349
      %s364 = sphi 0, %s350
      %s368 = sphi 0, %s368
      %s370 = sphi 0, %s368
      %s371 = sphi 0, %s370
      %s385 = sphi 0, %s371
      %s389 = sphi 0, %s389
      %s391 = sphi 0, %s389
      %s392 = sphi 0, %s391
      %s406 = sphi 0, %s392
      %s410 = sphi 0, %s410
      %s412 = sphi 0, %s410
      %s413 = sphi 0, %s412
      %s427 = sphi 0, %s413
      %s431 = sphi 0, %s431
      %s433 = sphi 0, %s431
      %s434 = sphi 0, %s433
      %s448 = sphi 0, %s434
      %s452 = sphi 0, %s452
      %s454 = sphi 0, %s452
      %s455 = sphi 0, %s454
      %s469 = sphi 0, %s455
      %s475 = sphi 0, %s477
      %s478 = sphi 0, %s475
      %s479 = sphi 0, %s478
      %s495 = sphi 0, %s479
      %s501 = sphi 0, %s503
      %s504 = sphi 0, %s501
      %s505 = sphi 0, %s504
      %s521 = sphi 0, %s505
      %s527 = sphi 0, %s529
      %s530 = sphi 0, %s527
      %s531 = sphi 0, %s530
      %s547 = sphi 0, %s531
    $region4: #{_lambda_.3} parent=1 // loop_header_branch
      %38 = sbr.rel (%p36) target = $region8
    $region5: #{_lambda_.3} parent=1 // loop_body
      %s40 = ssub.s32 %s35, 1
      %s41 = ssub.s32 %s35, 2
      %s42 = sadd.s32 %s35, 1
      %s43 = ssub.s32 %s35, %s42
      %p44 = scmp.eq.s32.totalorder %s43, 0
      %s46 = sadd.s32 %s45, 1
      %s47 = scalar_select %p44, %s45, %s46
      %p50 = pneg %p44
      %p51 = scmp.eq.s32.totalorder %s35, 1
      %p52 = por %p50, %p51
      %p53 = scmp.ne.s32.totalorder %s45, %s48
      %p54 = scmp.eq.s32.totalorder %s35, 0
      %p55 = por %p53, %p54
      %p56 = scmp.ne.s32.totalorder %s45, %s48
      %p57 = scmp.eq.s32.totalorder %s40, 1
      %p58 = por %p56, %p57
      %p59 = scmp.ne.s32.totalorder %s48, %s49
      %p60 = scmp.eq.s32.totalorder %s40, 0
      %p61 = por %p59, %p60
      %p62 = scmp.ne.s32.totalorder %s48, %s49
      %p63 = scmp.eq.s32.totalorder %s41, 1
      %p64 = por %p62, %p63
      %p66 = scmp.ne.s32.totalorder %s49, %s65
      %p67 = scmp.eq.s32.totalorder %s41, 0
      %p68 = por %p66, %p67
      %s69 = ssub.s32 %s35, %s42
      %p70 = scmp.eq.s32.totalorder %s69, 0
      %s72 = sadd.s32 %s71, 1
      %s73 = scalar_select %p70, %s71, %s72
      %p76 = pneg %p70
      %p77 = scmp.eq.s32.totalorder %s35, 1
      %p78 = por %p76, %p77
      %p79 = scmp.ne.s32.totalorder %s71, %s74
      %p80 = scmp.eq.s32.totalorder %s35, 0
      %p81 = por %p79, %p80
      %p82 = scmp.ne.s32.totalorder %s71, %s74
      %p83 = scmp.eq.s32.totalorder %s40, 1
      %p84 = por %p82, %p83
      %p85 = scmp.ne.s32.totalorder %s74, %s75
      %p86 = scmp.eq.s32.totalorder %s40, 0
      %p87 = por %p85, %p86
      %p88 = scmp.ne.s32.totalorder %s74, %s75
      %p89 = scmp.eq.s32.totalorder %s41, 1
      %p90 = por %p88, %p89
      %p92 = scmp.ne.s32.totalorder %s75, %s91
      %p93 = scmp.eq.s32.totalorder %s41, 0
      %p94 = por %p92, %p93
      %s96 = sadd.s32 %s95, 1
      %p99 = scmp.eq.s32.totalorder %s35, 1
      %p100 = scmp.ne.s32.totalorder %s95, %s97
      %p101 = scmp.eq.s32.totalorder %s35, 0
      %p102 = por %p100, %p101
      %p103 = scmp.ne.s32.totalorder %s95, %s97
      %p104 = scmp.eq.s32.totalorder %s40, 1
      %p105 = por %p103, %p104
      %p106 = scmp.ne.s32.totalorder %s97, %s98
      %p107 = scmp.eq.s32.totalorder %s40, 0
      %p108 = por %p106, %p107
      %p109 = scmp.ne.s32.totalorder %s97, %s98
      %p110 = scmp.eq.s32.totalorder %s41, 1
      %p111 = por %p109, %p110
      %p113 = scmp.ne.s32.totalorder %s98, %s112
      %p114 = scmp.eq.s32.totalorder %s41, 0
      %p115 = por %p113, %p114
      %s117 = sadd.s32 %s116, 1
      %p120 = scmp.eq.s32.totalorder %s35, 1
      %p121 = scmp.ne.s32.totalorder %s116, %s118
      %p122 = scmp.eq.s32.totalorder %s35, 0
      %p123 = por %p121, %p122
      %p124 = scmp.ne.s32.totalorder %s116, %s118
      %p125 = scmp.eq.s32.totalorder %s40, 1
      %p126 = por %p124, %p125
      %p127 = scmp.ne.s32.totalorder %s118, %s119
      %p128 = scmp.eq.s32.totalorder %s40, 0
      %p129 = por %p127, %p128
      %p130 = scmp.ne.s32.totalorder %s118, %s119
      %p131 = scmp.eq.s32.totalorder %s41, 1
      %p132 = por %p130, %p131
      %p134 = scmp.ne.s32.totalorder %s119, %s133
      %p135 = scmp.eq.s32.totalorder %s41, 0
      %p136 = por %p134, %p135
      %s138 = sadd.s32 %s137, 1
      %p141 = scmp.eq.s32.totalorder %s35, 1
      %p142 = scmp.ne.s32.totalorder %s137, %s139
      %p143 = scmp.eq.s32.totalorder %s35, 0
      %p144 = por %p142, %p143
      %p145 = scmp.ne.s32.totalorder %s137, %s139
      %p146 = scmp.eq.s32.totalorder %s40, 1
      %p147 = por %p145, %p146
      %p148 = scmp.ne.s32.totalorder %s139, %s140
      %p149 = scmp.eq.s32.totalorder %s40, 0
      %p150 = por %p148, %p149
      %p151 = scmp.ne.s32.totalorder %s139, %s140
      %p152 = scmp.eq.s32.totalorder %s41, 1
      %p153 = por %p151, %p152
      %p155 = scmp.ne.s32.totalorder %s140, %s154
      %p156 = scmp.eq.s32.totalorder %s41, 0
      %p157 = por %p155, %p156
      %s159 = sadd.s32 %s158, 1
      %p162 = scmp.eq.s32.totalorder %s35, 1
      %p163 = scmp.ne.s32.totalorder %s158, %s160
      %p164 = scmp.eq.s32.totalorder %s35, 0
      %p165 = por %p163, %p164
      %p166 = scmp.ne.s32.totalorder %s158, %s160
      %p167 = scmp.eq.s32.totalorder %s40, 1
      %p168 = por %p166, %p167
      %p169 = scmp.ne.s32.totalorder %s160, %s161
      %p170 = scmp.eq.s32.totalorder %s40, 0
      %p171 = por %p169, %p170
      %p172 = scmp.ne.s32.totalorder %s160, %s161
      %p173 = scmp.eq.s32.totalorder %s41, 1
      %p174 = por %p172, %p173
      %p176 = scmp.ne.s32.totalorder %s161, %s175
      %p177 = scmp.eq.s32.totalorder %s41, 0
      %p178 = por %p176, %p177
      %s180 = sadd.s32 %s179, 1
      %p183 = scmp.eq.s32.totalorder %s35, 1
      %p184 = scmp.ne.s32.totalorder %s179, %s181
      %p185 = scmp.eq.s32.totalorder %s35, 0
      %p186 = por %p184, %p185
      %p187 = scmp.ne.s32.totalorder %s179, %s181
      %p188 = scmp.eq.s32.totalorder %s40, 1
      %p189 = por %p187, %p188
      %p190 = scmp.ne.s32.totalorder %s181, %s182
      %p191 = scmp.eq.s32.totalorder %s40, 0
      %p192 = por %p190, %p191
      %p193 = scmp.ne.s32.totalorder %s181, %s182
      %p194 = scmp.eq.s32.totalorder %s41, 1
      %p195 = por %p193, %p194
      %p197 = scmp.ne.s32.totalorder %s182, %s196
      %p198 = scmp.eq.s32.totalorder %s41, 0
      %p199 = por %p197, %p198
      %s201 = sadd.s32 %s200, 1
      %p204 = scmp.eq.s32.totalorder %s35, 1
      %p205 = scmp.ne.s32.totalorder %s200, %s202
      %p206 = scmp.eq.s32.totalorder %s35, 0
      %p207 = por %p205, %p206
      %p208 = scmp.ne.s32.totalorder %s200, %s202
      %p209 = scmp.eq.s32.totalorder %s40, 1
      %p210 = por %p208, %p209
      %p211 = scmp.ne.s32.totalorder %s202, %s203
      %p212 = scmp.eq.s32.totalorder %s40, 0
      %p213 = por %p211, %p212
      %p214 = scmp.ne.s32.totalorder %s202, %s203
      %p215 = scmp.eq.s32.totalorder %s41, 1
      %p216 = por %p214, %p215
      %p218 = scmp.ne.s32.totalorder %s203, %s217
      %p219 = scmp.eq.s32.totalorder %s41, 0
      %p220 = por %p218, %p219
      %s222 = sadd.s32 %s221, 1
      %p225 = scmp.eq.s32.totalorder %s35, 1
      %p226 = scmp.ne.s32.totalorder %s221, %s223
      %p227 = scmp.eq.s32.totalorder %s35, 0
      %p228 = por %p226, %p227
      %p229 = scmp.ne.s32.totalorder %s221, %s223
      %p230 = scmp.eq.s32.totalorder %s40, 1
      %p231 = por %p229, %p230
      %p232 = scmp.ne.s32.totalorder %s223, %s224
      %p233 = scmp.eq.s32.totalorder %s40, 0
      %p234 = por %p232, %p233
      %p235 = scmp.ne.s32.totalorder %s223, %s224
      %p236 = scmp.eq.s32.totalorder %s41, 1
      %p237 = por %p235, %p236
      %p239 = scmp.ne.s32.totalorder %s224, %s238
      %p240 = scmp.eq.s32.totalorder %s41, 0
      %p241 = por %p239, %p240
      %s243 = sadd.s32 %s242, 1
      %p246 = scmp.eq.s32.totalorder %s35, 1
      %p247 = scmp.ne.s32.totalorder %s242, %s244
      %p248 = scmp.eq.s32.totalorder %s35, 0
      %p249 = por %p247, %p248
      %p250 = scmp.ne.s32.totalorder %s242, %s244
      %p251 = scmp.eq.s32.totalorder %s40, 1
      %p252 = por %p250, %p251
      %p253 = scmp.ne.s32.totalorder %s244, %s245
      %p254 = scmp.eq.s32.totalorder %s40, 0
      %p255 = por %p253, %p254
      %p256 = scmp.ne.s32.totalorder %s244, %s245
      %p257 = scmp.eq.s32.totalorder %s41, 1
      %p258 = por %p256, %p257
      %p260 = scmp.ne.s32.totalorder %s245, %s259
      %p261 = scmp.eq.s32.totalorder %s41, 0
      %p262 = por %p260, %p261
      %s264 = sadd.s32 %s263, 1
      %p267 = scmp.eq.s32.totalorder %s35, 1
      %p268 = scmp.ne.s32.totalorder %s263, %s265
      %p269 = scmp.eq.s32.totalorder %s35, 0
      %p270 = por %p268, %p269
      %p271 = scmp.ne.s32.totalorder %s263, %s265
      %p272 = scmp.eq.s32.totalorder %s40, 1
      %p273 = por %p271, %p272
      %p274 = scmp.ne.s32.totalorder %s265, %s266
      %p275 = scmp.eq.s32.totalorder %s40, 0
      %p276 = por %p274, %p275
      %p277 = scmp.ne.s32.totalorder %s265, %s266
      %p278 = scmp.eq.s32.totalorder %s41, 1
      %p279 = por %p277, %p278
      %p281 = scmp.ne.s32.totalorder %s266, %s280
      %p282 = scmp.eq.s32.totalorder %s41, 0
      %p283 = por %p281, %p282
      %s285 = sadd.s32 %s284, 1
      %p288 = scmp.eq.s32.totalorder %s35, 1
      %p289 = scmp.ne.s32.totalorder %s284, %s286
      %p290 = scmp.eq.s32.totalorder %s35, 0
      %p291 = por %p289, %p290
      %p292 = scmp.ne.s32.totalorder %s284, %s286
      %p293 = scmp.eq.s32.totalorder %s40, 1
      %p294 = por %p292, %p293
      %p295 = scmp.ne.s32.totalorder %s286, %s287
      %p296 = scmp.eq.s32.totalorder %s40, 0
      %p297 = por %p295, %p296
      %p298 = scmp.ne.s32.totalorder %s286, %s287
      %p299 = scmp.eq.s32.totalorder %s41, 1
      %p300 = por %p298, %p299
      %p302 = scmp.ne.s32.totalorder %s287, %s301
      %p303 = scmp.eq.s32.totalorder %s41, 0
      %p304 = por %p302, %p303
      %s306 = sadd.s32 %s305, 1
      %p309 = scmp.eq.s32.totalorder %s35, 1
      %p310 = scmp.ne.s32.totalorder %s305, %s307
      %p311 = scmp.eq.s32.totalorder %s35, 0
      %p312 = por %p310, %p311
      %p313 = scmp.ne.s32.totalorder %s305, %s307
      %p314 = scmp.eq.s32.totalorder %s40, 1
      %p315 = por %p313, %p314
      %p316 = scmp.ne.s32.totalorder %s307, %s308
      %p317 = scmp.eq.s32.totalorder %s40, 0
      %p318 = por %p316, %p317
      %p319 = scmp.ne.s32.totalorder %s307, %s308
      %p320 = scmp.eq.s32.totalorder %s41, 1
      %p321 = por %p319, %p320
      %p323 = scmp.ne.s32.totalorder %s308, %s322
      %p324 = scmp.eq.s32.totalorder %s41, 0
      %p325 = por %p323, %p324
      %s327 = sadd.s32 %s326, 1
      %p330 = scmp.eq.s32.totalorder %s35, 1
      %p331 = scmp.ne.s32.totalorder %s326, %s328
      %p332 = scmp.eq.s32.totalorder %s35, 0
      %p333 = por %p331, %p332
      %p334 = scmp.ne.s32.totalorder %s326, %s328
      %p335 = scmp.eq.s32.totalorder %s40, 1
      %p336 = por %p334, %p335
      %p337 = scmp.ne.s32.totalorder %s328, %s329
      %p338 = scmp.eq.s32.totalorder %s40, 0
      %p339 = por %p337, %p338
      %p340 = scmp.ne.s32.totalorder %s328, %s329
      %p341 = scmp.eq.s32.totalorder %s41, 1
      %p342 = por %p340, %p341
      %p344 = scmp.ne.s32.totalorder %s329, %s343
      %p345 = scmp.eq.s32.totalorder %s41, 0
      %p346 = por %p344, %p345
      %s348 = sadd.s32 %s347, 1
      %p351 = scmp.eq.s32.totalorder %s35, 1
      %p352 = scmp.ne.s32.totalorder %s347, %s349
      %p353 = scmp.eq.s32.totalorder %s35, 0
      %p354 = por %p352, %p353
      %p355 = scmp.ne.s32.totalorder %s347, %s349
      %p356 = scmp.eq.s32.totalorder %s40, 1
      %p357 = por %p355, %p356
      %p358 = scmp.ne.s32.totalorder %s349, %s350
      %p359 = scmp.eq.s32.totalorder %s40, 0
      %p360 = por %p358, %p359
      %p361 = scmp.ne.s32.totalorder %s349, %s350
      %p362 = scmp.eq.s32.totalorder %s41, 1
      %p363 = por %p361, %p362
      %p365 = scmp.ne.s32.totalorder %s350, %s364
      %p366 = scmp.eq.s32.totalorder %s41, 0
      %p367 = por %p365, %p366
      %s369 = sadd.s32 %s368, 1
      %p372 = scmp.eq.s32.totalorder %s35, 1
      %p373 = scmp.ne.s32.totalorder %s368, %s370
      %p374 = scmp.eq.s32.totalorder %s35, 0
      %p375 = por %p373, %p374
      %p376 = scmp.ne.s32.totalorder %s368, %s370
      %p377 = scmp.eq.s32.totalorder %s40, 1
      %p378 = por %p376, %p377
      %p379 = scmp.ne.s32.totalorder %s370, %s371
      %p380 = scmp.eq.s32.totalorder %s40, 0
      %p381 = por %p379, %p380
      %p382 = scmp.ne.s32.totalorder %s370, %s371
      %p383 = scmp.eq.s32.totalorder %s41, 1
      %p384 = por %p382, %p383
      %p386 = scmp.ne.s32.totalorder %s371, %s385
      %p387 = scmp.eq.s32.totalorder %s41, 0
      %p388 = por %p386, %p387
      %s390 = sadd.s32 %s389, 1
      %p393 = scmp.eq.s32.totalorder %s35, 1
      %p394 = scmp.ne.s32.totalorder %s389, %s391
      %p395 = scmp.eq.s32.totalorder %s35, 0
      %p396 = por %p394, %p395
      %p397 = scmp.ne.s32.totalorder %s389, %s391
      %p398 = scmp.eq.s32.totalorder %s40, 1
      %p399 = por %p397, %p398
      %p400 = scmp.ne.s32.totalorder %s391, %s392
      %p401 = scmp.eq.s32.totalorder %s40, 0
      %p402 = por %p400, %p401
      %p403 = scmp.ne.s32.totalorder %s391, %s392
      %p404 = scmp.eq.s32.totalorder %s41, 1
      %p405 = por %p403, %p404
      %p407 = scmp.ne.s32.totalorder %s392, %s406
      %p408 = scmp.eq.s32.totalorder %s41, 0
      %p409 = por %p407, %p408
      %s411 = sadd.s32 %s410, 1
      %p414 = scmp.eq.s32.totalorder %s35, 1
      %p415 = scmp.ne.s32.totalorder %s410, %s412
      %p416 = scmp.eq.s32.totalorder %s35, 0
      %p417 = por %p415, %p416
      %p418 = scmp.ne.s32.totalorder %s410, %s412
      %p419 = scmp.eq.s32.totalorder %s40, 1
      %p420 = por %p418, %p419
      %p421 = scmp.ne.s32.totalorder %s412, %s413
      %p422 = scmp.eq.s32.totalorder %s40, 0
      %p423 = por %p421, %p422
      %p424 = scmp.ne.s32.totalorder %s412, %s413
      %p425 = scmp.eq.s32.totalorder %s41, 1
      %p426 = por %p424, %p425
      %p428 = scmp.ne.s32.totalorder %s413, %s427
      %p429 = scmp.eq.s32.totalorder %s41, 0
      %p430 = por %p428, %p429
      %s432 = sadd.s32 %s431, 1
      %p435 = scmp.eq.s32.totalorder %s35, 1
      %p436 = scmp.ne.s32.totalorder %s431, %s433
      %p437 = scmp.eq.s32.totalorder %s35, 0
      %p438 = por %p436, %p437
      %p439 = scmp.ne.s32.totalorder %s431, %s433
      %p440 = scmp.eq.s32.totalorder %s40, 1
      %p441 = por %p439, %p440
      %p442 = scmp.ne.s32.totalorder %s433, %s434
      %p443 = scmp.eq.s32.totalorder %s40, 0
      %p444 = por %p442, %p443
      %p445 = scmp.ne.s32.totalorder %s433, %s434
      %p446 = scmp.eq.s32.totalorder %s41, 1
      %p447 = por %p445, %p446
      %p449 = scmp.ne.s32.totalorder %s434, %s448
      %p450 = scmp.eq.s32.totalorder %s41, 0
      %p451 = por %p449, %p450
      %s453 = sadd.s32 %s452, 1
      %p456 = scmp.eq.s32.totalorder %s35, 1
      %p457 = scmp.ne.s32.totalorder %s452, %s454
      %p458 = scmp.eq.s32.totalorder %s35, 0
      %p459 = por %p457, %p458
      %p460 = scmp.ne.s32.totalorder %s452, %s454
      %p461 = scmp.eq.s32.totalorder %s40, 1
      %p462 = por %p460, %p461
      %p463 = scmp.ne.s32.totalorder %s454, %s455
      %p464 = scmp.eq.s32.totalorder %s40, 0
      %p465 = por %p463, %p464
      %p466 = scmp.ne.s32.totalorder %s454, %s455
      %p467 = scmp.eq.s32.totalorder %s41, 1
      %p468 = por %p466, %p467
      %p470 = scmp.ne.s32.totalorder %s455, %s469
      %p471 = scmp.eq.s32.totalorder %s41, 0
      %p472 = por %p470, %p471
      %s473 = ssub.s32 %s35, %s42
      %p474 = scmp.eq.s32.totalorder %s473, 0
      %s476 = sadd.s32 %s475, 1
      %s477 = scalar_select %p474, %s475, %s476
      %p480 = pneg %p474
      %p481 = scmp.eq.s32.totalorder %s35, 1
      %p482 = por %p480, %p481
      %p483 = scmp.ne.s32.totalorder %s475, %s478
      %p484 = scmp.eq.s32.totalorder %s35, 0
      %p485 = por %p483, %p484
      %p486 = scmp.ne.s32.totalorder %s475, %s478
      %p487 = scmp.eq.s32.totalorder %s40, 1
      %p488 = por %p486, %p487
      %p489 = scmp.ne.s32.totalorder %s478, %s479
      %p490 = scmp.eq.s32.totalorder %s40, 0
      %p491 = por %p489, %p490
      %p492 = scmp.ne.s32.totalorder %s478, %s479
      %p493 = scmp.eq.s32.totalorder %s41, 1
      %p494 = por %p492, %p493
      %p496 = scmp.ne.s32.totalorder %s479, %s495
      %p497 = scmp.eq.s32.totalorder %s41, 0
      %p498 = por %p496, %p497
      %s499 = ssub.s32 %s35, %s42
      %p500 = scmp.eq.s32.totalorder %s499, 0
      %s502 = sadd.s32 %s501, 1
      %s503 = scalar_select %p500, %s501, %s502
      %p506 = pneg %p500
      %p507 = scmp.eq.s32.totalorder %s35, 1
      %p508 = por %p506, %p507
      %p509 = scmp.ne.s32.totalorder %s501, %s504
      %p510 = scmp.eq.s32.totalorder %s35, 0
      %p511 = por %p509, %p510
      %p512 = scmp.ne.s32.totalorder %s501, %s504
      %p513 = scmp.eq.s32.totalorder %s40, 1
      %p514 = por %p512, %p513
      %p515 = scmp.ne.s32.totalorder %s504, %s505
      %p516 = scmp.eq.s32.totalorder %s40, 0
      %p517 = por %p515, %p516
      %p518 = scmp.ne.s32.totalorder %s504, %s505
      %p519 = scmp.eq.s32.totalorder %s41, 1
      %p520 = por %p518, %p519
      %p522 = scmp.ne.s32.totalorder %s505, %s521
      %p523 = scmp.eq.s32.totalorder %s41, 0
      %p524 = por %p522, %p523
      %s525 = ssub.s32 %s35, %s42
      %p526 = scmp.eq.s32.totalorder %s525, 0
      %s528 = sadd.s32 %s527, 1
      %s529 = scalar_select %p526, %s527, %s528
      %p532 = pneg %p526
      %p533 = scmp.eq.s32.totalorder %s35, 1
      %p534 = por %p532, %p533
      %p535 = scmp.ne.s32.totalorder %s527, %s530
      %p536 = scmp.eq.s32.totalorder %s35, 0
      %p537 = por %p535, %p536
      %p538 = scmp.ne.s32.totalorder %s527, %s530
      %p539 = scmp.eq.s32.totalorder %s40, 1
      %p540 = por %p538, %p539
      %p541 = scmp.ne.s32.totalorder %s530, %s531
      %p542 = scmp.eq.s32.totalorder %s40, 0
      %p543 = por %p541, %p542
      %p544 = scmp.ne.s32.totalorder %s530, %s531
      %p545 = scmp.eq.s32.totalorder %s41, 1
      %p546 = por %p544, %p545
      %p548 = scmp.ne.s32.totalorder %s531, %s547
      %p549 = scmp.eq.s32.totalorder %s41, 0
      %p550 = por %p548, %p549
      %p551 = scmp.le.s32.totalorder 1, %s35
      %p552 = scmp.lt.s32.totalorder %s35, 3
      %p553 = pnand %p551, %p552
      %p554 = pneg %p553
      // Predicated region
      $region9: #{_lambda_.3} parent=5 // pred_check
        _
      $region10: #{_lambda_.3} parent=5 // pred_check_branch
        %556 = sbr.rel (%p553) target = $region12
      $region11: #{_lambda_.3} parent=5 // pred_region
        %s557 = ssub.s32 %s35, 1
        // Predicated region
        $region13: #{_lambda_.3} parent=11 // pred_check
          %p558 = pneg %p108
        $region14: #{_lambda_.3} parent=11 // pred_check_branch
          %560 = sbr.rel (%p558) target = $region16
        $region15: #{_lambda_.3} parent=11 // pred_region
          _
        $region16: #{_lambda_.3} parent=11 // pred_fallthru
          _
        // Predicated region
        $region17: #{_lambda_.3} parent=11 // pred_check
          %p561 = pneg %p129
        $region18: #{_lambda_.3} parent=11 // pred_check_branch
          %563 = sbr.rel (%p561) target = $region20
        $region19: #{_lambda_.3} parent=11 // pred_region
          _
        $region20: #{_lambda_.3} parent=11 // pred_fallthru
          _
        // Predicated region
        $region21: #{_lambda_.3} parent=11 // pred_check
          %p564 = pneg %p150
        $region22: #{_lambda_.3} parent=11 // pred_check_branch
          %566 = sbr.rel (%p564) target = $region24
        $region23: #{_lambda_.3} parent=11 // pred_region
          _
        $region24: #{_lambda_.3} parent=11 // pred_fallthru
          _
        // Predicated region
        $region25: #{_lambda_.3} parent=11 // pred_check
          %p567 = pneg %p171
        $region26: #{_lambda_.3} parent=11 // pred_check_branch
          %569 = sbr.rel (%p567) target = $region28
        $region27: #{_lambda_.3} parent=11 // pred_region
          _
        $region28: #{_lambda_.3} parent=11 // pred_fallthru
          _
        // Predicated region
        $region29: #{_lambda_.3} parent=11 // pred_check
          %p570 = pneg %p192
        $region30: #{_lambda_.3} parent=11 // pred_check_branch
          %572 = sbr.rel (%p570) target = $region32
        $region31: #{_lambda_.3} parent=11 // pred_region
          _
        $region32: #{_lambda_.3} parent=11 // pred_fallthru
          _
        // Predicated region
        $region33: #{_lambda_.3} parent=11 // pred_check
          %p573 = pneg %p213
        $region34: #{_lambda_.3} parent=11 // pred_check_branch
          %575 = sbr.rel (%p573) target = $region36
        $region35: #{_lambda_.3} parent=11 // pred_region
          _
        $region36: #{_lambda_.3} parent=11 // pred_fallthru
          _
        // Predicated region
        $region37: #{_lambda_.3} parent=11 // pred_check
          %p576 = pneg %p234
        $region38: #{_lambda_.3} parent=11 // pred_check_branch
          %578 = sbr.rel (%p576) target = $region40
        $region39: #{_lambda_.3} parent=11 // pred_region
          _
        $region40: #{_lambda_.3} parent=11 // pred_fallthru
          _
        // Predicated region
        $region41: #{_lambda_.3} parent=11 // pred_check
          %p579 = pneg %p255
        $region42: #{_lambda_.3} parent=11 // pred_check_branch
          %581 = sbr.rel (%p579) target = $region44
        $region43: #{_lambda_.3} parent=11 // pred_region
          _
        $region44: #{_lambda_.3} parent=11 // pred_fallthru
          _
        // Predicated region
        $region45: #{_lambda_.3} parent=11 // pred_check
          %p582 = pneg %p276
        $region46: #{_lambda_.3} parent=11 // pred_check_branch
          %584 = sbr.rel (%p582) target = $region48
        $region47: #{_lambda_.3} parent=11 // pred_region
          _
        $region48: #{_lambda_.3} parent=11 // pred_fallthru
          _
        // Predicated region
        $region49: #{_lambda_.3} parent=11 // pred_check
          %p585 = pneg %p297
        $region50: #{_lambda_.3} parent=11 // pred_check_branch
          %587 = sbr.rel (%p585) target = $region52
        $region51: #{_lambda_.3} parent=11 // pred_region
          _
        $region52: #{_lambda_.3} parent=11 // pred_fallthru
          _
        // Predicated region
        $region53: #{_lambda_.3} parent=11 // pred_check
          %p588 = pneg %p318
        $region54: #{_lambda_.3} parent=11 // pred_check_branch
          %590 = sbr.rel (%p588) target = $region56
        $region55: #{_lambda_.3} parent=11 // pred_region
          _
        $region56: #{_lambda_.3} parent=11 // pred_fallthru
          _
        // Predicated region
        $region57: #{_lambda_.3} parent=11 // pred_check
          %p591 = pneg %p339
        $region58: #{_lambda_.3} parent=11 // pred_check_branch
          %593 = sbr.rel (%p591) target = $region60
        $region59: #{_lambda_.3} parent=11 // pred_region
          _
        $region60: #{_lambda_.3} parent=11 // pred_fallthru
          _
        // Predicated region
        $region61: #{_lambda_.3} parent=11 // pred_check
          %p594 = pneg %p360
        $region62: #{_lambda_.3} parent=11 // pred_check_branch
          %596 = sbr.rel (%p594) target = $region64
        $region63: #{_lambda_.3} parent=11 // pred_region
          _
        $region64: #{_lambda_.3} parent=11 // pred_fallthru
          _
        // Predicated region
        $region65: #{_lambda_.3} parent=11 // pred_check
          %p597 = pneg %p381
        $region66: #{_lambda_.3} parent=11 // pred_check_branch
          %599 = sbr.rel (%p597) target = $region68
        $region67: #{_lambda_.3} parent=11 // pred_region
          _
        $region68: #{_lambda_.3} parent=11 // pred_fallthru
          _
        // Predicated region
        $region69: #{_lambda_.3} parent=11 // pred_check
          %p600 = pneg %p402
        $region70: #{_lambda_.3} parent=11 // pred_check_branch
          %602 = sbr.rel (%p600) target = $region72
        $region71: #{_lambda_.3} parent=11 // pred_region
          _
        $region72: #{_lambda_.3} parent=11 // pred_fallthru
          _
        // Predicated region
        $region73: #{_lambda_.3} parent=11 // pred_check
          %p603 = pneg %p423
        $region74: #{_lambda_.3} parent=11 // pred_check_branch
          %605 = sbr.rel (%p603) target = $region76
        $region75: #{_lambda_.3} parent=11 // pred_region
          _
        $region76: #{_lambda_.3} parent=11 // pred_fallthru
          _
        // Predicated region
        $region77: #{_lambda_.3} parent=11 // pred_check
          %p606 = pneg %p444
        $region78: #{_lambda_.3} parent=11 // pred_check_branch
          %608 = sbr.rel (%p606) target = $region80
        $region79: #{_lambda_.3} parent=11 // pred_region
          _
        $region80: #{_lambda_.3} parent=11 // pred_fallthru
          _
        // Predicated region
        $region81: #{_lambda_.3} parent=11 // pred_check
          %p609 = pneg %p465
        $region82: #{_lambda_.3} parent=11 // pred_check_branch
          %611 = sbr.rel (%p609) target = $region84
        $region83: #{_lambda_.3} parent=11 // pred_region
          _
        $region84: #{_lambda_.3} parent=11 // pred_fallthru
          _
      $region12: #{_lambda_.3} parent=5 // pred_fallthru
        _
      %p612 = scmp.lt.s32.totalorder %s35, 2
      // Predicated region
      $region85: #{_lambda_.3} parent=5 // pred_check
        %p613 = pneg %p612
      $region86: #{_lambda_.3} parent=5 // pred_check_branch
        %615 = sbr.rel (%p613) target = $region88
      $region87: #{_lambda_.3} parent=5 // pred_region
        // Predicated region
        $region89: #{_lambda_.3} parent=87 // pred_check
          %p616 = pneg %p55
        $region90: #{_lambda_.3} parent=87 // pred_check_branch
          %618 = sbr.rel (%p616) target = $region92
        $region91: #{_lambda_.3} parent=87 // pred_region
          %p619 = scmp.lt.s32.totalorder %s35, 1
          %s620 = scalar_select %p619, %s35, 1
          %s621 = smul.addr %s620, 4
          %s622 = scalar_lea.vmem %s0, %s621
        $region92: #{_lambda_.3} parent=87 // pred_fallthru
          _
        // Predicated region
        $region93: #{_lambda_.3} parent=87 // pred_check
          %p623 = pneg %p81
        $region94: #{_lambda_.3} parent=87 // pred_check_branch
          %625 = sbr.rel (%p623) target = $region96
        $region95: #{_lambda_.3} parent=87 // pred_region
          %p626 = scmp.lt.s32.totalorder %s35, 1
          %s627 = scalar_select %p626, %s35, 1
          %s628 = scalar_lea.vmem %s1, %s627
        $region96: #{_lambda_.3} parent=87 // pred_fallthru
          _
      $region88: #{_lambda_.3} parent=5 // pred_fallthru
        _
      %p629 = scmp.le.s32.totalorder 1, %s35
      %p630 = scmp.lt.s32.totalorder %s35, 3
      %p631 = pnand %p629, %p630
      %p632 = pneg %p631
      // Predicated region
      $region97: #{_lambda_.3} parent=5 // pred_check
        _
      $region98: #{_lambda_.3} parent=5 // pred_check_branch
        %634 = sbr.rel (%p631) target = $region100
      $region99: #{_lambda_.3} parent=5 // pred_region
        %s635 = ssub.s32 %s35, 1
        %p636 = scmp.lt.s32.totalorder %s40, 1
        %s637 = scalar_select %p636, %s40, 1
        %s638 = smul.addr %s637, 4
        %s639 = scalar_lea.vmem %s0, %s638
        %p640 = pneg %p61
        %p641 = pneg %p58
        %p642 = scmp.lt.s32.totalorder %s40, 1
        %s643 = scalar_select %p642, %s40, 1
        %s644 = scalar_lea.vmem %s1, %s643
        %p645 = pneg %p87
        %p646 = pneg %p84
        %p647 = pneg %p108
        %p648 = pneg %p105
        %p649 = pneg %p129
        %p650 = pneg %p126
        %p651 = pneg %p150
        %p652 = pneg %p147
        %p653 = pneg %p171
        %p654 = pneg %p168
        %p655 = pneg %p192
        %p656 = pneg %p189
        %p657 = pneg %p213
        %p658 = pneg %p210
        %p659 = pneg %p234
        %p660 = pneg %p231
        %p661 = pneg %p255
        %p662 = pneg %p252
        %p663 = pneg %p276
        %p664 = pneg %p273
        %p665 = pneg %p297
        %p666 = pneg %p294
        %p667 = pneg %p318
        %p668 = pneg %p315
        %p669 = pneg %p339
        %p670 = pneg %p336
        %p671 = pneg %p360
        %p672 = pneg %p357
        %p673 = pneg %p381
        %p674 = pneg %p378
        %p675 = pneg %p402
        %p676 = pneg %p399
        %p677 = pneg %p423
        %p678 = pneg %p420
        %p679 = pneg %p444
        %p680 = pneg %p441
        %p681 = pneg %p465
        %p682 = pneg %p462
        %p683 = pneg %p491
        %p684 = pneg %p488
        %s685 = sand.u32 %s478, 1
        %s686 = scalar_lea.sflag [#allocation3], %s685
        %s687 = sand.u32 %s478, 1
        %s688 = smul.addr %s687, 4
        %s689 = scalar_lea.vmem [#allocation2], %s688
        %p690 = pneg %p517
        %p691 = pneg %p514
        %s692 = sand.u32 %s40, 1
        %s693 = scalar_lea.sflag [#allocation5], %s692
        %s694 = sand.u32 %s504, 1
        %s695 = smul.addr %s694, 32
        %s696 = scalar_lea.vmem [#allocation4], %s695
        %p697 = pneg %p543
        %p698 = pneg %p540
        %s699 = sand.u32 %s40, 1
        %s700 = scalar_lea.sflag [#allocation5], %s699
        %s701 = sand.u32 %s530, 1
        %s702 = scalar_lea.vmem [#allocation6], %s701
        %p703 = scmp.lt.s32.totalorder %s40, 1
        %s704 = scalar_select %p703, %s40, 1
        %s705 = smul.addr %s704, 4
        %s706 = scalar_lea.vmem %s0, %s705
        %p707 = scmp.lt.s32.totalorder %s40, 1
        %s708 = scalar_select %p707, %s40, 1
        %s709 = scalar_lea.vmem %s1, %s708
        %v711 = vld [vmem:[%s706] sm:$0xf]
        %v712 = vunpack.c.l.bf16 %v711
        %v713 = vld [vmem:[%s4] sm:$0xf]
        %v714 = vld [vmem:[%s4 + $0x4] sm:$0xf]
        %v715 = vld [vmem:[%s4 + $0x8] sm:$0xf]
        %v716 = vld [vmem:[%s4 + $0xc] sm:$0xf]
        %v717 = vld [vmem:[%s5] sm:$0x1]
        %v719 = vlaneseq
        %v720 = vshrl.u32 %v719, 7
        %v721 = vsub.s32 0, %v720
        %v722 = vrot.slane %v717, %v721
        %v728 = vunpack.c.l.b16 %v713
        %v729 = vunpack.c.l.b16 %v714
        %v730 = vunpack.c.l.b16 %v715
        %v731 = vunpack.c.l.b16 %v716
        %v732 = vpack.c.b16 %v729, %v728
        %v733 = vpack.c.b16 %v731, %v730
        %vm736 = vcmask 261120
        %v738 = vsel %vm736, %v711, 0
        %740 = vmatprep.subr.bf16.mxu0 0
        %741 = vmatpush1.bf16.msra.mxu0 %v732
        %742 = vmatprep.subr.bf16.mxu0 0
        %743 = vmatpush1.bf16.msra.mxu0 %v733
        %744 = vmatprep.subr.bf16.mxu0 0
        %745 = vmatpush1.bf16.msra.mxu0 0
        %746 = vmatprep.subr.bf16.mxu0 0
        %747 = vmatpush1.bf16.msra.mxu0 0
        %748 = vmatprep.subr.bf16.mxu0 0
        %749 = vmatpush1.bf16.msra.mxu0 0
        %750 = vmatprep.subr.bf16.mxu0 0
        %751 = vmatpush1.bf16.msra.mxu0 0
        %752 = vmatprep.subr.bf16.mxu0 0
        %753 = vmatpush1.bf16.msra.mxu0 0
        %754 = vmatprep.subr.bf16.mxu0 0
        %755 = vmatpush1.bf16.msra.mxu0 0
        %756 = vmatprep.subr.bf16.mxu0 0
        %757 = vmatpush1.bf16.msra.mxu0 0
        %758 = vmatprep.subr.bf16.mxu0 0
        %759 = vmatpush1.bf16.msra.mxu0 0
        %760 = vmatprep.subr.bf16.mxu0 0
        %761 = vmatpush1.bf16.msra.mxu0 0
        %762 = vmatprep.subr.bf16.mxu0 0
        %763 = vmatpush1.bf16.msra.mxu0 0
        %764 = vmatprep.subr.bf16.mxu0 0
        %765 = vmatpush1.bf16.msra.mxu0 0
        %766 = vmatprep.subr.bf16.mxu0 0
        %767 = vmatpush1.bf16.msra.mxu0 0
        %768 = vmatprep.subr.bf16.mxu0 0
        %769 = vmatpush1.bf16.msra.mxu0 0
        %770 = vmatprep.subr.bf16.mxu0 0
        %771 = vmatpush1.bf16.msra.mxu0 0
        %772 = vmatprep.mubr.bf16.mxu0 0
        %773 = vmatmul.mubr.bf16.gmra.mrb[0].mxu0 %v738
        %v774 = vpop.f32.mrb[0].mxu0
        %v775 = vadd.f32 %v722, %v774
        %v776 = vpop.f32.mrb[0].mxu0
        %v777 = vpop.f32.mrb[0].mxu0
        %v778 = vpop.f32.mrb[0].mxu0
        %779 = vdwg.mxu0
        %v780 = vpack.c.bf16 %v775, %v775
        %782 = vrot.lane.b32.xlu0 %v780, 120
        %v783 = vpop.permute.xlu0 %782
        %784 = vrot.lane.b32.xlu0 %v780, 112
        %v785 = vpop.permute.xlu0 %784
        %786 = vrot.lane.b32.xlu0 %v780, 104
        %v787 = vpop.permute.xlu0 %786
        %v788 = vld [vmem:[%s709] sm:$0x1]
        %v790 = vlaneseq
        %v791 = vshrl.u32 %v790, 7
        %v792 = vsub.s32 0, %v791
        %v793 = vrot.slane %v788, %v792
        %795 = vrot.lane.b32.xlu0 %v780, 96
        %v796 = vpop.permute.xlu0 %795
        %vm797 = vcmask 64512
        %v799 = vsel %vm797, %v780, 0
        %v802 = vsel %vm797, %v796, 0
        %804 = vmatprep.subr.bf16.mxu0 0
        %805 = vmatpush1.bf16.xpose.msra.mxu0 %v802
        %806 = vmatprep.subr.bf16.mxu0 0
        %807 = vmatpush1.bf16.xpose.msra.mxu0 0
        %808 = vmatprep.subr.bf16.mxu0 0
        %809 = vmatpush1.bf16.xpose.msra.mxu0 0
        %810 = vmatprep.subr.bf16.mxu0 0
        %811 = vmatpush1.bf16.xpose.msra.mxu0 0
        %812 = vmatprep.subr.bf16.mxu0 0
        %813 = vmatpush1.bf16.xpose.msra.mxu0 0
        %814 = vmatprep.subr.bf16.mxu0 0
        %815 = vmatpush1.bf16.xpose.msra.mxu0 0
        %816 = vmatprep.subr.bf16.mxu0 0
        %817 = vmatpush1.bf16.xpose.msra.mxu0 0
        %818 = vmatprep.subr.bf16.mxu0 0
        %819 = vmatpush1.bf16.xpose.msra.mxu0 0
        %820 = vmatprep.subr.bf16.mxu0 0
        %821 = vmatpush1.bf16.xpose.msra.mxu0 0
        %822 = vmatprep.subr.bf16.mxu0 0
        %823 = vmatpush1.bf16.xpose.msra.mxu0 0
        %824 = vmatprep.subr.bf16.mxu0 0
        %825 = vmatpush1.bf16.xpose.msra.mxu0 0
        %826 = vmatprep.subr.bf16.mxu0 0
        %827 = vmatpush1.bf16.xpose.msra.mxu0 0
        %828 = vmatprep.subr.bf16.mxu0 0
        %829 = vmatpush1.bf16.xpose.msra.mxu0 0
        %830 = vmatprep.subr.bf16.mxu0 0
        %831 = vmatpush1.bf16.xpose.msra.mxu0 0
        %832 = vmatprep.subr.bf16.mxu0 0
        %833 = vmatpush1.bf16.xpose.msra.mxu0 0
        %834 = vmatprep.subr.bf16.mxu0 0
        %835 = vmatpush1.bf16.xpose.msra.mxu0 0
        %836 = vmatprep.mubr.bf16.mxu0 0
        %837 = vmatmul.mubr.bf16.gmra.mrb[0].mxu0 %v799
        %v838 = vpop.f32.mrb[0].mxu0
        %v839 = vadd.f32 %v793, %v838
        %v840 = vpop.f32.mrb[0].mxu0
        %v841 = vpop.f32.mrb[0].mxu0
        %v842 = vpop.f32.mrb[0].mxu0
        %843 = vdwg.mxu0
        %844 = vrot.lane.b32.xlu0 %v783, 96
        %v845 = vpop.permute.xlu0 %844
        %v847 = vsel %vm797, %v783, 0
        %v850 = vsel %vm797, %v845, 0
        %852 = vmatprep.subr.bf16.mxu0 0
        %853 = vmatpush1.bf16.xpose.msra.mxu0 %v850
        %854 = vmatprep.subr.bf16.mxu0 0
        %855 = vmatpush1.bf16.xpose.msra.mxu0 0
        %856 = vmatprep.subr.bf16.mxu0 0
        %857 = vmatpush1.bf16.xpose.msra.mxu0 0
        %858 = vmatprep.subr.bf16.mxu0 0
        %859 = vmatpush1.bf16.xpose.msra.mxu0 0
        %860 = vmatprep.subr.bf16.mxu0 0
        %861 = vmatpush1.bf16.xpose.msra.mxu0 0
        %862 = vmatprep.subr.bf16.mxu0 0
        %863 = vmatpush1.bf16.xpose.msra.mxu0 0
        %864 = vmatprep.subr.bf16.mxu0 0
        %865 = vmatpush1.bf16.xpose.msra.mxu0 0
        %866 = vmatprep.subr.bf16.mxu0 0
        %867 = vmatpush1.bf16.xpose.msra.mxu0 0
        %868 = vmatprep.subr.bf16.mxu0 0
        %869 = vmatpush1.bf16.xpose.msra.mxu0 0
        %870 = vmatprep.subr.bf16.mxu0 0
        %871 = vmatpush1.bf16.xpose.msra.mxu0 0
        %872 = vmatprep.subr.bf16.mxu0 0
        %873 = vmatpush1.bf16.xpose.msra.mxu0 0
        %874 = vmatprep.subr.bf16.mxu0 0
        %875 = vmatpush1.bf16.xpose.msra.mxu0 0
        %876 = vmatprep.subr.bf16.mxu0 0
        %877 = vmatpush1.bf16.xpose.msra.mxu0 0
        %878 = vmatprep.subr.bf16.mxu0 0
        %879 = vmatpush1.bf16.xpose.msra.mxu0 0
        %880 = vmatprep.subr.bf16.mxu0 0
        %881 = vmatpush1.bf16.xpose.msra.mxu0 0
        %882 = vmatprep.subr.bf16.mxu0 0
        %883 = vmatpush1.bf16.xpose.msra.mxu0 0
        %884 = vmatprep.mubr.bf16.mxu0 0
        %885 = vmatmul.mubr.bf16.gmra.mrb[0].mxu0 %v847
        %v886 = vpop.f32.mrb[0].mxu0
        %v887 = vadd.f32 %v793, %v886
        %v888 = vpop.f32.mrb[0].mxu0
        %v889 = vpop.f32.mrb[0].mxu0
        %v890 = vpop.f32.mrb[0].mxu0
        %891 = vdwg.mxu0
        %892 = vrot.lane.b32.xlu0 %v785, 96
        %v893 = vpop.permute.xlu0 %892
        %v895 = vsel %vm797, %v785, 0
        %v898 = vsel %vm797, %v893, 0
        %900 = vmatprep.subr.bf16.mxu0 0
        %901 = vmatpush1.bf16.xpose.msra.mxu0 %v898
        %902 = vmatprep.subr.bf16.mxu0 0
        %903 = vmatpush1.bf16.xpose.msra.mxu0 0
        %904 = vmatprep.subr.bf16.mxu0 0
        %905 = vmatpush1.bf16.xpose.msra.mxu0 0
        %906 = vmatprep.subr.bf16.mxu0 0
        %907 = vmatpush1.bf16.xpose.msra.mxu0 0
        %908 = vmatprep.subr.bf16.mxu0 0
        %909 = vmatpush1.bf16.xpose.msra.mxu0 0
        %910 = vmatprep.subr.bf16.mxu0 0
        %911 = vmatpush1.bf16.xpose.msra.mxu0 0
        %912 = vmatprep.subr.bf16.mxu0 0
        %913 = vmatpush1.bf16.xpose.msra.mxu0 0
        %914 = vmatprep.subr.bf16.mxu0 0
        %915 = vmatpush1.bf16.xpose.msra.mxu0 0
        %916 = vmatprep.subr.bf16.mxu0 0
        %917 = vmatpush1.bf16.xpose.msra.mxu0 0
        %918 = vmatprep.subr.bf16.mxu0 0
        %919 = vmatpush1.bf16.xpose.msra.mxu0 0
        %920 = vmatprep.subr.bf16.mxu0 0
        %921 = vmatpush1.bf16.xpose.msra.mxu0 0
        %922 = vmatprep.subr.bf16.mxu0 0
        %923 = vmatpush1.bf16.xpose.msra.mxu0 0
        %924 = vmatprep.subr.bf16.mxu0 0
        %925 = vmatpush1.bf16.xpose.msra.mxu0 0
        %926 = vmatprep.subr.bf16.mxu0 0
        %927 = vmatpush1.bf16.xpose.msra.mxu0 0
        %928 = vmatprep.subr.bf16.mxu0 0
        %929 = vmatpush1.bf16.xpose.msra.mxu0 0
        %930 = vmatprep.subr.bf16.mxu0 0
        %931 = vmatpush1.bf16.xpose.msra.mxu0 0
        %932 = vmatprep.mubr.bf16.mxu0 0
        %933 = vmatmul.mubr.bf16.gmra.mrb[0].mxu0 %v895
        %v934 = vpop.f32.mrb[0].mxu0
        %v935 = vadd.f32 %v793, %v934
        %v936 = vpop.f32.mrb[0].mxu0
        %v937 = vpop.f32.mrb[0].mxu0
        %v938 = vpop.f32.mrb[0].mxu0
        %939 = vdwg.mxu0
        %940 = vrot.lane.b32.xlu0 %v787, 96
        %v941 = vpop.permute.xlu0 %940
        %v943 = vsel %vm797, %v787, 0
        %v946 = vsel %vm797, %v941, 0
        %948 = vmatprep.subr.bf16.mxu0 0
        %949 = vmatpush1.bf16.xpose.msra.mxu0 %v946
        %950 = vmatprep.subr.bf16.mxu0 0
        %951 = vmatpush1.bf16.xpose.msra.mxu0 0
        %952 = vmatprep.subr.bf16.mxu0 0
        %953 = vmatpush1.bf16.xpose.msra.mxu0 0
        %954 = vmatprep.subr.bf16.mxu0 0
        %955 = vmatpush1.bf16.xpose.msra.mxu0 0
        %956 = vmatprep.subr.bf16.mxu0 0
        %957 = vmatpush1.bf16.xpose.msra.mxu0 0
        %958 = vmatprep.subr.bf16.mxu0 0
        %959 = vmatpush1.bf16.xpose.msra.mxu0 0
        %960 = vmatprep.subr.bf16.mxu0 0
        %961 = vmatpush1.bf16.xpose.msra.mxu0 0
        %962 = vmatprep.subr.bf16.mxu0 0
        %963 = vmatpush1.bf16.xpose.msra.mxu0 0
        %964 = vmatprep.subr.bf16.mxu0 0
        %965 = vmatpush1.bf16.xpose.msra.mxu0 0
        %966 = vmatprep.subr.bf16.mxu0 0
        %967 = vmatpush1.bf16.xpose.msra.mxu0 0
        %968 = vmatprep.subr.bf16.mxu0 0
        %969 = vmatpush1.bf16.xpose.msra.mxu0 0
        %970 = vmatprep.subr.bf16.mxu0 0
        %971 = vmatpush1.bf16.xpose.msra.mxu0 0
        %972 = vmatprep.subr.bf16.mxu0 0
        %973 = vmatpush1.bf16.xpose.msra.mxu0 0
        %974 = vmatprep.subr.bf16.mxu0 0
        %975 = vmatpush1.bf16.xpose.msra.mxu0 0
        %976 = vmatprep.subr.bf16.mxu0 0
        %977 = vmatpush1.bf16.xpose.msra.mxu0 0
        %978 = vmatprep.subr.bf16.mxu0 0
        %979 = vmatpush1.bf16.xpose.msra.mxu0 0
        %980 = vmatprep.mubr.bf16.mxu0 0
        %981 = vmatmul.mubr.bf16.gmra.mrb[0].mxu0 %v943
        %v982 = vpop.f32.mrb[0].mxu0
        %v983 = vadd.f32 %v793, %v982
        %v984 = vpop.f32.mrb[0].mxu0
        %v985 = vpop.f32.mrb[0].mxu0
        %v986 = vpop.f32.mrb[0].mxu0
        %987 = vdwg.mxu0
        %v988 = vsel %vm797, %v839, -inf
        %989 = vmax.xlane.f32.xlu0 %v988
        %v990 = vpop.xlane.xlu0 %989
        %v991 = vsel %vm797, %v887, -inf
        %992 = vmax.xlane.f32.xlu0 %v991
        %v993 = vpop.xlane.xlu0 %992
        %v994 = vsel %vm797, %v935, -inf
        %995 = vmax.xlane.f32.xlu0 %v994
        %v996 = vpop.xlane.xlu0 %995
        %v997 = vsel %vm797, %v983, -inf
        %998 = vmax.xlane.f32.xlu0 %v997
        %v999 = vpop.xlane.xlu0 %998
        %v1000 = vsub.f32 %v839, %v990
        %v1001 = vsub.f32 %v887, %v993
        %v1002 = vsub.f32 %v935, %v996
        %v1003 = vsub.f32 %v983, %v999
        %v1004 = vmul.f32 %v1000, 1.442695
        %v1005 = vpow.pop %v1004
        %v1006 = vmul.f32 %v1001, 1.442695
        %v1007 = vpow.pop %v1006
        %v1008 = vmul.f32 %v1002, 1.442695
        %v1009 = vpow.pop %v1008
        %v1010 = vmul.f32 %v1003, 1.442695
        %v1011 = vpow.pop %v1010
        %v1012 = vsel %vm797, %v1005, 0.0
        %1013 = vadd.xlane.f32.xlu0 %v1012
        %v1014 = vpop.xlane.xlu0 %1013
        %v1015 = vsel %vm797, %v1007, 0.0
        %1016 = vadd.xlane.f32.xlu0 %v1015
        %v1017 = vpop.xlane.xlu0 %1016
        %v1018 = vsel %vm797, %v1009, 0.0
        %1019 = vadd.xlane.f32.xlu0 %v1018
        %v1020 = vpop.xlane.xlu0 %1019
        %v1021 = vsel %vm797, %v1011, 0.0
        %1022 = vadd.xlane.f32.xlu0 %v1021
        %v1023 = vpop.xlane.xlu0 %1022
        %v1024 = vrcp.pop %v1014
        %v1025 = vrcp.pop %v1017
        %v1026 = vrcp.pop %v1020
        %v1027 = vrcp.pop %v1023
        %v1028 = vmul.f32 %v1005, %v1024
        %v1029 = vmul.f32 %v1007, %v1025
        %v1030 = vmul.f32 %v1009, %v1026
        %v1031 = vmul.f32 %v1011, %v1027
        %1032 = vst.msk [vmem:[%s696] sm:$0xff] %vm797, %v1028
        %1033 = vst.msk [vmem:[%s696 + $0x8] sm:$0xff] %vm797, %v1029
        %1034 = vst.msk [vmem:[%s696 + $0x10] sm:$0xff] %vm797, %v1030
        %1035 = vst.msk [vmem:[%s696 + $0x18] sm:$0xff] %vm797, %v1031
        %v1036 = vpack.c.bf16 %v1028, %v1028
        %v1037 = vpack.c.bf16 %v1029, %v1029
        %v1038 = vpack.c.bf16 %v1030, %v1030
        %v1039 = vpack.c.bf16 %v1031, %v1031
        %1040 = vrot.lane.b32.xlu0 %v780, 64
        %v1041 = vpop.permute.xlu0 %1040
        %v1043 = vsel %vm797, %v1036, 0
        %vm1045 = vcmask 1043456
        %v1047 = vsel %vm1045, %v1041, 0
        %1049 = vmatprep.subr.bf16.mxu0 0
        %1050 = vmatpush1.bf16.msra.mxu0 %v1047
        %1051 = vmatprep.subr.bf16.mxu0 0
        %1052 = vmatpush1.bf16.msra.mxu0 0
        %1053 = vmatprep.subr.bf16.mxu0 0
        %1054 = vmatpush1.bf16.msra.mxu0 0
        %1055 = vmatprep.subr.bf16.mxu0 0
        %1056 = vmatpush1.bf16.msra.mxu0 0
        %1057 = vmatprep.subr.bf16.mxu0 0
        %1058 = vmatpush1.bf16.msra.mxu0 0
        %1059 = vmatprep.subr.bf16.mxu0 0
        %1060 = vmatpush1.bf16.msra.mxu0 0
        %1061 = vmatprep.subr.bf16.mxu0 0
        %1062 = vmatpush1.bf16.msra.mxu0 0
        %1063 = vmatprep.subr.bf16.mxu0 0
        %1064 = vmatpush1.bf16.msra.mxu0 0
        %1065 = vmatprep.subr.bf16.mxu0 0
        %1066 = vmatpush1.bf16.msra.mxu0 0
        %1067 = vmatprep.subr.bf16.mxu0 0
        %1068 = vmatpush1.bf16.msra.mxu0 0
        %1069 = vmatprep.subr.bf16.mxu0 0
        %1070 = vmatpush1.bf16.msra.mxu0 0
        %1071 = vmatprep.subr.bf16.mxu0 0
        %1072 = vmatpush1.bf16.msra.mxu0 0
        %1073 = vmatprep.subr.bf16.mxu0 0
        %1074 = vmatpush1.bf16.msra.mxu0 0
        %1075 = vmatprep.subr.bf16.mxu0 0
        %1076 = vmatpush1.bf16.msra.mxu0 0
        %1077 = vmatprep.subr.bf16.mxu0 0
        %1078 = vmatpush1.bf16.msra.mxu0 0
        %1079 = vmatprep.subr.bf16.mxu0 0
        %1080 = vmatpush1.bf16.msra.mxu0 0
        %1081 = vmatprep.mubr.bf16.mxu0 0
        %1082 = vmatmul.mubr.bf16.gmra.mrb[0].mxu0 %v1043
        %v1083 = vpop.f32.mrb[0].mxu0
        %v1084 = vadd.f32 0.0, %v1083
        %v1085 = vpop.f32.mrb[0].mxu0
        %v1086 = vpop.f32.mrb[0].mxu0
        %v1087 = vpop.f32.mrb[0].mxu0
        %1088 = vdwg.mxu0
        %1089 = vrot.lane.b32.xlu0 %v783, 64
        %v1090 = vpop.permute.xlu0 %1089
        %v1092 = vsel %vm797, %v1037, 0
        %v1095 = vsel %vm1045, %v1090, 0
        %1097 = vmatprep.subr.bf16.mxu0 0
        %1098 = vmatpush1.bf16.msra.mxu0 %v1095
        %1099 = vmatprep.subr.bf16.mxu0 0
        %1100 = vmatpush1.bf16.msra.mxu0 0
        %1101 = vmatprep.subr.bf16.mxu0 0
        %1102 = vmatpush1.bf16.msra.mxu0 0
        %1103 = vmatprep.subr.bf16.mxu0 0
        %1104 = vmatpush1.bf16.msra.mxu0 0
        %1105 = vmatprep.subr.bf16.mxu0 0
        %1106 = vmatpush1.bf16.msra.mxu0 0
        %1107 = vmatprep.subr.bf16.mxu0 0
        %1108 = vmatpush1.bf16.msra.mxu0 0
        %1109 = vmatprep.subr.bf16.mxu0 0
        %1110 = vmatpush1.bf16.msra.mxu0 0
        %1111 = vmatprep.subr.bf16.mxu0 0
        %1112 = vmatpush1.bf16.msra.mxu0 0
        %1113 = vmatprep.subr.bf16.mxu0 0
        %1114 = vmatpush1.bf16.msra.mxu0 0
        %1115 = vmatprep.subr.bf16.mxu0 0
        %1116 = vmatpush1.bf16.msra.mxu0 0
        %1117 = vmatprep.subr.bf16.mxu0 0
        %1118 = vmatpush1.bf16.msra.mxu0 0
        %1119 = vmatprep.subr.bf16.mxu0 0
        %1120 = vmatpush1.bf16.msra.mxu0 0
        %1121 = vmatprep.subr.bf16.mxu0 0
        %1122 = vmatpush1.bf16.msra.mxu0 0
        %1123 = vmatprep.subr.bf16.mxu0 0
        %1124 = vmatpush1.bf16.msra.mxu0 0
        %1125 = vmatprep.subr.bf16.mxu0 0
        %1126 = vmatpush1.bf16.msra.mxu0 0
        %1127 = vmatprep.subr.bf16.mxu0 0
        %1128 = vmatpush1.bf16.msra.mxu0 0
        %1129 = vmatprep.mubr.bf16.mxu0 0
        %1130 = vmatmul.mubr.bf16.gmra.mrb[0].mxu0 %v1092
        %v1131 = vpop.f32.mrb[0].mxu0
        %v1132 = vadd.f32 0.0, %v1131
        %v1133 = vpop.f32.mrb[0].mxu0
        %v1134 = vpop.f32.mrb[0].mxu0
        %v1135 = vpop.f32.mrb[0].mxu0
        %1136 = vdwg.mxu0
        %1137 = vrot.lane.b32.xlu0 %v785, 64
        %v1138 = vpop.permute.xlu0 %1137
        %v1140 = vsel %vm797, %v1038, 0
        %v1143 = vsel %vm1045, %v1138, 0
        %1145 = vmatprep.subr.bf16.mxu0 0
        %1146 = vmatpush1.bf16.msra.mxu0 %v1143
        %1147 = vmatprep.subr.bf16.mxu0 0
        %1148 = vmatpush1.bf16.msra.mxu0 0
        %1149 = vmatprep.subr.bf16.mxu0 0
        %1150 = vmatpush1.bf16.msra.mxu0 0
        %1151 = vmatprep.subr.bf16.mxu0 0
        %1152 = vmatpush1.bf16.msra.mxu0 0
        %1153 = vmatprep.subr.bf16.mxu0 0
        %1154 = vmatpush1.bf16.msra.mxu0 0
        %1155 = vmatprep.subr.bf16.mxu0 0
        %1156 = vmatpush1.bf16.msra.mxu0 0
        %1157 = vmatprep.subr.bf16.mxu0 0
        %1158 = vmatpush1.bf16.msra.mxu0 0
        %1159 = vmatprep.subr.bf16.mxu0 0
        %1160 = vmatpush1.bf16.msra.mxu0 0
        %1161 = vmatprep.subr.bf16.mxu0 0
        %1162 = vmatpush1.bf16.msra.mxu0 0
        %1163 = vmatprep.subr.bf16.mxu0 0
        %1164 = vmatpush1.bf16.msra.mxu0 0
        %1165 = vmatprep.subr.bf16.mxu0 0
        %1166 = vmatpush1.bf16.msra.mxu0 0
        %1167 = vmatprep.subr.bf16.mxu0 0
        %1168 = vmatpush1.bf16.msra.mxu0 0
        %1169 = vmatprep.subr.bf16.mxu0 0
        %1170 = vmatpush1.bf16.msra.mxu0 0
        %1171 = vmatprep.subr.bf16.mxu0 0
        %1172 = vmatpush1.bf16.msra.mxu0 0
        %1173 = vmatprep.subr.bf16.mxu0 0
        %1174 = vmatpush1.bf16.msra.mxu0 0
        %1175 = vmatprep.subr.bf16.mxu0 0
        %1176 = vmatpush1.bf16.msra.mxu0 0
        %1177 = vmatprep.mubr.bf16.mxu0 0
        %1178 = vmatmul.mubr.bf16.gmra.mrb[0].mxu0 %v1140
        %v1179 = vpop.f32.mrb[0].mxu0
        %v1180 = vadd.f32 0.0, %v1179
        %v1181 = vpop.f32.mrb[0].mxu0
        %v1182 = vpop.f32.mrb[0].mxu0
        %v1183 = vpop.f32.mrb[0].mxu0
        %1184 = vdwg.mxu0
        %1185 = vrot.lane.b32.xlu0 %v787, 64
        %v1186 = vpop.permute.xlu0 %1185
        %v1188 = vsel %vm797, %v1039, 0
        %v1191 = vsel %vm1045, %v1186, 0
        %1193 = vmatprep.subr.bf16.mxu0 0
        %1194 = vmatpush1.bf16.msra.mxu0 %v1191
        %1195 = vmatprep.subr.bf16.mxu0 0
        %1196 = vmatpush1.bf16.msra.mxu0 0
        %1197 = vmatprep.subr.bf16.mxu0 0
        %1198 = vmatpush1.bf16.msra.mxu0 0
        %1199 = vmatprep.subr.bf16.mxu0 0
        %1200 = vmatpush1.bf16.msra.mxu0 0
        %1201 = vmatprep.subr.bf16.mxu0 0
        %1202 = vmatpush1.bf16.msra.mxu0 0
        %1203 = vmatprep.subr.bf16.mxu0 0
        %1204 = vmatpush1.bf16.msra.mxu0 0
        %1205 = vmatprep.subr.bf16.mxu0 0
        %1206 = vmatpush1.bf16.msra.mxu0 0
        %1207 = vmatprep.subr.bf16.mxu0 0
        %1208 = vmatpush1.bf16.msra.mxu0 0
        %1209 = vmatprep.subr.bf16.mxu0 0
        %1210 = vmatpush1.bf16.msra.mxu0 0
        %1211 = vmatprep.subr.bf16.mxu0 0
        %1212 = vmatpush1.bf16.msra.mxu0 0
        %1213 = vmatprep.subr.bf16.mxu0 0
        %1214 = vmatpush1.bf16.msra.mxu0 0
        %1215 = vmatprep.subr.bf16.mxu0 0
        %1216 = vmatpush1.bf16.msra.mxu0 0
        %1217 = vmatprep.subr.bf16.mxu0 0
        %1218 = vmatpush1.bf16.msra.mxu0 0
        %1219 = vmatprep.subr.bf16.mxu0 0
        %1220 = vmatpush1.bf16.msra.mxu0 0
        %1221 = vmatprep.subr.bf16.mxu0 0
        %1222 = vmatpush1.bf16.msra.mxu0 0
        %1223 = vmatprep.subr.bf16.mxu0 0
        %1224 = vmatpush1.bf16.msra.mxu0 0
        %1225 = vmatprep.mubr.bf16.mxu0 0
        %1226 = vmatmul.mubr.bf16.gmra.mrb[0].mxu0 %v1188
        %v1227 = vpop.f32.mrb[0].mxu0
        %v1228 = vadd.f32 0.0, %v1227
        %v1229 = vpop.f32.mrb[0].mxu0
        %v1230 = vpop.f32.mrb[0].mxu0
        %v1231 = vpop.f32.mrb[0].mxu0
        %1232 = vdwg.mxu0
        %1234 = vrot.lane.b32.xlu0 %v1132, 8
        %v1235 = vpop.permute.xlu0 %1234
        %1238 = vrot.lane.b32.xlu0 %v1180, 16
        %v1239 = vpop.permute.xlu0 %1238
        %1242 = vrot.lane.b32.xlu0 %v1228, 24
        %v1243 = vpop.permute.xlu0 %1242
        %v1245 = vsel %vm797, %v1084, %v1235
        %vm1246 = vcmask 130048
        %v1247 = vsel %vm1246, %v1245, %v1239
        %vm1248 = vcmask 195584
        %v1249 = vsel %vm1248, %v1247, %v1243
        %v1250 = vld [vmem:[%s6] sm:$0xf]
        %v1251 = vld [vmem:[%s6 + $0x4] sm:$0xf]
        %v1252 = vld [vmem:[%s6 + $0x8] sm:$0xf]
        %v1253 = vld [vmem:[%s6 + $0xc] sm:$0xf]
        %v1254 = vpack.c.bf16 %v1249, %v1249
        %v1255 = vld [vmem:[%s7] sm:$0x1]
        %v1257 = vlaneseq
        %v1258 = vshrl.u32 %v1257, 7
        %v1259 = vsub.s32 0, %v1258
        %v1260 = vrot.slane %v1255, %v1259
        %v1266 = vunpack.c.l.b16 %v1250
        %v1267 = vunpack.c.l.b16 %v1251
        %v1268 = vunpack.c.l.b16 %v1252
        %v1269 = vunpack.c.l.b16 %v1253
        %v1270 = vpack.c.b16 %v1267, %v1266
        %v1271 = vpack.c.b16 %v1269, %v1268
        %v1275 = vsel %vm736, %v1254, 0
        %1277 = vmatprep.subr.bf16.mxu0 0
        %1278 = vmatpush1.bf16.msra.mxu0 %v1270
        %1279 = vmatprep.subr.bf16.mxu0 0
        %1280 = vmatpush1.bf16.msra.mxu0 %v1271
        %1281 = vmatprep.subr.bf16.mxu0 0
        %1282 = vmatpush1.bf16.msra.mxu0 0
        %1283 = vmatprep.subr.bf16.mxu0 0
        %1284 = vmatpush1.bf16.msra.mxu0 0
        %1285 = vmatprep.subr.bf16.mxu0 0
        %1286 = vmatpush1.bf16.msra.mxu0 0
        %1287 = vmatprep.subr.bf16.mxu0 0
        %1288 = vmatpush1.bf16.msra.mxu0 0
        %1289 = vmatprep.subr.bf16.mxu0 0
        %1290 = vmatpush1.bf16.msra.mxu0 0
        %1291 = vmatprep.subr.bf16.mxu0 0
        %1292 = vmatpush1.bf16.msra.mxu0 0
        %1293 = vmatprep.subr.bf16.mxu0 0
        %1294 = vmatpush1.bf16.msra.mxu0 0
        %1295 = vmatprep.subr.bf16.mxu0 0
        %1296 = vmatpush1.bf16.msra.mxu0 0
        %1297 = vmatprep.subr.bf16.mxu0 0
        %1298 = vmatpush1.bf16.msra.mxu0 0
        %1299 = vmatprep.subr.bf16.mxu0 0
        %1300 = vmatpush1.bf16.msra.mxu0 0
        %1301 = vmatprep.subr.bf16.mxu0 0
        %1302 = vmatpush1.bf16.msra.mxu0 0
        %1303 = vmatprep.subr.bf16.mxu0 0
        %1304 = vmatpush1.bf16.msra.mxu0 0
        %1305 = vmatprep.subr.bf16.mxu0 0
        %1306 = vmatpush1.bf16.msra.mxu0 0
        %1307 = vmatprep.subr.bf16.mxu0 0
        %1308 = vmatpush1.bf16.msra.mxu0 0
        %1309 = vmatprep.mubr.bf16.mxu0 0
        %1310 = vmatmul.mubr.bf16.gmra.mrb[0].mxu0 %v1275
        %v1311 = vpop.f32.mrb[0].mxu0
        %v1312 = vadd.f32 %v1260, %v1311
        %v1313 = vpop.f32.mrb[0].mxu0
        %v1314 = vpop.f32.mrb[0].mxu0
        %v1315 = vpop.f32.mrb[0].mxu0
        %1316 = vdwg.mxu0
        %v1317 = vadd.f32 %v1312, %v712
        %v1318 = vld [vmem:[%s8] sm:$0x1]
        %v1319 = vld [vmem:[%s9] sm:$0x1]
        %v1320 = vsel %vm736, %v1317, 0.0
        %1321 = vadd.xlane.f32.xlu0 %v1320
        %v1322 = vpop.xlane.xlu0 %1321
        %v1323 = vrcp.pop 32.0
        %v1324 = vmul.f32 %v1322, %v1323
        %v1325 = vsub.f32 %v1317, %v1324
        %v1326 = vmul.f32 %v1325, %v1325
        %v1327 = vsel %vm736, %v1326, 0.0
        %1328 = vadd.xlane.f32.xlu0 %v1327
        %v1329 = vpop.xlane.xlu0 %1328
        %v1330 = vmul.f32 %v1329, %v1323
        %v1331 = vadd.f32 %v1330, 1e-12
        %v1332 = vrsqrt.pop %v1331
        %v1333 = vmul.f32 %v1325, %v1332
        %v1335 = vlaneseq
        %v1336 = vshrl.u32 %v1335, 7
        %v1337 = vsub.s32 0, %v1336
        %v1338 = vrot.slane %v1318, %v1337
        %v1340 = vmul.f32 %v1333, %v1338
        %v1342 = vlaneseq
        %v1343 = vshrl.u32 %v1342, 7
        %v1344 = vsub.s32 0, %v1343
        %v1345 = vrot.slane %v1319, %v1344
        %v1347 = vadd.f32 %v1340, %v1345
        %v1348 = vld [vmem:[%s10] sm:$0xf]
        %v1349 = vld [vmem:[%s10 + $0x4] sm:$0xf]
        %v1350 = vld [vmem:[%s10 + $0x8] sm:$0xf]
        %v1351 = vld [vmem:[%s10 + $0xc] sm:$0xf]
        %v1352 = vpack.c.bf16 %v1347, %v1347
        %v1353 = vld [vmem:[%s11] sm:$0x1]
        %v1355 = vlaneseq
        %v1356 = vshrl.u32 %v1355, 7
        %v1357 = vsub.s32 0, %v1356
        %v1358 = vrot.slane %v1353, %v1357
        %v1364 = vunpack.c.l.b16 %v1348
        %v1365 = vunpack.c.l.b16 %v1349
        %v1366 = vunpack.c.l.b16 %v1350
        %v1367 = vunpack.c.l.b16 %v1351
        %v1368 = vpack.c.b16 %v1365, %v1364
        %v1369 = vpack.c.b16 %v1367, %v1366
        %v1373 = vsel %vm736, %v1352, 0
        %1375 = vmatprep.subr.bf16.mxu0 0
        %1376 = vmatpush1.bf16.msra.mxu0 %v1368
        %1377 = vmatprep.subr.bf16.mxu0 0
        %1378 = vmatpush1.bf16.msra.mxu0 %v1369
        %1379 = vmatprep.subr.bf16.mxu0 0
        %1380 = vmatpush1.bf16.msra.mxu0 0
        %1381 = vmatprep.subr.bf16.mxu0 0
        %1382 = vmatpush1.bf16.msra.mxu0 0
        %1383 = vmatprep.subr.bf16.mxu0 0
        %1384 = vmatpush1.bf16.msra.mxu0 0
        %1385 = vmatprep.subr.bf16.mxu0 0
        %1386 = vmatpush1.bf16.msra.mxu0 0
        %1387 = vmatprep.subr.bf16.mxu0 0
        %1388 = vmatpush1.bf16.msra.mxu0 0
        %1389 = vmatprep.subr.bf16.mxu0 0
        %1390 = vmatpush1.bf16.msra.mxu0 0
        %1391 = vmatprep.subr.bf16.mxu0 0
        %1392 = vmatpush1.bf16.msra.mxu0 0
        %1393 = vmatprep.subr.bf16.mxu0 0
        %1394 = vmatpush1.bf16.msra.mxu0 0
        %1395 = vmatprep.subr.bf16.mxu0 0
        %1396 = vmatpush1.bf16.msra.mxu0 0
        %1397 = vmatprep.subr.bf16.mxu0 0
        %1398 = vmatpush1.bf16.msra.mxu0 0
        %1399 = vmatprep.subr.bf16.mxu0 0
        %1400 = vmatpush1.bf16.msra.mxu0 0
        %1401 = vmatprep.subr.bf16.mxu0 0
        %1402 = vmatpush1.bf16.msra.mxu0 0
        %1403 = vmatprep.subr.bf16.mxu0 0
        %1404 = vmatpush1.bf16.msra.mxu0 0
        %1405 = vmatprep.subr.bf16.mxu0 0
        %1406 = vmatpush1.bf16.msra.mxu0 0
        %1407 = vmatprep.mubr.bf16.mxu0 0
        %1408 = vmatmul.mubr.bf16.gmra.mrb[0].mxu0 %v1373
        %v1409 = vpop.f32.mrb[0].mxu0
        %v1410 = vadd.f32 %v1358, %v1409
        %v1411 = vpop.f32.mrb[0].mxu0
        %v1412 = vpop.f32.mrb[0].mxu0
        %v1413 = vpop.f32.mrb[0].mxu0
        %1414 = vdwg.mxu0
        %v1415 = vmul.f32 %v1410, 0.5
        %v1416 = vmul.f32 %v1410, 0.044715
        %v1417 = vmul.f32 %v1416, %v1410
        %v1418 = vmul.f32 %v1417, %v1410
        %v1419 = vadd.f32 %v1410, %v1418
        %v1420 = vmul.f32 %v1419, 0.7978846
        %v1421 = vtanh.pop %v1420
        %v1422 = vadd.f32 %v1421, 1.0
        %v1423 = vmul.f32 %v1415, %v1422
        %v1424 = vld [vmem:[%s12] sm:$0xf]
        %v1425 = vld [vmem:[%s12 + $0x4] sm:$0xf]
        %v1426 = vld [vmem:[%s12 + $0x8] sm:$0xf]
        %v1427 = vld [vmem:[%s12 + $0xc] sm:$0xf]
        %v1428 = vld [vmem:[%s12 + $0x10] sm:$0xf]
        %v1429 = vld [vmem:[%s12 + $0x14] sm:$0xf]
        %v1430 = vld [vmem:[%s12 + $0x18] sm:$0xf]
        %v1431 = vld [vmem:[%s12 + $0x1c] sm:$0xf]
        %v1432 = vpack.c.bf16 %v1423, %v1423
        %v1433 = vld [vmem:[%s13] sm:$0x1]
        %v1435 = vlaneseq
        %v1436 = vshrl.u32 %v1435, 7
        %v1437 = vsub.s32 0, %v1436
        %v1438 = vrot.slane %v1433, %v1437
        %v1448 = vunpack.c.l.b16 %v1424
        %v1449 = vunpack.c.l.b16 %v1425
        %v1450 = vunpack.c.l.b16 %v1426
        %v1451 = vunpack.c.l.b16 %v1427
        %v1452 = vunpack.c.l.b16 %v1428
        %v1453 = vunpack.c.l.b16 %v1429
        %v1454 = vunpack.c.l.b16 %v1430
        %v1455 = vunpack.c.l.b16 %v1431
        %v1456 = vpack.c.b16 %v1449, %v1448
        %v1457 = vpack.c.b16 %v1451, %v1450
        %v1458 = vpack.c.b16 %v1453, %v1452
        %v1459 = vpack.c.b16 %v1455, %v1454
        %vm1464 = vcmask 523264
        %v1466 = vsel %vm1464, %v1432, 0
        %1468 = vmatprep.subr.bf16.mxu0 0
        %1469 = vmatpush1.bf16.msra.mxu0 %v1456
        %1470 = vmatprep.subr.bf16.mxu0 0
        %1471 = vmatpush1.bf16.msra.mxu0 %v1457
        %1472 = vmatprep.subr.bf16.mxu0 0
        %1473 = vmatpush1.bf16.msra.mxu0 %v1458
        %1474 = vmatprep.subr.bf16.mxu0 0
        %1475 = vmatpush1.bf16.msra.mxu0 %v1459
        %1476 = vmatprep.subr.bf16.mxu0 0
        %1477 = vmatpush1.bf16.msra.mxu0 0
        %1478 = vmatprep.subr.bf16.mxu0 0
        %1479 = vmatpush1.bf16.msra.mxu0 0
        %1480 = vmatprep.subr.bf16.mxu0 0
        %1481 = vmatpush1.bf16.msra.mxu0 0
        %1482 = vmatprep.subr.bf16.mxu0 0
        %1483 = vmatpush1.bf16.msra.mxu0 0
        %1484 = vmatprep.subr.bf16.mxu0 0
        %1485 = vmatpush1.bf16.msra.mxu0 0
        %1486 = vmatprep.subr.bf16.mxu0 0
        %1487 = vmatpush1.bf16.msra.mxu0 0
        %1488 = vmatprep.subr.bf16.mxu0 0
        %1489 = vmatpush1.bf16.msra.mxu0 0
        %1490 = vmatprep.subr.bf16.mxu0 0
        %1491 = vmatpush1.bf16.msra.mxu0 0
        %1492 = vmatprep.subr.bf16.mxu0 0
        %1493 = vmatpush1.bf16.msra.mxu0 0
        %1494 = vmatprep.subr.bf16.mxu0 0
        %1495 = vmatpush1.bf16.msra.mxu0 0
        %1496 = vmatprep.subr.bf16.mxu0 0
        %1497 = vmatpush1.bf16.msra.mxu0 0
        %1498 = vmatprep.subr.bf16.mxu0 0
        %1499 = vmatpush1.bf16.msra.mxu0 0
        %1500 = vmatprep.mubr.bf16.mxu0 0
        %1501 = vmatmul.mubr.bf16.gmra.mrb[0].mxu0 %v1466
        %v1502 = vpop.f32.mrb[0].mxu0
        %v1503 = vadd.f32 %v1438, %v1502
        %v1504 = vpop.f32.mrb[0].mxu0
        %v1505 = vpop.f32.mrb[0].mxu0
        %v1506 = vpop.f32.mrb[0].mxu0
        %1507 = vdwg.mxu0
        %v1508 = vadd.f32 %v1503, %v1347
        %v1509 = vld [vmem:[%s14] sm:$0x1]
        %v1510 = vld [vmem:[%s15] sm:$0x1]
        %v1511 = vsel %vm736, %v1508, 0.0
        %1512 = vadd.xlane.f32.xlu0 %v1511
        %v1513 = vpop.xlane.xlu0 %1512
        %v1514 = vmul.f32 %v1513, %v1323
        %v1515 = vsub.f32 %v1508, %v1514
        %v1516 = vmul.f32 %v1515, %v1515
        %v1517 = vsel %vm736, %v1516, 0.0
        %1518 = vadd.xlane.f32.xlu0 %v1517
        %v1519 = vpop.xlane.xlu0 %1518
        %v1520 = vmul.f32 %v1519, %v1323
        %v1521 = vadd.f32 %v1520, 1e-12
        %v1522 = vrsqrt.pop %v1521
        %v1523 = vmul.f32 %v1515, %v1522
        %v1525 = vlaneseq
        %v1526 = vshrl.u32 %v1525, 7
        %v1527 = vsub.s32 0, %v1526
        %v1528 = vrot.slane %v1509, %v1527
        %v1530 = vmul.f32 %v1523, %v1528
        %v1532 = vlaneseq
        %v1533 = vshrl.u32 %v1532, 7
        %v1534 = vsub.s32 0, %v1533
        %v1535 = vrot.slane %v1510, %v1534
        %v1537 = vadd.f32 %v1530, %v1535
        %v1538 = vpack.c.bf16 %v1537, %v1537
        %vm1539 = vcmask 257024
        %1540 = vst.msk [vmem:[%s689] sm:$0xf] %vm1539, %v1538
        %v1541 = vld [vmem:[%s16] sm:$0xf]
        %v1542 = vld [vmem:[%s16 + $0x4] sm:$0xf]
        %v1543 = vld [vmem:[%s16 + $0x8] sm:$0xf]
        %v1544 = vld [vmem:[%s16 + $0xc] sm:$0xf]
        %v1545 = vld [vmem:[%s17] sm:$0x1]
        %v1550 = vunpack.c.l.b16 %v1541
        %v1551 = vunpack.c.l.b16 %v1542
        %v1552 = vunpack.c.l.b16 %v1543
        %v1553 = vunpack.c.l.b16 %v1544
        %v1554 = vpack.c.b16 %v1551, %v1550
        %v1555 = vpack.c.b16 %v1553, %v1552
        %v1559 = vsel %vm736, %v1538, 0
        %1561 = vmatprep.subr.bf16.mxu0 0
        %1562 = vmatpush1.bf16.msra.mxu0 %v1554
        %1563 = vmatprep.subr.bf16.mxu0 0
        %1564 = vmatpush1.bf16.msra.mxu0 %v1555
        %1565 = vmatprep.subr.bf16.mxu0 0
        %1566 = vmatpush1.bf16.msra.mxu0 0
        %1567 = vmatprep.subr.bf16.mxu0 0
        %1568 = vmatpush1.bf16.msra.mxu0 0
        %1569 = vmatprep.subr.bf16.mxu0 0
        %1570 = vmatpush1.bf16.msra.mxu0 0
        %1571 = vmatprep.subr.bf16.mxu0 0
        %1572 = vmatpush1.bf16.msra.mxu0 0
        %1573 = vmatprep.subr.bf16.mxu0 0
        %1574 = vmatpush1.bf16.msra.mxu0 0
        %1575 = vmatprep.subr.bf16.mxu0 0
        %1576 = vmatpush1.bf16.msra.mxu0 0
        %1577 = vmatprep.subr.bf16.mxu0 0
        %1578 = vmatpush1.bf16.msra.mxu0 0
        %1579 = vmatprep.subr.bf16.mxu0 0
        %1580 = vmatpush1.bf16.msra.mxu0 0
        %1581 = vmatprep.subr.bf16.mxu0 0
        %1582 = vmatpush1.bf16.msra.mxu0 0
        %1583 = vmatprep.subr.bf16.mxu0 0
        %1584 = vmatpush1.bf16.msra.mxu0 0
        %1585 = vmatprep.subr.bf16.mxu0 0
        %1586 = vmatpush1.bf16.msra.mxu0 0
        %1587 = vmatprep.subr.bf16.mxu0 0
        %1588 = vmatpush1.bf16.msra.mxu0 0
        %1589 = vmatprep.subr.bf16.mxu0 0
        %1590 = vmatpush1.bf16.msra.mxu0 0
        %1591 = vmatprep.subr.bf16.mxu0 0
        %1592 = vmatpush1.bf16.msra.mxu0 0
        %1593 = vmatprep.mubr.bf16.mxu0 0
        %1594 = vmatmul.mubr.bf16.gmra.mrb[0].mxu0 %v1559
        %v1595 = vpop.f32.mrb[0].mxu0
        %v1596 = vadd.f32 %v1545, %v1595
        %v1597 = vpop.f32.mrb[0].mxu0
        %v1598 = vpop.f32.mrb[0].mxu0
        %v1599 = vpop.f32.mrb[0].mxu0
        %1600 = vdwg.mxu0
        %v1601 = vtanh.pop %v1596
        %v1602 = vld [vmem:[%s18] sm:$0xf]
        %v1603 = vld [vmem:[%s18 + $0x4] sm:$0xf]
        %v1604 = vld [vmem:[%s18 + $0x8] sm:$0xf]
        %v1605 = vld [vmem:[%s18 + $0xc] sm:$0xf]
        %v1606 = vpack.c.bf16 %v1601, %v1601
        %v1607 = vld [vmem:[%s19] sm:$0x1]
        %v1612 = vunpack.c.l.b16 %v1602
        %v1613 = vunpack.c.l.b16 %v1603
        %v1614 = vunpack.c.l.b16 %v1604
        %v1615 = vunpack.c.l.b16 %v1605
        %v1616 = vpack.c.b16 %v1613, %v1612
        %v1617 = vpack.c.b16 %v1615, %v1614
        %v1621 = vsel %vm736, %v1606, 0
        %1623 = vmatprep.subr.bf16.mxu0 0
        %1624 = vmatpush1.bf16.msra.mxu0 %v1616
        %1625 = vmatprep.subr.bf16.mxu0 0
        %1626 = vmatpush1.bf16.msra.mxu0 %v1617
        %1627 = vmatprep.subr.bf16.mxu0 0
        %1628 = vmatpush1.bf16.msra.mxu0 0
        %1629 = vmatprep.subr.bf16.mxu0 0
        %1630 = vmatpush1.bf16.msra.mxu0 0
        %1631 = vmatprep.subr.bf16.mxu0 0
        %1632 = vmatpush1.bf16.msra.mxu0 0
        %1633 = vmatprep.subr.bf16.mxu0 0
        %1634 = vmatpush1.bf16.msra.mxu0 0
        %1635 = vmatprep.subr.bf16.mxu0 0
        %1636 = vmatpush1.bf16.msra.mxu0 0
        %1637 = vmatprep.subr.bf16.mxu0 0
        %1638 = vmatpush1.bf16.msra.mxu0 0
        %1639 = vmatprep.subr.bf16.mxu0 0
        %1640 = vmatpush1.bf16.msra.mxu0 0
        %1641 = vmatprep.subr.bf16.mxu0 0
        %1642 = vmatpush1.bf16.msra.mxu0 0
        %1643 = vmatprep.subr.bf16.mxu0 0
        %1644 = vmatpush1.bf16.msra.mxu0 0
        %1645 = vmatprep.subr.bf16.mxu0 0
        %1646 = vmatpush1.bf16.msra.mxu0 0
        %1647 = vmatprep.subr.bf16.mxu0 0
        %1648 = vmatpush1.bf16.msra.mxu0 0
        %1649 = vmatprep.subr.bf16.mxu0 0
        %1650 = vmatpush1.bf16.msra.mxu0 0
        %1651 = vmatprep.subr.bf16.mxu0 0
        %1652 = vmatpush1.bf16.msra.mxu0 0
        %1653 = vmatprep.subr.bf16.mxu0 0
        %1654 = vmatpush1.bf16.msra.mxu0 0
        %1655 = vmatprep.mubr.bf16.mxu0 0
        %1656 = vmatmul.mubr.bf16.gmra.mrb[0].mxu0 %v1621
        %v1657 = vpop.f32.mrb[0].mxu0
        %v1658 = vadd.f32 %v1607, %v1657
        %v1659 = vpop.f32.mrb[0].mxu0
        %v1660 = vpop.f32.mrb[0].mxu0
        %v1661 = vpop.f32.mrb[0].mxu0
        %1662 = vdwg.mxu0
        %vm1663 = vcmask 8192
        %1664 = vst.msk [vmem:[%s702] sm:$0x1] %vm1663, %v1658
        %s1665 = sand.u32 %s478, 1
        %s1666 = scalar_lea.sflag [#allocation3], %s1665
        %s1667 = sand.u32 %s478, 1
        %s1668 = smul.addr %s1667, 4
        %s1669 = scalar_lea.vmem [#allocation2], %s1668
        %s1670 = sand.u32 %s40, 1
        %s1671 = scalar_lea.sflag [#allocation5], %s1670
        %s1672 = sand.u32 %s504, 1
        %s1673 = smul.addr %s1672, 32
        %s1674 = scalar_lea.vmem [#allocation4], %s1673
        %s1675 = sand.u32 %s40, 1
        %s1676 = scalar_lea.sflag [#allocation5], %s1675
        %s1677 = sand.u32 %s530, 1
        %s1678 = scalar_lea.vmem [#allocation6], %s1677
        // Predicated region
        $region101: #{_lambda_.3} parent=99 // pred_check
          %p1679 = pneg %p488
        $region102: #{_lambda_.3} parent=99 // pred_check_branch
          %1681 = sbr.rel (%p1679) target = $region104
        $region103: #{_lambda_.3} parent=99 // pred_region
          %s1683 = ssub.s32 64, 64
          %1684 = vsyncadd %s1666, %s1683
          %s1685 = smul.addr %s40, 64
          %s1686 = scalar_lea.hbm %s20, %s1685
          %s1688 = sshll.u32 %s1669, 4
          %s1689 = int_to_ptr.vmem [resolvable:$true] %s1688
          %1691 = dma.vmem_to_hbm [thread:$0]  %s1689, 64, %s1686, %s1666
        $region104: #{_lambda_.3} parent=99 // pred_fallthru
          _
        // Predicated region
        $region105: #{_lambda_.3} parent=99 // pred_check
          %p1692 = pneg %p514
        $region106: #{_lambda_.3} parent=99 // pred_check_branch
          %1694 = sbr.rel (%p1692) target = $region108
        $region107: #{_lambda_.3} parent=99 // pred_region
          %s1696 = ssub.s32 512, 512
          %1697 = vsyncadd %s1671, %s1696
          %s1698 = smul.addr %s40, 4
          %s1699 = smul.addr %s1698, 128
          %s1700 = scalar_lea.hbm %s21, %s1699
          %s1701 = sshll.u32 %s1674, 4
          %s1702 = int_to_ptr.vmem [resolvable:$true] %s1701
          %1707 = dma.vmem_to_hbm [thread:$0]  %s1702, 512, %s1700, %s1671, 128, 128, 8
        $region108: #{_lambda_.3} parent=99 // pred_fallthru
          _
        // Predicated region
        $region109: #{_lambda_.3} parent=99 // pred_check
          %p1708 = pneg %p540
        $region110: #{_lambda_.3} parent=99 // pred_check_branch
          %1710 = sbr.rel (%p1708) target = $region112
        $region111: #{_lambda_.3} parent=99 // pred_region
          %s1712 = ssub.s32 16, 16
          %1713 = vsyncadd %s1676, %s1712
          %s1714 = smul.addr %s40, 16
          %s1715 = scalar_lea.hbm %s22, %s1714
          %s1717 = sshll.u32 %s1678, 4
          %s1718 = int_to_ptr.vmem [resolvable:$true] %s1717
          %1720 = dma.vmem_to_hbm [thread:$0]  %s1718, 16, %s1715, %s1676
        $region112: #{_lambda_.3} parent=99 // pred_fallthru
          _
      $region100: #{_lambda_.3} parent=5 // pred_fallthru
        _
      %p1721 = scmp.le.s32.totalorder 2, %s35
      // Predicated region
      $region113: #{_lambda_.3} parent=5 // pred_check
        %p1722 = pneg %p1721
      $region114: #{_lambda_.3} parent=5 // pred_check_branch
        %1724 = sbr.rel (%p1722) target = $region116
      $region115: #{_lambda_.3} parent=5 // pred_region
        %s1725 = ssub.s32 %s35, 2
        // Predicated region
        $region117: #{_lambda_.3} parent=115 // pred_check
          %p1726 = pneg %p494
        $region118: #{_lambda_.3} parent=115 // pred_check_branch
          %1728 = sbr.rel (%p1726) target = $region120
        $region119: #{_lambda_.3} parent=115 // pred_region
          %s1729 = sand.u32 %s479, 1
          %s1730 = scalar_lea.sflag [#allocation3], %s1729
          %s1731 = sand.u32 %s479, 1
          %s1732 = smul.addr %s1731, 4
          %s1733 = scalar_lea.vmem [#allocation2], %s1732
          %1734 = dma.done %s1730, 64
        $region120: #{_lambda_.3} parent=115 // pred_fallthru
          _
        // Predicated region
        $region121: #{_lambda_.3} parent=115 // pred_check
          %p1735 = pneg %p520
        $region122: #{_lambda_.3} parent=115 // pred_check_branch
          %1737 = sbr.rel (%p1735) target = $region124
        $region123: #{_lambda_.3} parent=115 // pred_region
          %s1738 = sand.u32 %s41, 1
          %s1739 = scalar_lea.sflag [#allocation5], %s1738
          %s1740 = sand.u32 %s505, 1
          %s1741 = smul.addr %s1740, 32
          %s1742 = scalar_lea.vmem [#allocation4], %s1741
          %1743 = dma.done %s1739, 512
        $region124: #{_lambda_.3} parent=115 // pred_fallthru
          _
        // Predicated region
        $region125: #{_lambda_.3} parent=115 // pred_check
          %p1744 = pneg %p546
        $region126: #{_lambda_.3} parent=115 // pred_check_branch
          %1746 = sbr.rel (%p1744) target = $region128
        $region127: #{_lambda_.3} parent=115 // pred_region
          %s1747 = sand.u32 %s41, 1
          %s1748 = scalar_lea.sflag [#allocation5], %s1747
          %s1749 = sand.u32 %s531, 1
          %s1750 = scalar_lea.vmem [#allocation6], %s1749
          %1751 = dma.done %s1748, 16
        $region128: #{_lambda_.3} parent=115 // pred_fallthru
          _
      $region116: #{_lambda_.3} parent=5 // pred_fallthru
        _
    $region6: #{_lambda_.3} parent=1 // loop_footer
      %s39 = sadd.s32 1, %s35
    $region7: #{_lambda_.3} parent=1 // loop_footer_branch
      %34 = sbr.rel target = $region3
    $region8: #{_lambda_.3} parent=1 // loop_exit
      _
    %1752 = vsyncpa [#allocation3], 1
    %s1753 = scalar_lea.sflag [#allocation3], 1
    %1754 = vsyncpa %s1753, 1
    %1755 = vsyncpa [#allocation5], 1
    %s1756 = scalar_lea.sflag [#allocation5], 1
    %1757 = vsyncpa %s1756, 1

</llo_original>
